<compile_context>
chip_gen: v7x
topology: tpu7x:2x2x1
jax: 0.10.0
libtpu: 0.0.40
codegen_flags: <defaults>
</compile_context>

<pallas_src>
import numpy as np

import jax
import jax.numpy as jnp
from jax.experimental import pallas as pl
from jax.experimental.pallas import tpu as pltpu


# ------------------------------ fused kernel -------------------------------

def _lenet_kernel(x_ref, m1_ref, b1_ref, m2_ref, b2_ref,
                  wf1_ref, bf1_ref, wf2_ref, bf2_ref, wf3_ref, bf3_ref,
                  o_ref):
    f32, bf16 = jnp.float32, jnp.bfloat16
    nb = o_ref.shape[0]                       # batch-block size (16)
    x = x_ref[...]                            # (32*nb, 96) bf16; row = h*nb+m

    def gather(v, a, n_t):
        # rows {(2*t + a)*nb + m : t < n_t, m < nb}: n_t contiguous,
        # tile-aligned nb-row chunks -> static slices + concat (no matmul).
        return jnp.concatenate(
            [v[(2 * t + a) * nb:(2 * t + a + 1) * nb] for t in range(n_t)],
            axis=0)

    def conv_pool(rows, m_ref, b_ref, q_lanes):
        # rows[a]: (T*nb, K) bf16, a = 0..5.  m_ref: (5, K, 256) with the two
        # pool-column quadrants at lanes [0, q) and [128, 128+q).
        quads = []
        for pi in range(2):                   # pool row within the 2x2 window
            acc = jnp.dot(rows[pi], m_ref[0], preferred_element_type=f32)
            for di in range(1, 5):            # conv tap rows
                acc = acc + jnp.dot(rows[pi + di], m_ref[di],
                                    preferred_element_type=f32)
            quads += [acc[:, :q_lanes], acc[:, 128:128 + q_lanes]]
        p = jnp.maximum(jnp.maximum(quads[0], quads[1]),
                        jnp.maximum(quads[2], quads[3]))
        # per-channel BN bias & ReLU commute with the 2x2 max (f32 epilogue).
        return jnp.maximum(p + b_ref[...], 0.0).astype(bf16)

    # conv1 (BN scale folded) + bias + ReLU + 2x2 maxpool -> (14*nb, 112)
    p1 = conv_pool([gather(x, a, 14) for a in range(6)], m1_ref, b1_ref, 112)
    # conv2 (BN folded) + bias + ReLU + 2x2 maxpool -> (5*nb, 80)
    p2 = conv_pool([gather(p1, a, 5) for a in range(6)], m2_ref, b2_ref, 80)

    # flatten (torch NCHW order baked into wf1) + fc1 + ReLU
    h = jnp.dot(p2[:nb], wf1_ref[0], preferred_element_type=f32)
    for r in range(1, 5):
        h = h + jnp.dot(p2[r * nb:(r + 1) * nb], wf1_ref[r],
                        preferred_element_type=f32)
    h = jnp.maximum(h + bf1_ref[...], 0.0).astype(bf16)       # (nb, 120)

    # fc2 + ReLU
    h2 = jnp.dot(h, wf2_ref[...], preferred_element_type=f32)
    h2 = jnp.maximum(h2 + bf2_ref[...], 0.0).astype(bf16)     # (nb, 84)

    # fc3 (padded to 128 output lanes -> lane-dense, unmasked HBM store)
    out = jnp.dot(h2, wf3_ref[...], preferred_element_type=f32) + bf3_ref[...]
    o_ref[...] = out.astype(o_ref.dtype)                      # (nb, 128)


# --------------------------- parameters / repack ---------------------------

def init_params(key):
    ks = jax.random.split(key, 8)
    p = {}
    # Conv1: 3 -> 8 (6 rounded up by CHANNEL_DIVISOR=8), k=5
    p["w1"] = jax.random.normal(ks[0], (8, 3, 5, 5), jnp.float32) * 0.10
    # Conv2: 8 -> 16, k=5
    p["w2"] = jax.random.normal(ks[1], (16, 8, 5, 5), jnp.float32) * 0.10
    # Eval-mode BatchNorm parameters (PyTorch defaults).
    p["bn1_gamma"] = jnp.ones((8,), jnp.float32)
    p["bn1_beta"] = jnp.zeros((8,), jnp.float32)
    p["bn1_mean"] = jnp.zeros((8,), jnp.float32)
    p["bn1_var"] = jnp.ones((8,), jnp.float32)
    p["bn2_gamma"] = jnp.ones((16,), jnp.float32)
    p["bn2_beta"] = jnp.zeros((16,), jnp.float32)
    p["bn2_mean"] = jnp.zeros((16,), jnp.float32)
    p["bn2_var"] = jnp.ones((16,), jnp.float32)
    # Linear layers (PyTorch weight layout: (out, in)).
    p["fc1_w"] = jax.random.normal(ks[2], (120, 400), jnp.float32) * 0.05
    p["fc1_b"] = jax.random.normal(ks[3], (120,), jnp.float32) * 0.05
    p["fc2_w"] = jax.random.normal(ks[4], (84, 120), jnp.float32) * 0.05
    p["fc2_b"] = jax.random.normal(ks[5], (84,), jnp.float32) * 0.05
    p["fc3_w"] = jax.random.normal(ks[6], (10, 84), jnp.float32) * 0.05
    p["fc3_b"] = jax.random.normal(ks[7], (10,), jnp.float32) * 0.05
    return p


def build_constants(p):
    """One-time offline repack of the PyTorch-layout weights for the kernel.

    (Batch-block independent: the old O(nb^2) selection matrices are gone.)
    """
    eps = 1e-5

    def g(name):
        return np.asarray(p[name]).astype(np.float32)

    # Fold eval-mode BatchNorm into per-channel scale/bias; scale goes into
    # the conv weights, bias is applied after the pool-quadrant max.
    s1 = g("bn1_gamma") / np.sqrt(g("bn1_var") + eps)
    b1 = g("bn1_beta") - g("bn1_mean") * s1
    s2 = g("bn2_gamma") / np.sqrt(g("bn2_var") + eps)
    b2 = g("bn2_beta") - g("bn2_mean") * s2
    sw1 = g("w1") * s1[:, None, None, None]          # (8, 3, 5, 5)
    sw2 = g("w2") * s2[:, None, None, None]          # (16, 8, 5, 5)

    # conv1 banded tap matrices, both pool-column quadrants merged on the lane
    # axis (each quadrant padded to a full 128-lane tile):
    #   m1[di][w_in*3+ci, pj*128 + wp*8 + co] = sw1[co, ci, di, w_in-(2*wp+pj)]
    m1 = np.zeros((5, 32, 3, 2, 128), np.float32)
    for pj in range(2):
        for dj in range(5):
            for wp in range(14):
                m1[:, 2 * wp + pj + dj, :, pj, wp * 8:(wp + 1) * 8] = \
                    sw1[:, :, :, dj].transpose(2, 1, 0)
    m1 = m1.reshape(5, 96, 256)

    # conv2 banded tap matrices:
    #   m2[di][wp*8+ci, qj*128 + w5*16 + co] = sw2[co, ci, di, wp-(2*w5+qj)]
    m2 = np.zeros((5, 14, 8, 2, 128), np.float32)
    for qj in range(2):
        for dj in range(5):
            for w5 in range(5):
                m2[:, 2 * w5 + qj + dj, :, qj, w5 * 16:(w5 + 1) * 16] = \
                    sw2[:, :, :, dj].transpose(2, 1, 0)
    m2 = m2.reshape(5, 112, 256)

    # Per-channel biases tiled to the lane layouts (wp*8+co / w5*16+co).
    b1t = np.tile(b1, 14).reshape(1, 112)
    b2t = np.tile(b2, 5).reshape(1, 80)

    # fc1 weight rows permuted into torch.flatten(NCHW) order, split per h5.
    wf1 = g("fc1_w").reshape(120, 16, 5, 5).transpose(2, 3, 1, 0).reshape(5, 80, 120)
    wf2 = g("fc2_w").T                                 # (120, 84)
    wf3 = np.zeros((84, 128), np.float32)
    wf3[:, :10] = g("fc3_w").T
    bf1 = g("fc1_b").reshape(1, 120)
    bf2 = g("fc2_b").reshape(1, 84)
    bf3 = np.zeros((1, 128), np.float32)
    bf3[0, :10] = g("fc3_b")

    bf16 = jnp.bfloat16
    return dict(
        m1=jnp.asarray(m1, bf16), b1t=jnp.asarray(b1t, jnp.float32),
        m2=jnp.asarray(m2, bf16), b2t=jnp.asarray(b2t, jnp.float32),
        wf1=jnp.asarray(wf1, bf16), bf1=jnp.asarray(bf1, jnp.float32),
        wf2=jnp.asarray(wf2, bf16), bf2=jnp.asarray(bf2, jnp.float32),
        wf3=jnp.asarray(wf3, bf16), bf3=jnp.asarray(bf3, jnp.float32),
    )


# --------------------------------- wrapper ---------------------------------

def forward(x_nchw, consts, batch_block=16):
    N, C, H, W = x_nchw.shape
    assert (C, H, W) == (3, 32, 32)
    nb = batch_block
    assert nb % 16 == 0 and N % nb == 0
    B = N // nb

    # Layout prep only: cast to bf16 BEFORE the relayout (half the HBM bytes),
    # then permute to per-block h-major rows:
    #   row = b*(32*nb) + h*nb + m, lane = w*3 + c.
    x2d = (x_nchw.astype(jnp.bfloat16)
           .reshape(B, nb, 3, 32, 32)
           .transpose(0, 3, 1, 4, 2)
           .reshape(B * 32 * nb, 96))

    names = ("m1", "b1t", "m2", "b2t", "wf1", "bf1", "wf2", "bf2", "wf3", "bf3")
    weights = [consts[k] for k in names]

    def full_spec(a):
        return pl.BlockSpec(a.shape, lambda b, _nd=a.ndim: (0,) * _nd)

    out = pl.pallas_call(
        _lenet_kernel,
        out_shape=jax.ShapeDtypeStruct((N, 128), jnp.float32),
        grid=(B,),
        in_specs=[pl.BlockSpec((nb * 32, 96), lambda b: (b, 0))] +
                 [full_spec(w) for w in weights],
        out_specs=pl.BlockSpec((nb, 128), lambda b: (b, 0)),
        compiler_params=pltpu.CompilerParams(
            dimension_semantics=("parallel",)),
    )(x2d, *weights)

    return out[:, :10]                                  # drop lane padding


if __name__ == "__main__":
    key = jax.random.PRNGKey(0)
    k_params, k_input = jax.random.split(key)
    params = init_params(k_params)
    consts = build_constants(params)

    N = 32                       # 2 grid steps at nb=16 (v7x: both TensorCores)
    x = jax.random.normal(k_input, (N, 3, 32, 32), jnp.float32)  # NCHW input

    fwd = jax.jit(lambda xx: forward(xx, consts, batch_block=16))
    out = jax.block_until_ready(fwd(x))
    assert out.shape == (N, 10), out.shape
    assert out.dtype == jnp.float32
    assert bool(jnp.all(jnp.isfinite(out)))
    print("KERNEL_OK")
</pallas_src>

<mosaic_0001>
module attributes {stable_mosaic.version = 11 : i64} {
  func.func @_lenet_kernel(%arg0: i32, %arg1: memref<512x96xbf16, #tpu.memory_space<vmem>>, %arg2: memref<5x96x256xbf16, #tpu.memory_space<vmem>>, %arg3: memref<1x112xf32, #tpu.memory_space<vmem>>, %arg4: memref<5x112x256xbf16, #tpu.memory_space<vmem>>, %arg5: memref<1x80xf32, #tpu.memory_space<vmem>>, %arg6: memref<5x80x120xbf16, #tpu.memory_space<vmem>>, %arg7: memref<1x120xf32, #tpu.memory_space<vmem>>, %arg8: memref<120x84xbf16, #tpu.memory_space<vmem>>, %arg9: memref<1x84xf32, #tpu.memory_space<vmem>>, %arg10: memref<84x128xbf16, #tpu.memory_space<vmem>>, %arg11: memref<1x128xf32, #tpu.memory_space<vmem>>, %arg12: memref<16x128xf32, #tpu.memory_space<vmem>>) attributes {dimension_semantics = [#tpu.dimension_semantics<parallel>], iteration_bounds = array<i64: 2>, scalar_prefetch = 0 : i64, scratch_operands = 0 : i64, tpu.core_type = #tpu.core_type<tc>, window_params = [{transform_indices = @transform_0, window_bounds = array<i64: 512, 96>}, {pipeline_mode = #tpu.pipeline_mode<synchronous>, transform_indices = @transform_1, window_bounds = array<i64: 5, 96, 256>}, {pipeline_mode = #tpu.pipeline_mode<synchronous>, transform_indices = @transform_2, window_bounds = array<i64: 1, 112>}, {pipeline_mode = #tpu.pipeline_mode<synchronous>, transform_indices = @transform_3, window_bounds = array<i64: 5, 112, 256>}, {pipeline_mode = #tpu.pipeline_mode<synchronous>, transform_indices = @transform_4, window_bounds = array<i64: 1, 80>}, {pipeline_mode = #tpu.pipeline_mode<synchronous>, transform_indices = @transform_5, window_bounds = array<i64: 5, 80, 120>}, {pipeline_mode = #tpu.pipeline_mode<synchronous>, transform_indices = @transform_6, window_bounds = array<i64: 1, 120>}, {pipeline_mode = #tpu.pipeline_mode<synchronous>, transform_indices = @transform_7, window_bounds = array<i64: 120, 84>}, {pipeline_mode = #tpu.pipeline_mode<synchronous>, transform_indices = @transform_8, window_bounds = array<i64: 1, 84>}, {pipeline_mode = #tpu.pipeline_mode<synchronous>, transform_indices = @transform_9, window_bounds = array<i64: 84, 128>}, {pipeline_mode = #tpu.pipeline_mode<synchronous>, transform_indices = @transform_10, window_bounds = array<i64: 1, 128>}, {transform_indices = @transform_11, window_bounds = array<i64: 16, 128>}]} {
    %c0 = arith.constant 0 : index
    %c0_0 = arith.constant 0 : index
    %0 = vector.load %arg1[%c0, %c0_0] : memref<512x96xbf16, #tpu.memory_space<vmem>>, vector<512x96xbf16>
    %1 = vector.extract_strided_slice %0 {offsets = [0, 0], sizes = [16, 96], strides = [1, 1]} : vector<512x96xbf16> to vector<16x96xbf16>
    %2 = vector.extract_strided_slice %0 {offsets = [32, 0], sizes = [16, 96], strides = [1, 1]} : vector<512x96xbf16> to vector<16x96xbf16>
    %3 = vector.extract_strided_slice %0 {offsets = [64, 0], sizes = [16, 96], strides = [1, 1]} : vector<512x96xbf16> to vector<16x96xbf16>
    %4 = vector.extract_strided_slice %0 {offsets = [96, 0], sizes = [16, 96], strides = [1, 1]} : vector<512x96xbf16> to vector<16x96xbf16>
    %5 = vector.extract_strided_slice %0 {offsets = [128, 0], sizes = [16, 96], strides = [1, 1]} : vector<512x96xbf16> to vector<16x96xbf16>
    %6 = vector.extract_strided_slice %0 {offsets = [160, 0], sizes = [16, 96], strides = [1, 1]} : vector<512x96xbf16> to vector<16x96xbf16>
    %7 = vector.extract_strided_slice %0 {offsets = [192, 0], sizes = [16, 96], strides = [1, 1]} : vector<512x96xbf16> to vector<16x96xbf16>
    %8 = vector.extract_strided_slice %0 {offsets = [224, 0], sizes = [16, 96], strides = [1, 1]} : vector<512x96xbf16> to vector<16x96xbf16>
    %9 = vector.extract_strided_slice %0 {offsets = [256, 0], sizes = [16, 96], strides = [1, 1]} : vector<512x96xbf16> to vector<16x96xbf16>
    %10 = vector.extract_strided_slice %0 {offsets = [288, 0], sizes = [16, 96], strides = [1, 1]} : vector<512x96xbf16> to vector<16x96xbf16>
    %11 = vector.extract_strided_slice %0 {offsets = [320, 0], sizes = [16, 96], strides = [1, 1]} : vector<512x96xbf16> to vector<16x96xbf16>
    %12 = vector.extract_strided_slice %0 {offsets = [352, 0], sizes = [16, 96], strides = [1, 1]} : vector<512x96xbf16> to vector<16x96xbf16>
    %13 = vector.extract_strided_slice %0 {offsets = [384, 0], sizes = [16, 96], strides = [1, 1]} : vector<512x96xbf16> to vector<16x96xbf16>
    %14 = vector.extract_strided_slice %0 {offsets = [416, 0], sizes = [16, 96], strides = [1, 1]} : vector<512x96xbf16> to vector<16x96xbf16>
    %15 = tpu.concatenate %1, %2, %3, %4, %5, %6, %7, %8, %9, %10, %11, %12, %13, %14 in 0 : vector<16x96xbf16>, vector<16x96xbf16>, vector<16x96xbf16>, vector<16x96xbf16>, vector<16x96xbf16>, vector<16x96xbf16>, vector<16x96xbf16>, vector<16x96xbf16>, vector<16x96xbf16>, vector<16x96xbf16>, vector<16x96xbf16>, vector<16x96xbf16>, vector<16x96xbf16>, vector<16x96xbf16> -> vector<224x96xbf16>
    %16 = vector.extract_strided_slice %0 {offsets = [16, 0], sizes = [16, 96], strides = [1, 1]} : vector<512x96xbf16> to vector<16x96xbf16>
    %17 = vector.extract_strided_slice %0 {offsets = [48, 0], sizes = [16, 96], strides = [1, 1]} : vector<512x96xbf16> to vector<16x96xbf16>
    %18 = vector.extract_strided_slice %0 {offsets = [80, 0], sizes = [16, 96], strides = [1, 1]} : vector<512x96xbf16> to vector<16x96xbf16>
    %19 = vector.extract_strided_slice %0 {offsets = [112, 0], sizes = [16, 96], strides = [1, 1]} : vector<512x96xbf16> to vector<16x96xbf16>
    %20 = vector.extract_strided_slice %0 {offsets = [144, 0], sizes = [16, 96], strides = [1, 1]} : vector<512x96xbf16> to vector<16x96xbf16>
    %21 = vector.extract_strided_slice %0 {offsets = [176, 0], sizes = [16, 96], strides = [1, 1]} : vector<512x96xbf16> to vector<16x96xbf16>
    %22 = vector.extract_strided_slice %0 {offsets = [208, 0], sizes = [16, 96], strides = [1, 1]} : vector<512x96xbf16> to vector<16x96xbf16>
    %23 = vector.extract_strided_slice %0 {offsets = [240, 0], sizes = [16, 96], strides = [1, 1]} : vector<512x96xbf16> to vector<16x96xbf16>
    %24 = vector.extract_strided_slice %0 {offsets = [272, 0], sizes = [16, 96], strides = [1, 1]} : vector<512x96xbf16> to vector<16x96xbf16>
    %25 = vector.extract_strided_slice %0 {offsets = [304, 0], sizes = [16, 96], strides = [1, 1]} : vector<512x96xbf16> to vector<16x96xbf16>
    %26 = vector.extract_strided_slice %0 {offsets = [336, 0], sizes = [16, 96], strides = [1, 1]} : vector<512x96xbf16> to vector<16x96xbf16>
    %27 = vector.extract_strided_slice %0 {offsets = [368, 0], sizes = [16, 96], strides = [1, 1]} : vector<512x96xbf16> to vector<16x96xbf16>
    %28 = vector.extract_strided_slice %0 {offsets = [400, 0], sizes = [16, 96], strides = [1, 1]} : vector<512x96xbf16> to vector<16x96xbf16>
    %29 = vector.extract_strided_slice %0 {offsets = [432, 0], sizes = [16, 96], strides = [1, 1]} : vector<512x96xbf16> to vector<16x96xbf16>
    %30 = tpu.concatenate %16, %17, %18, %19, %20, %21, %22, %23, %24, %25, %26, %27, %28, %29 in 0 : vector<16x96xbf16>, vector<16x96xbf16>, vector<16x96xbf16>, vector<16x96xbf16>, vector<16x96xbf16>, vector<16x96xbf16>, vector<16x96xbf16>, vector<16x96xbf16>, vector<16x96xbf16>, vector<16x96xbf16>, vector<16x96xbf16>, vector<16x96xbf16>, vector<16x96xbf16>, vector<16x96xbf16> -> vector<224x96xbf16>
    %31 = vector.extract_strided_slice %0 {offsets = [32, 0], sizes = [16, 96], strides = [1, 1]} : vector<512x96xbf16> to vector<16x96xbf16>
    %32 = vector.extract_strided_slice %0 {offsets = [64, 0], sizes = [16, 96], strides = [1, 1]} : vector<512x96xbf16> to vector<16x96xbf16>
    %33 = vector.extract_strided_slice %0 {offsets = [96, 0], sizes = [16, 96], strides = [1, 1]} : vector<512x96xbf16> to vector<16x96xbf16>
    %34 = vector.extract_strided_slice %0 {offsets = [128, 0], sizes = [16, 96], strides = [1, 1]} : vector<512x96xbf16> to vector<16x96xbf16>
    %35 = vector.extract_strided_slice %0 {offsets = [160, 0], sizes = [16, 96], strides = [1, 1]} : vector<512x96xbf16> to vector<16x96xbf16>
    %36 = vector.extract_strided_slice %0 {offsets = [192, 0], sizes = [16, 96], strides = [1, 1]} : vector<512x96xbf16> to vector<16x96xbf16>
    %37 = vector.extract_strided_slice %0 {offsets = [224, 0], sizes = [16, 96], strides = [1, 1]} : vector<512x96xbf16> to vector<16x96xbf16>
    %38 = vector.extract_strided_slice %0 {offsets = [256, 0], sizes = [16, 96], strides = [1, 1]} : vector<512x96xbf16> to vector<16x96xbf16>
    %39 = vector.extract_strided_slice %0 {offsets = [288, 0], sizes = [16, 96], strides = [1, 1]} : vector<512x96xbf16> to vector<16x96xbf16>
    %40 = vector.extract_strided_slice %0 {offsets = [320, 0], sizes = [16, 96], strides = [1, 1]} : vector<512x96xbf16> to vector<16x96xbf16>
    %41 = vector.extract_strided_slice %0 {offsets = [352, 0], sizes = [16, 96], strides = [1, 1]} : vector<512x96xbf16> to vector<16x96xbf16>
    %42 = vector.extract_strided_slice %0 {offsets = [384, 0], sizes = [16, 96], strides = [1, 1]} : vector<512x96xbf16> to vector<16x96xbf16>
    %43 = vector.extract_strided_slice %0 {offsets = [416, 0], sizes = [16, 96], strides = [1, 1]} : vector<512x96xbf16> to vector<16x96xbf16>
    %44 = vector.extract_strided_slice %0 {offsets = [448, 0], sizes = [16, 96], strides = [1, 1]} : vector<512x96xbf16> to vector<16x96xbf16>
    %45 = tpu.concatenate %31, %32, %33, %34, %35, %36, %37, %38, %39, %40, %41, %42, %43, %44 in 0 : vector<16x96xbf16>, vector<16x96xbf16>, vector<16x96xbf16>, vector<16x96xbf16>, vector<16x96xbf16>, vector<16x96xbf16>, vector<16x96xbf16>, vector<16x96xbf16>, vector<16x96xbf16>, vector<16x96xbf16>, vector<16x96xbf16>, vector<16x96xbf16>, vector<16x96xbf16>, vector<16x96xbf16> -> vector<224x96xbf16>
    %46 = vector.extract_strided_slice %0 {offsets = [48, 0], sizes = [16, 96], strides = [1, 1]} : vector<512x96xbf16> to vector<16x96xbf16>
    %47 = vector.extract_strided_slice %0 {offsets = [80, 0], sizes = [16, 96], strides = [1, 1]} : vector<512x96xbf16> to vector<16x96xbf16>
    %48 = vector.extract_strided_slice %0 {offsets = [112, 0], sizes = [16, 96], strides = [1, 1]} : vector<512x96xbf16> to vector<16x96xbf16>
    %49 = vector.extract_strided_slice %0 {offsets = [144, 0], sizes = [16, 96], strides = [1, 1]} : vector<512x96xbf16> to vector<16x96xbf16>
    %50 = vector.extract_strided_slice %0 {offsets = [176, 0], sizes = [16, 96], strides = [1, 1]} : vector<512x96xbf16> to vector<16x96xbf16>
    %51 = vector.extract_strided_slice %0 {offsets = [208, 0], sizes = [16, 96], strides = [1, 1]} : vector<512x96xbf16> to vector<16x96xbf16>
    %52 = vector.extract_strided_slice %0 {offsets = [240, 0], sizes = [16, 96], strides = [1, 1]} : vector<512x96xbf16> to vector<16x96xbf16>
    %53 = vector.extract_strided_slice %0 {offsets = [272, 0], sizes = [16, 96], strides = [1, 1]} : vector<512x96xbf16> to vector<16x96xbf16>
    %54 = vector.extract_strided_slice %0 {offsets = [304, 0], sizes = [16, 96], strides = [1, 1]} : vector<512x96xbf16> to vector<16x96xbf16>
    %55 = vector.extract_strided_slice %0 {offsets = [336, 0], sizes = [16, 96], strides = [1, 1]} : vector<512x96xbf16> to vector<16x96xbf16>
    %56 = vector.extract_strided_slice %0 {offsets = [368, 0], sizes = [16, 96], strides = [1, 1]} : vector<512x96xbf16> to vector<16x96xbf16>
    %57 = vector.extract_strided_slice %0 {offsets = [400, 0], sizes = [16, 96], strides = [1, 1]} : vector<512x96xbf16> to vector<16x96xbf16>
    %58 = vector.extract_strided_slice %0 {offsets = [432, 0], sizes = [16, 96], strides = [1, 1]} : vector<512x96xbf16> to vector<16x96xbf16>
    %59 = vector.extract_strided_slice %0 {offsets = [464, 0], sizes = [16, 96], strides = [1, 1]} : vector<512x96xbf16> to vector<16x96xbf16>
    %60 = tpu.concatenate %46, %47, %48, %49, %50, %51, %52, %53, %54, %55, %56, %57, %58, %59 in 0 : vector<16x96xbf16>, vector<16x96xbf16>, vector<16x96xbf16>, vector<16x96xbf16>, vector<16x96xbf16>, vector<16x96xbf16>, vector<16x96xbf16>, vector<16x96xbf16>, vector<16x96xbf16>, vector<16x96xbf16>, vector<16x96xbf16>, vector<16x96xbf16>, vector<16x96xbf16>, vector<16x96xbf16> -> vector<224x96xbf16>
    %61 = vector.extract_strided_slice %0 {offsets = [64, 0], sizes = [16, 96], strides = [1, 1]} : vector<512x96xbf16> to vector<16x96xbf16>
    %62 = vector.extract_strided_slice %0 {offsets = [96, 0], sizes = [16, 96], strides = [1, 1]} : vector<512x96xbf16> to vector<16x96xbf16>
    %63 = vector.extract_strided_slice %0 {offsets = [128, 0], sizes = [16, 96], strides = [1, 1]} : vector<512x96xbf16> to vector<16x96xbf16>
    %64 = vector.extract_strided_slice %0 {offsets = [160, 0], sizes = [16, 96], strides = [1, 1]} : vector<512x96xbf16> to vector<16x96xbf16>
    %65 = vector.extract_strided_slice %0 {offsets = [192, 0], sizes = [16, 96], strides = [1, 1]} : vector<512x96xbf16> to vector<16x96xbf16>
    %66 = vector.extract_strided_slice %0 {offsets = [224, 0], sizes = [16, 96], strides = [1, 1]} : vector<512x96xbf16> to vector<16x96xbf16>
    %67 = vector.extract_strided_slice %0 {offsets = [256, 0], sizes = [16, 96], strides = [1, 1]} : vector<512x96xbf16> to vector<16x96xbf16>
    %68 = vector.extract_strided_slice %0 {offsets = [288, 0], sizes = [16, 96], strides = [1, 1]} : vector<512x96xbf16> to vector<16x96xbf16>
    %69 = vector.extract_strided_slice %0 {offsets = [320, 0], sizes = [16, 96], strides = [1, 1]} : vector<512x96xbf16> to vector<16x96xbf16>
    %70 = vector.extract_strided_slice %0 {offsets = [352, 0], sizes = [16, 96], strides = [1, 1]} : vector<512x96xbf16> to vector<16x96xbf16>
    %71 = vector.extract_strided_slice %0 {offsets = [384, 0], sizes = [16, 96], strides = [1, 1]} : vector<512x96xbf16> to vector<16x96xbf16>
    %72 = vector.extract_strided_slice %0 {offsets = [416, 0], sizes = [16, 96], strides = [1, 1]} : vector<512x96xbf16> to vector<16x96xbf16>
    %73 = vector.extract_strided_slice %0 {offsets = [448, 0], sizes = [16, 96], strides = [1, 1]} : vector<512x96xbf16> to vector<16x96xbf16>
    %74 = vector.extract_strided_slice %0 {offsets = [480, 0], sizes = [16, 96], strides = [1, 1]} : vector<512x96xbf16> to vector<16x96xbf16>
    %75 = tpu.concatenate %61, %62, %63, %64, %65, %66, %67, %68, %69, %70, %71, %72, %73, %74 in 0 : vector<16x96xbf16>, vector<16x96xbf16>, vector<16x96xbf16>, vector<16x96xbf16>, vector<16x96xbf16>, vector<16x96xbf16>, vector<16x96xbf16>, vector<16x96xbf16>, vector<16x96xbf16>, vector<16x96xbf16>, vector<16x96xbf16>, vector<16x96xbf16>, vector<16x96xbf16>, vector<16x96xbf16> -> vector<224x96xbf16>
    %76 = vector.extract_strided_slice %0 {offsets = [80, 0], sizes = [16, 96], strides = [1, 1]} : vector<512x96xbf16> to vector<16x96xbf16>
    %77 = vector.extract_strided_slice %0 {offsets = [112, 0], sizes = [16, 96], strides = [1, 1]} : vector<512x96xbf16> to vector<16x96xbf16>
    %78 = vector.extract_strided_slice %0 {offsets = [144, 0], sizes = [16, 96], strides = [1, 1]} : vector<512x96xbf16> to vector<16x96xbf16>
    %79 = vector.extract_strided_slice %0 {offsets = [176, 0], sizes = [16, 96], strides = [1, 1]} : vector<512x96xbf16> to vector<16x96xbf16>
    %80 = vector.extract_strided_slice %0 {offsets = [208, 0], sizes = [16, 96], strides = [1, 1]} : vector<512x96xbf16> to vector<16x96xbf16>
    %81 = vector.extract_strided_slice %0 {offsets = [240, 0], sizes = [16, 96], strides = [1, 1]} : vector<512x96xbf16> to vector<16x96xbf16>
    %82 = vector.extract_strided_slice %0 {offsets = [272, 0], sizes = [16, 96], strides = [1, 1]} : vector<512x96xbf16> to vector<16x96xbf16>
    %83 = vector.extract_strided_slice %0 {offsets = [304, 0], sizes = [16, 96], strides = [1, 1]} : vector<512x96xbf16> to vector<16x96xbf16>
    %84 = vector.extract_strided_slice %0 {offsets = [336, 0], sizes = [16, 96], strides = [1, 1]} : vector<512x96xbf16> to vector<16x96xbf16>
    %85 = vector.extract_strided_slice %0 {offsets = [368, 0], sizes = [16, 96], strides = [1, 1]} : vector<512x96xbf16> to vector<16x96xbf16>
    %86 = vector.extract_strided_slice %0 {offsets = [400, 0], sizes = [16, 96], strides = [1, 1]} : vector<512x96xbf16> to vector<16x96xbf16>
    %87 = vector.extract_strided_slice %0 {offsets = [432, 0], sizes = [16, 96], strides = [1, 1]} : vector<512x96xbf16> to vector<16x96xbf16>
    %88 = vector.extract_strided_slice %0 {offsets = [464, 0], sizes = [16, 96], strides = [1, 1]} : vector<512x96xbf16> to vector<16x96xbf16>
    %89 = vector.extract_strided_slice %0 {offsets = [496, 0], sizes = [16, 96], strides = [1, 1]} : vector<512x96xbf16> to vector<16x96xbf16>
    %90 = tpu.concatenate %76, %77, %78, %79, %80, %81, %82, %83, %84, %85, %86, %87, %88, %89 in 0 : vector<16x96xbf16>, vector<16x96xbf16>, vector<16x96xbf16>, vector<16x96xbf16>, vector<16x96xbf16>, vector<16x96xbf16>, vector<16x96xbf16>, vector<16x96xbf16>, vector<16x96xbf16>, vector<16x96xbf16>, vector<16x96xbf16>, vector<16x96xbf16>, vector<16x96xbf16>, vector<16x96xbf16> -> vector<224x96xbf16>
    %c0_1 = arith.constant 0 : index
    %c0_2 = arith.constant 0 : index
    %c0_3 = arith.constant 0 : index
    %91 = vector.load %arg2[%c0_1, %c0_2, %c0_3] : memref<5x96x256xbf16, #tpu.memory_space<vmem>>, vector<1x96x256xbf16>
    %92 = vector.shape_cast %91 : vector<1x96x256xbf16> to vector<96x256xbf16>
    %cst = arith.constant dense<0.000000e+00> : vector<224x256xf32>
    %93 = tpu.matmul %15, %92, %cst {dimension_numbers = #tpu.dot_dimension_numbers<[1], [0], [0], [1], [0, 0, 1, 1], [], []>} : vector<224x96xbf16>, vector<96x256xbf16>, vector<224x256xf32> -> vector<224x256xf32>
    %c1 = arith.constant 1 : index
    %c0_4 = arith.constant 0 : index
    %c0_5 = arith.constant 0 : index
    %94 = vector.load %arg2[%c1, %c0_4, %c0_5] : memref<5x96x256xbf16, #tpu.memory_space<vmem>>, vector<1x96x256xbf16>
    %95 = vector.shape_cast %94 : vector<1x96x256xbf16> to vector<96x256xbf16>
    %cst_6 = arith.constant dense<0.000000e+00> : vector<224x256xf32>
    %96 = tpu.matmul %30, %95, %cst_6 {dimension_numbers = #tpu.dot_dimension_numbers<[1], [0], [0], [1], [0, 0, 1, 1], [], []>} : vector<224x96xbf16>, vector<96x256xbf16>, vector<224x256xf32> -> vector<224x256xf32>
    %97 = arith.addf %93, %96 : vector<224x256xf32>
    %c2 = arith.constant 2 : index
    %c0_7 = arith.constant 0 : index
    %c0_8 = arith.constant 0 : index
    %98 = vector.load %arg2[%c2, %c0_7, %c0_8] : memref<5x96x256xbf16, #tpu.memory_space<vmem>>, vector<1x96x256xbf16>
    %99 = vector.shape_cast %98 : vector<1x96x256xbf16> to vector<96x256xbf16>
    %cst_9 = arith.constant dense<0.000000e+00> : vector<224x256xf32>
    %100 = tpu.matmul %45, %99, %cst_9 {dimension_numbers = #tpu.dot_dimension_numbers<[1], [0], [0], [1], [0, 0, 1, 1], [], []>} : vector<224x96xbf16>, vector<96x256xbf16>, vector<224x256xf32> -> vector<224x256xf32>
    %101 = arith.addf %97, %100 : vector<224x256xf32>
    %c3 = arith.constant 3 : index
    %c0_10 = arith.constant 0 : index
    %c0_11 = arith.constant 0 : index
    %102 = vector.load %arg2[%c3, %c0_10, %c0_11] : memref<5x96x256xbf16, #tpu.memory_space<vmem>>, vector<1x96x256xbf16>
    %103 = vector.shape_cast %102 : vector<1x96x256xbf16> to vector<96x256xbf16>
    %cst_12 = arith.constant dense<0.000000e+00> : vector<224x256xf32>
    %104 = tpu.matmul %60, %103, %cst_12 {dimension_numbers = #tpu.dot_dimension_numbers<[1], [0], [0], [1], [0, 0, 1, 1], [], []>} : vector<224x96xbf16>, vector<96x256xbf16>, vector<224x256xf32> -> vector<224x256xf32>
    %105 = arith.addf %101, %104 : vector<224x256xf32>
    %c4 = arith.constant 4 : index
    %c0_13 = arith.constant 0 : index
    %c0_14 = arith.constant 0 : index
    %106 = vector.load %arg2[%c4, %c0_13, %c0_14] : memref<5x96x256xbf16, #tpu.memory_space<vmem>>, vector<1x96x256xbf16>
    %107 = vector.shape_cast %106 : vector<1x96x256xbf16> to vector<96x256xbf16>
    %cst_15 = arith.constant dense<0.000000e+00> : vector<224x256xf32>
    %108 = tpu.matmul %75, %107, %cst_15 {dimension_numbers = #tpu.dot_dimension_numbers<[1], [0], [0], [1], [0, 0, 1, 1], [], []>} : vector<224x96xbf16>, vector<96x256xbf16>, vector<224x256xf32> -> vector<224x256xf32>
    %109 = arith.addf %105, %108 : vector<224x256xf32>
    %110 = vector.extract_strided_slice %109 {offsets = [0, 0], sizes = [224, 112], strides = [1, 1]} : vector<224x256xf32> to vector<224x112xf32>
    %111 = vector.extract_strided_slice %109 {offsets = [0, 128], sizes = [224, 112], strides = [1, 1]} : vector<224x256xf32> to vector<224x112xf32>
    %c0_16 = arith.constant 0 : index
    %c0_17 = arith.constant 0 : index
    %c0_18 = arith.constant 0 : index
    %112 = vector.load %arg2[%c0_16, %c0_17, %c0_18] : memref<5x96x256xbf16, #tpu.memory_space<vmem>>, vector<1x96x256xbf16>
    %113 = vector.shape_cast %112 : vector<1x96x256xbf16> to vector<96x256xbf16>
    %cst_19 = arith.constant dense<0.000000e+00> : vector<224x256xf32>
    %114 = tpu.matmul %30, %113, %cst_19 {dimension_numbers = #tpu.dot_dimension_numbers<[1], [0], [0], [1], [0, 0, 1, 1], [], []>} : vector<224x96xbf16>, vector<96x256xbf16>, vector<224x256xf32> -> vector<224x256xf32>
    %c1_20 = arith.constant 1 : index
    %c0_21 = arith.constant 0 : index
    %c0_22 = arith.constant 0 : index
    %115 = vector.load %arg2[%c1_20, %c0_21, %c0_22] : memref<5x96x256xbf16, #tpu.memory_space<vmem>>, vector<1x96x256xbf16>
    %116 = vector.shape_cast %115 : vector<1x96x256xbf16> to vector<96x256xbf16>
    %cst_23 = arith.constant dense<0.000000e+00> : vector<224x256xf32>
    %117 = tpu.matmul %45, %116, %cst_23 {dimension_numbers = #tpu.dot_dimension_numbers<[1], [0], [0], [1], [0, 0, 1, 1], [], []>} : vector<224x96xbf16>, vector<96x256xbf16>, vector<224x256xf32> -> vector<224x256xf32>
    %118 = arith.addf %114, %117 : vector<224x256xf32>
    %c2_24 = arith.constant 2 : index
    %c0_25 = arith.constant 0 : index
    %c0_26 = arith.constant 0 : index
    %119 = vector.load %arg2[%c2_24, %c0_25, %c0_26] : memref<5x96x256xbf16, #tpu.memory_space<vmem>>, vector<1x96x256xbf16>
    %120 = vector.shape_cast %119 : vector<1x96x256xbf16> to vector<96x256xbf16>
    %cst_27 = arith.constant dense<0.000000e+00> : vector<224x256xf32>
    %121 = tpu.matmul %60, %120, %cst_27 {dimension_numbers = #tpu.dot_dimension_numbers<[1], [0], [0], [1], [0, 0, 1, 1], [], []>} : vector<224x96xbf16>, vector<96x256xbf16>, vector<224x256xf32> -> vector<224x256xf32>
    %122 = arith.addf %118, %121 : vector<224x256xf32>
    %c3_28 = arith.constant 3 : index
    %c0_29 = arith.constant 0 : index
    %c0_30 = arith.constant 0 : index
    %123 = vector.load %arg2[%c3_28, %c0_29, %c0_30] : memref<5x96x256xbf16, #tpu.memory_space<vmem>>, vector<1x96x256xbf16>
    %124 = vector.shape_cast %123 : vector<1x96x256xbf16> to vector<96x256xbf16>
    %cst_31 = arith.constant dense<0.000000e+00> : vector<224x256xf32>
    %125 = tpu.matmul %75, %124, %cst_31 {dimension_numbers = #tpu.dot_dimension_numbers<[1], [0], [0], [1], [0, 0, 1, 1], [], []>} : vector<224x96xbf16>, vector<96x256xbf16>, vector<224x256xf32> -> vector<224x256xf32>
    %126 = arith.addf %122, %125 : vector<224x256xf32>
    %c4_32 = arith.constant 4 : index
    %c0_33 = arith.constant 0 : index
    %c0_34 = arith.constant 0 : index
    %127 = vector.load %arg2[%c4_32, %c0_33, %c0_34] : memref<5x96x256xbf16, #tpu.memory_space<vmem>>, vector<1x96x256xbf16>
    %128 = vector.shape_cast %127 : vector<1x96x256xbf16> to vector<96x256xbf16>
    %cst_35 = arith.constant dense<0.000000e+00> : vector<224x256xf32>
    %129 = tpu.matmul %90, %128, %cst_35 {dimension_numbers = #tpu.dot_dimension_numbers<[1], [0], [0], [1], [0, 0, 1, 1], [], []>} : vector<224x96xbf16>, vector<96x256xbf16>, vector<224x256xf32> -> vector<224x256xf32>
    %130 = arith.addf %126, %129 : vector<224x256xf32>
    %131 = vector.extract_strided_slice %130 {offsets = [0, 0], sizes = [224, 112], strides = [1, 1]} : vector<224x256xf32> to vector<224x112xf32>
    %132 = vector.extract_strided_slice %130 {offsets = [0, 128], sizes = [224, 112], strides = [1, 1]} : vector<224x256xf32> to vector<224x112xf32>
    %133 = arith.maximumf %110, %111 : vector<224x112xf32>
    %134 = arith.maximumf %131, %132 : vector<224x112xf32>
    %135 = arith.maximumf %133, %134 : vector<224x112xf32>
    %c0_36 = arith.constant 0 : index
    %c0_37 = arith.constant 0 : index
    %136 = vector.load %arg3[%c0_36, %c0_37] : memref<1x112xf32, #tpu.memory_space<vmem>>, vector<1x112xf32>
    %137 = vector.broadcast %136 : vector<1x112xf32> to vector<224x112xf32>
    %138 = arith.addf %135, %137 : vector<224x112xf32>
    %cst_38 = arith.constant 0.000000e+00 : f32
    %139 = vector.broadcast %cst_38 : f32 to vector<224x112xf32>
    %140 = arith.maximumf %138, %139 : vector<224x112xf32>
    %141 = arith.truncf %140 : vector<224x112xf32> to vector<224x112xbf16>
    %142 = vector.extract_strided_slice %141 {offsets = [0, 0], sizes = [16, 112], strides = [1, 1]} : vector<224x112xbf16> to vector<16x112xbf16>
    %143 = vector.extract_strided_slice %141 {offsets = [32, 0], sizes = [16, 112], strides = [1, 1]} : vector<224x112xbf16> to vector<16x112xbf16>
    %144 = vector.extract_strided_slice %141 {offsets = [64, 0], sizes = [16, 112], strides = [1, 1]} : vector<224x112xbf16> to vector<16x112xbf16>
    %145 = vector.extract_strided_slice %141 {offsets = [96, 0], sizes = [16, 112], strides = [1, 1]} : vector<224x112xbf16> to vector<16x112xbf16>
    %146 = vector.extract_strided_slice %141 {offsets = [128, 0], sizes = [16, 112], strides = [1, 1]} : vector<224x112xbf16> to vector<16x112xbf16>
    %147 = tpu.concatenate %142, %143, %144, %145, %146 in 0 : vector<16x112xbf16>, vector<16x112xbf16>, vector<16x112xbf16>, vector<16x112xbf16>, vector<16x112xbf16> -> vector<80x112xbf16>
    %148 = vector.extract_strided_slice %141 {offsets = [16, 0], sizes = [16, 112], strides = [1, 1]} : vector<224x112xbf16> to vector<16x112xbf16>
    %149 = vector.extract_strided_slice %141 {offsets = [48, 0], sizes = [16, 112], strides = [1, 1]} : vector<224x112xbf16> to vector<16x112xbf16>
    %150 = vector.extract_strided_slice %141 {offsets = [80, 0], sizes = [16, 112], strides = [1, 1]} : vector<224x112xbf16> to vector<16x112xbf16>
    %151 = vector.extract_strided_slice %141 {offsets = [112, 0], sizes = [16, 112], strides = [1, 1]} : vector<224x112xbf16> to vector<16x112xbf16>
    %152 = vector.extract_strided_slice %141 {offsets = [144, 0], sizes = [16, 112], strides = [1, 1]} : vector<224x112xbf16> to vector<16x112xbf16>
    %153 = tpu.concatenate %148, %149, %150, %151, %152 in 0 : vector<16x112xbf16>, vector<16x112xbf16>, vector<16x112xbf16>, vector<16x112xbf16>, vector<16x112xbf16> -> vector<80x112xbf16>
    %154 = vector.extract_strided_slice %141 {offsets = [32, 0], sizes = [16, 112], strides = [1, 1]} : vector<224x112xbf16> to vector<16x112xbf16>
    %155 = vector.extract_strided_slice %141 {offsets = [64, 0], sizes = [16, 112], strides = [1, 1]} : vector<224x112xbf16> to vector<16x112xbf16>
    %156 = vector.extract_strided_slice %141 {offsets = [96, 0], sizes = [16, 112], strides = [1, 1]} : vector<224x112xbf16> to vector<16x112xbf16>
    %157 = vector.extract_strided_slice %141 {offsets = [128, 0], sizes = [16, 112], strides = [1, 1]} : vector<224x112xbf16> to vector<16x112xbf16>
    %158 = vector.extract_strided_slice %141 {offsets = [160, 0], sizes = [16, 112], strides = [1, 1]} : vector<224x112xbf16> to vector<16x112xbf16>
    %159 = tpu.concatenate %154, %155, %156, %157, %158 in 0 : vector<16x112xbf16>, vector<16x112xbf16>, vector<16x112xbf16>, vector<16x112xbf16>, vector<16x112xbf16> -> vector<80x112xbf16>
    %160 = vector.extract_strided_slice %141 {offsets = [48, 0], sizes = [16, 112], strides = [1, 1]} : vector<224x112xbf16> to vector<16x112xbf16>
    %161 = vector.extract_strided_slice %141 {offsets = [80, 0], sizes = [16, 112], strides = [1, 1]} : vector<224x112xbf16> to vector<16x112xbf16>
    %162 = vector.extract_strided_slice %141 {offsets = [112, 0], sizes = [16, 112], strides = [1, 1]} : vector<224x112xbf16> to vector<16x112xbf16>
    %163 = vector.extract_strided_slice %141 {offsets = [144, 0], sizes = [16, 112], strides = [1, 1]} : vector<224x112xbf16> to vector<16x112xbf16>
    %164 = vector.extract_strided_slice %141 {offsets = [176, 0], sizes = [16, 112], strides = [1, 1]} : vector<224x112xbf16> to vector<16x112xbf16>
    %165 = tpu.concatenate %160, %161, %162, %163, %164 in 0 : vector<16x112xbf16>, vector<16x112xbf16>, vector<16x112xbf16>, vector<16x112xbf16>, vector<16x112xbf16> -> vector<80x112xbf16>
    %166 = vector.extract_strided_slice %141 {offsets = [64, 0], sizes = [16, 112], strides = [1, 1]} : vector<224x112xbf16> to vector<16x112xbf16>
    %167 = vector.extract_strided_slice %141 {offsets = [96, 0], sizes = [16, 112], strides = [1, 1]} : vector<224x112xbf16> to vector<16x112xbf16>
    %168 = vector.extract_strided_slice %141 {offsets = [128, 0], sizes = [16, 112], strides = [1, 1]} : vector<224x112xbf16> to vector<16x112xbf16>
    %169 = vector.extract_strided_slice %141 {offsets = [160, 0], sizes = [16, 112], strides = [1, 1]} : vector<224x112xbf16> to vector<16x112xbf16>
    %170 = vector.extract_strided_slice %141 {offsets = [192, 0], sizes = [16, 112], strides = [1, 1]} : vector<224x112xbf16> to vector<16x112xbf16>
    %171 = tpu.concatenate %166, %167, %168, %169, %170 in 0 : vector<16x112xbf16>, vector<16x112xbf16>, vector<16x112xbf16>, vector<16x112xbf16>, vector<16x112xbf16> -> vector<80x112xbf16>
    %172 = vector.extract_strided_slice %141 {offsets = [80, 0], sizes = [16, 112], strides = [1, 1]} : vector<224x112xbf16> to vector<16x112xbf16>
    %173 = vector.extract_strided_slice %141 {offsets = [112, 0], sizes = [16, 112], strides = [1, 1]} : vector<224x112xbf16> to vector<16x112xbf16>
    %174 = vector.extract_strided_slice %141 {offsets = [144, 0], sizes = [16, 112], strides = [1, 1]} : vector<224x112xbf16> to vector<16x112xbf16>
    %175 = vector.extract_strided_slice %141 {offsets = [176, 0], sizes = [16, 112], strides = [1, 1]} : vector<224x112xbf16> to vector<16x112xbf16>
    %176 = vector.extract_strided_slice %141 {offsets = [208, 0], sizes = [16, 112], strides = [1, 1]} : vector<224x112xbf16> to vector<16x112xbf16>
    %177 = tpu.concatenate %172, %173, %174, %175, %176 in 0 : vector<16x112xbf16>, vector<16x112xbf16>, vector<16x112xbf16>, vector<16x112xbf16>, vector<16x112xbf16> -> vector<80x112xbf16>
    %c0_39 = arith.constant 0 : index
    %c0_40 = arith.constant 0 : index
    %c0_41 = arith.constant 0 : index
    %178 = vector.load %arg4[%c0_39, %c0_40, %c0_41] : memref<5x112x256xbf16, #tpu.memory_space<vmem>>, vector<1x112x256xbf16>
    %179 = vector.shape_cast %178 : vector<1x112x256xbf16> to vector<112x256xbf16>
    %cst_42 = arith.constant dense<0.000000e+00> : vector<80x256xf32>
    %180 = tpu.matmul %147, %179, %cst_42 {dimension_numbers = #tpu.dot_dimension_numbers<[1], [0], [0], [1], [0, 0, 1, 1], [], []>} : vector<80x112xbf16>, vector<112x256xbf16>, vector<80x256xf32> -> vector<80x256xf32>
    %c1_43 = arith.constant 1 : index
    %c0_44 = arith.constant 0 : index
    %c0_45 = arith.constant 0 : index
    %181 = vector.load %arg4[%c1_43, %c0_44, %c0_45] : memref<5x112x256xbf16, #tpu.memory_space<vmem>>, vector<1x112x256xbf16>
    %182 = vector.shape_cast %181 : vector<1x112x256xbf16> to vector<112x256xbf16>
    %cst_46 = arith.constant dense<0.000000e+00> : vector<80x256xf32>
    %183 = tpu.matmul %153, %182, %cst_46 {dimension_numbers = #tpu.dot_dimension_numbers<[1], [0], [0], [1], [0, 0, 1, 1], [], []>} : vector<80x112xbf16>, vector<112x256xbf16>, vector<80x256xf32> -> vector<80x256xf32>
    %184 = arith.addf %180, %183 : vector<80x256xf32>
    %c2_47 = arith.constant 2 : index
    %c0_48 = arith.constant 0 : index
    %c0_49 = arith.constant 0 : index
    %185 = vector.load %arg4[%c2_47, %c0_48, %c0_49] : memref<5x112x256xbf16, #tpu.memory_space<vmem>>, vector<1x112x256xbf16>
    %186 = vector.shape_cast %185 : vector<1x112x256xbf16> to vector<112x256xbf16>
    %cst_50 = arith.constant dense<0.000000e+00> : vector<80x256xf32>
    %187 = tpu.matmul %159, %186, %cst_50 {dimension_numbers = #tpu.dot_dimension_numbers<[1], [0], [0], [1], [0, 0, 1, 1], [], []>} : vector<80x112xbf16>, vector<112x256xbf16>, vector<80x256xf32> -> vector<80x256xf32>
    %188 = arith.addf %184, %187 : vector<80x256xf32>
    %c3_51 = arith.constant 3 : index
    %c0_52 = arith.constant 0 : index
    %c0_53 = arith.constant 0 : index
    %189 = vector.load %arg4[%c3_51, %c0_52, %c0_53] : memref<5x112x256xbf16, #tpu.memory_space<vmem>>, vector<1x112x256xbf16>
    %190 = vector.shape_cast %189 : vector<1x112x256xbf16> to vector<112x256xbf16>
    %cst_54 = arith.constant dense<0.000000e+00> : vector<80x256xf32>
    %191 = tpu.matmul %165, %190, %cst_54 {dimension_numbers = #tpu.dot_dimension_numbers<[1], [0], [0], [1], [0, 0, 1, 1], [], []>} : vector<80x112xbf16>, vector<112x256xbf16>, vector<80x256xf32> -> vector<80x256xf32>
    %192 = arith.addf %188, %191 : vector<80x256xf32>
    %c4_55 = arith.constant 4 : index
    %c0_56 = arith.constant 0 : index
    %c0_57 = arith.constant 0 : index
    %193 = vector.load %arg4[%c4_55, %c0_56, %c0_57] : memref<5x112x256xbf16, #tpu.memory_space<vmem>>, vector<1x112x256xbf16>
    %194 = vector.shape_cast %193 : vector<1x112x256xbf16> to vector<112x256xbf16>
    %cst_58 = arith.constant dense<0.000000e+00> : vector<80x256xf32>
    %195 = tpu.matmul %171, %194, %cst_58 {dimension_numbers = #tpu.dot_dimension_numbers<[1], [0], [0], [1], [0, 0, 1, 1], [], []>} : vector<80x112xbf16>, vector<112x256xbf16>, vector<80x256xf32> -> vector<80x256xf32>
    %196 = arith.addf %192, %195 : vector<80x256xf32>
    %197 = vector.extract_strided_slice %196 {offsets = [0, 0], sizes = [80, 80], strides = [1, 1]} : vector<80x256xf32> to vector<80x80xf32>
    %198 = vector.extract_strided_slice %196 {offsets = [0, 128], sizes = [80, 80], strides = [1, 1]} : vector<80x256xf32> to vector<80x80xf32>
    %c0_59 = arith.constant 0 : index
    %c0_60 = arith.constant 0 : index
    %c0_61 = arith.constant 0 : index
    %199 = vector.load %arg4[%c0_59, %c0_60, %c0_61] : memref<5x112x256xbf16, #tpu.memory_space<vmem>>, vector<1x112x256xbf16>
    %200 = vector.shape_cast %199 : vector<1x112x256xbf16> to vector<112x256xbf16>
    %cst_62 = arith.constant dense<0.000000e+00> : vector<80x256xf32>
    %201 = tpu.matmul %153, %200, %cst_62 {dimension_numbers = #tpu.dot_dimension_numbers<[1], [0], [0], [1], [0, 0, 1, 1], [], []>} : vector<80x112xbf16>, vector<112x256xbf16>, vector<80x256xf32> -> vector<80x256xf32>
    %c1_63 = arith.constant 1 : index
    %c0_64 = arith.constant 0 : index
    %c0_65 = arith.constant 0 : index
    %202 = vector.load %arg4[%c1_63, %c0_64, %c0_65] : memref<5x112x256xbf16, #tpu.memory_space<vmem>>, vector<1x112x256xbf16>
    %203 = vector.shape_cast %202 : vector<1x112x256xbf16> to vector<112x256xbf16>
    %cst_66 = arith.constant dense<0.000000e+00> : vector<80x256xf32>
    %204 = tpu.matmul %159, %203, %cst_66 {dimension_numbers = #tpu.dot_dimension_numbers<[1], [0], [0], [1], [0, 0, 1, 1], [], []>} : vector<80x112xbf16>, vector<112x256xbf16>, vector<80x256xf32> -> vector<80x256xf32>
    %205 = arith.addf %201, %204 : vector<80x256xf32>
    %c2_67 = arith.constant 2 : index
    %c0_68 = arith.constant 0 : index
    %c0_69 = arith.constant 0 : index
    %206 = vector.load %arg4[%c2_67, %c0_68, %c0_69] : memref<5x112x256xbf16, #tpu.memory_space<vmem>>, vector<1x112x256xbf16>
    %207 = vector.shape_cast %206 : vector<1x112x256xbf16> to vector<112x256xbf16>
    %cst_70 = arith.constant dense<0.000000e+00> : vector<80x256xf32>
    %208 = tpu.matmul %165, %207, %cst_70 {dimension_numbers = #tpu.dot_dimension_numbers<[1], [0], [0], [1], [0, 0, 1, 1], [], []>} : vector<80x112xbf16>, vector<112x256xbf16>, vector<80x256xf32> -> vector<80x256xf32>
    %209 = arith.addf %205, %208 : vector<80x256xf32>
    %c3_71 = arith.constant 3 : index
    %c0_72 = arith.constant 0 : index
    %c0_73 = arith.constant 0 : index
    %210 = vector.load %arg4[%c3_71, %c0_72, %c0_73] : memref<5x112x256xbf16, #tpu.memory_space<vmem>>, vector<1x112x256xbf16>
    %211 = vector.shape_cast %210 : vector<1x112x256xbf16> to vector<112x256xbf16>
    %cst_74 = arith.constant dense<0.000000e+00> : vector<80x256xf32>
    %212 = tpu.matmul %171, %211, %cst_74 {dimension_numbers = #tpu.dot_dimension_numbers<[1], [0], [0], [1], [0, 0, 1, 1], [], []>} : vector<80x112xbf16>, vector<112x256xbf16>, vector<80x256xf32> -> vector<80x256xf32>
    %213 = arith.addf %209, %212 : vector<80x256xf32>
    %c4_75 = arith.constant 4 : index
    %c0_76 = arith.constant 0 : index
    %c0_77 = arith.constant 0 : index
    %214 = vector.load %arg4[%c4_75, %c0_76, %c0_77] : memref<5x112x256xbf16, #tpu.memory_space<vmem>>, vector<1x112x256xbf16>
    %215 = vector.shape_cast %214 : vector<1x112x256xbf16> to vector<112x256xbf16>
    %cst_78 = arith.constant dense<0.000000e+00> : vector<80x256xf32>
    %216 = tpu.matmul %177, %215, %cst_78 {dimension_numbers = #tpu.dot_dimension_numbers<[1], [0], [0], [1], [0, 0, 1, 1], [], []>} : vector<80x112xbf16>, vector<112x256xbf16>, vector<80x256xf32> -> vector<80x256xf32>
    %217 = arith.addf %213, %216 : vector<80x256xf32>
    %218 = vector.extract_strided_slice %217 {offsets = [0, 0], sizes = [80, 80], strides = [1, 1]} : vector<80x256xf32> to vector<80x80xf32>
    %219 = vector.extract_strided_slice %217 {offsets = [0, 128], sizes = [80, 80], strides = [1, 1]} : vector<80x256xf32> to vector<80x80xf32>
    %220 = arith.maximumf %197, %198 : vector<80x80xf32>
    %221 = arith.maximumf %218, %219 : vector<80x80xf32>
    %222 = arith.maximumf %220, %221 : vector<80x80xf32>
    %c0_79 = arith.constant 0 : index
    %c0_80 = arith.constant 0 : index
    %223 = vector.load %arg5[%c0_79, %c0_80] : memref<1x80xf32, #tpu.memory_space<vmem>>, vector<1x80xf32>
    %224 = vector.broadcast %223 : vector<1x80xf32> to vector<80x80xf32>
    %225 = arith.addf %222, %224 : vector<80x80xf32>
    %cst_81 = arith.constant 0.000000e+00 : f32
    %226 = vector.broadcast %cst_81 : f32 to vector<80x80xf32>
    %227 = arith.maximumf %225, %226 : vector<80x80xf32>
    %228 = arith.truncf %227 : vector<80x80xf32> to vector<80x80xbf16>
    %229 = vector.extract_strided_slice %228 {offsets = [0, 0], sizes = [16, 80], strides = [1, 1]} : vector<80x80xbf16> to vector<16x80xbf16>
    %c0_82 = arith.constant 0 : index
    %c0_83 = arith.constant 0 : index
    %c0_84 = arith.constant 0 : index
    %230 = vector.load %arg6[%c0_82, %c0_83, %c0_84] : memref<5x80x120xbf16, #tpu.memory_space<vmem>>, vector<1x80x120xbf16>
    %231 = vector.shape_cast %230 : vector<1x80x120xbf16> to vector<80x120xbf16>
    %cst_85 = arith.constant dense<0.000000e+00> : vector<16x120xf32>
    %232 = tpu.matmul %229, %231, %cst_85 {dimension_numbers = #tpu.dot_dimension_numbers<[1], [0], [0], [1], [0, 0, 1, 1], [], []>} : vector<16x80xbf16>, vector<80x120xbf16>, vector<16x120xf32> -> vector<16x120xf32>
    %233 = vector.extract_strided_slice %228 {offsets = [16, 0], sizes = [16, 80], strides = [1, 1]} : vector<80x80xbf16> to vector<16x80xbf16>
    %c1_86 = arith.constant 1 : index
    %c0_87 = arith.constant 0 : index
    %c0_88 = arith.constant 0 : index
    %234 = vector.load %arg6[%c1_86, %c0_87, %c0_88] : memref<5x80x120xbf16, #tpu.memory_space<vmem>>, vector<1x80x120xbf16>
    %235 = vector.shape_cast %234 : vector<1x80x120xbf16> to vector<80x120xbf16>
    %cst_89 = arith.constant dense<0.000000e+00> : vector<16x120xf32>
    %236 = tpu.matmul %233, %235, %cst_89 {dimension_numbers = #tpu.dot_dimension_numbers<[1], [0], [0], [1], [0, 0, 1, 1], [], []>} : vector<16x80xbf16>, vector<80x120xbf16>, vector<16x120xf32> -> vector<16x120xf32>
    %237 = arith.addf %232, %236 : vector<16x120xf32>
    %238 = vector.extract_strided_slice %228 {offsets = [32, 0], sizes = [16, 80], strides = [1, 1]} : vector<80x80xbf16> to vector<16x80xbf16>
    %c2_90 = arith.constant 2 : index
    %c0_91 = arith.constant 0 : index
    %c0_92 = arith.constant 0 : index
    %239 = vector.load %arg6[%c2_90, %c0_91, %c0_92] : memref<5x80x120xbf16, #tpu.memory_space<vmem>>, vector<1x80x120xbf16>
    %240 = vector.shape_cast %239 : vector<1x80x120xbf16> to vector<80x120xbf16>
    %cst_93 = arith.constant dense<0.000000e+00> : vector<16x120xf32>
    %241 = tpu.matmul %238, %240, %cst_93 {dimension_numbers = #tpu.dot_dimension_numbers<[1], [0], [0], [1], [0, 0, 1, 1], [], []>} : vector<16x80xbf16>, vector<80x120xbf16>, vector<16x120xf32> -> vector<16x120xf32>
    %242 = arith.addf %237, %241 : vector<16x120xf32>
    %243 = vector.extract_strided_slice %228 {offsets = [48, 0], sizes = [16, 80], strides = [1, 1]} : vector<80x80xbf16> to vector<16x80xbf16>
    %c3_94 = arith.constant 3 : index
    %c0_95 = arith.constant 0 : index
    %c0_96 = arith.constant 0 : index
    %244 = vector.load %arg6[%c3_94, %c0_95, %c0_96] : memref<5x80x120xbf16, #tpu.memory_space<vmem>>, vector<1x80x120xbf16>
    %245 = vector.shape_cast %244 : vector<1x80x120xbf16> to vector<80x120xbf16>
    %cst_97 = arith.constant dense<0.000000e+00> : vector<16x120xf32>
    %246 = tpu.matmul %243, %245, %cst_97 {dimension_numbers = #tpu.dot_dimension_numbers<[1], [0], [0], [1], [0, 0, 1, 1], [], []>} : vector<16x80xbf16>, vector<80x120xbf16>, vector<16x120xf32> -> vector<16x120xf32>
    %247 = arith.addf %242, %246 : vector<16x120xf32>
    %248 = vector.extract_strided_slice %228 {offsets = [64, 0], sizes = [16, 80], strides = [1, 1]} : vector<80x80xbf16> to vector<16x80xbf16>
    %c4_98 = arith.constant 4 : index
    %c0_99 = arith.constant 0 : index
    %c0_100 = arith.constant 0 : index
    %249 = vector.load %arg6[%c4_98, %c0_99, %c0_100] : memref<5x80x120xbf16, #tpu.memory_space<vmem>>, vector<1x80x120xbf16>
    %250 = vector.shape_cast %249 : vector<1x80x120xbf16> to vector<80x120xbf16>
    %cst_101 = arith.constant dense<0.000000e+00> : vector<16x120xf32>
    %251 = tpu.matmul %248, %250, %cst_101 {dimension_numbers = #tpu.dot_dimension_numbers<[1], [0], [0], [1], [0, 0, 1, 1], [], []>} : vector<16x80xbf16>, vector<80x120xbf16>, vector<16x120xf32> -> vector<16x120xf32>
    %252 = arith.addf %247, %251 : vector<16x120xf32>
    %c0_102 = arith.constant 0 : index
    %c0_103 = arith.constant 0 : index
    %253 = vector.load %arg7[%c0_102, %c0_103] : memref<1x120xf32, #tpu.memory_space<vmem>>, vector<1x120xf32>
    %254 = vector.broadcast %253 : vector<1x120xf32> to vector<16x120xf32>
    %255 = arith.addf %252, %254 : vector<16x120xf32>
    %cst_104 = arith.constant 0.000000e+00 : f32
    %256 = vector.broadcast %cst_104 : f32 to vector<16x120xf32>
    %257 = arith.maximumf %255, %256 : vector<16x120xf32>
    %258 = arith.truncf %257 : vector<16x120xf32> to vector<16x120xbf16>
    %c0_105 = arith.constant 0 : index
    %c0_106 = arith.constant 0 : index
    %259 = vector.load %arg8[%c0_105, %c0_106] : memref<120x84xbf16, #tpu.memory_space<vmem>>, vector<120x84xbf16>
    %cst_107 = arith.constant dense<0.000000e+00> : vector<16x84xf32>
    %260 = tpu.matmul %258, %259, %cst_107 {dimension_numbers = #tpu.dot_dimension_numbers<[1], [0], [0], [1], [0, 0, 1, 1], [], []>} : vector<16x120xbf16>, vector<120x84xbf16>, vector<16x84xf32> -> vector<16x84xf32>
    %c0_108 = arith.constant 0 : index
    %c0_109 = arith.constant 0 : index
    %261 = vector.load %arg9[%c0_108, %c0_109] : memref<1x84xf32, #tpu.memory_space<vmem>>, vector<1x84xf32>
    %262 = vector.broadcast %261 : vector<1x84xf32> to vector<16x84xf32>
    %263 = arith.addf %260, %262 : vector<16x84xf32>
    %cst_110 = arith.constant 0.000000e+00 : f32
    %264 = vector.broadcast %cst_110 : f32 to vector<16x84xf32>
    %265 = arith.maximumf %263, %264 : vector<16x84xf32>
    %266 = arith.truncf %265 : vector<16x84xf32> to vector<16x84xbf16>
    %c0_111 = arith.constant 0 : index
    %c0_112 = arith.constant 0 : index
    %267 = vector.load %arg10[%c0_111, %c0_112] : memref<84x128xbf16, #tpu.memory_space<vmem>>, vector<84x128xbf16>
    %cst_113 = arith.constant dense<0.000000e+00> : vector<16x128xf32>
    %268 = tpu.matmul %266, %267, %cst_113 {dimension_numbers = #tpu.dot_dimension_numbers<[1], [0], [0], [1], [0, 0, 1, 1], [], []>} : vector<16x84xbf16>, vector<84x128xbf16>, vector<16x128xf32> -> vector<16x128xf32>
    %c0_114 = arith.constant 0 : index
    %c0_115 = arith.constant 0 : index
    %269 = vector.load %arg11[%c0_114, %c0_115] : memref<1x128xf32, #tpu.memory_space<vmem>>, vector<1x128xf32>
    %270 = vector.broadcast %269 : vector<1x128xf32> to vector<16x128xf32>
    %271 = arith.addf %268, %270 : vector<16x128xf32>
    %c0_116 = arith.constant 0 : index
    %c0_117 = arith.constant 0 : index
    %272 = vector.load %arg12[%c0_116, %c0_117] : memref<16x128xf32, #tpu.memory_space<vmem>>, vector<16x128xf32>
    tpu.vector_store %arg12[%c0_116, %c0_117], %271 {strides = array<i32>} : memref<16x128xf32, #tpu.memory_space<vmem>>, vector<16x128xf32>,
    return
  }
  func.func @transform_0(%arg0: i32) -> (i32, i32) {
    %c0_i32 = arith.constant 0 : i32
    %c0_i32_0 = arith.constant 0 : i32
    return %arg0, %c0_i32 : i32, i32
  }
  func.func @transform_1(%arg0: i32) -> (i32, i32, i32) {
    %c0_i32 = arith.constant 0 : i32
    %c0_i32_0 = arith.constant 0 : i32
    %c0_i32_1 = arith.constant 0 : i32
    %c0_i32_2 = arith.constant 0 : i32
    return %c0_i32, %c0_i32_0, %c0_i32_1 : i32, i32, i32
  }
  func.func @transform_2(%arg0: i32) -> (i32, i32) {
    %c0_i32 = arith.constant 0 : i32
    %c0_i32_0 = arith.constant 0 : i32
    %c0_i32_1 = arith.constant 0 : i32
    return %c0_i32, %c0_i32_0 : i32, i32
  }
  func.func @transform_3(%arg0: i32) -> (i32, i32, i32) {
    %c0_i32 = arith.constant 0 : i32
    %c0_i32_0 = arith.constant 0 : i32
    %c0_i32_1 = arith.constant 0 : i32
    %c0_i32_2 = arith.constant 0 : i32
    return %c0_i32, %c0_i32_0, %c0_i32_1 : i32, i32, i32
  }
  func.func @transform_4(%arg0: i32) -> (i32, i32) {
    %c0_i32 = arith.constant 0 : i32
    %c0_i32_0 = arith.constant 0 : i32
    %c0_i32_1 = arith.constant 0 : i32
    return %c0_i32, %c0_i32_0 : i32, i32
  }
  func.func @transform_5(%arg0: i32) -> (i32, i32, i32) {
    %c0_i32 = arith.constant 0 : i32
    %c0_i32_0 = arith.constant 0 : i32
    %c0_i32_1 = arith.constant 0 : i32
    %c0_i32_2 = arith.constant 0 : i32
    return %c0_i32, %c0_i32_0, %c0_i32_1 : i32, i32, i32
  }
  func.func @transform_6(%arg0: i32) -> (i32, i32) {
    %c0_i32 = arith.constant 0 : i32
    %c0_i32_0 = arith.constant 0 : i32
    %c0_i32_1 = arith.constant 0 : i32
    return %c0_i32, %c0_i32_0 : i32, i32
  }
  func.func @transform_7(%arg0: i32) -> (i32, i32) {
    %c0_i32 = arith.constant 0 : i32
    %c0_i32_0 = arith.constant 0 : i32
    %c0_i32_1 = arith.constant 0 : i32
    return %c0_i32, %c0_i32_0 : i32, i32
  }
  func.func @transform_8(%arg0: i32) -> (i32, i32) {
    %c0_i32 = arith.constant 0 : i32
    %c0_i32_0 = arith.constant 0 : i32
    %c0_i32_1 = arith.constant 0 : i32
    return %c0_i32, %c0_i32_0 : i32, i32
  }
  func.func @transform_9(%arg0: i32) -> (i32, i32) {
    %c0_i32 = arith.constant 0 : i32
    %c0_i32_0 = arith.constant 0 : i32
    %c0_i32_1 = arith.constant 0 : i32
    return %c0_i32, %c0_i32_0 : i32, i32
  }
  func.func @transform_10(%arg0: i32) -> (i32, i32) {
    %c0_i32 = arith.constant 0 : i32
    %c0_i32_0 = arith.constant 0 : i32
    %c0_i32_1 = arith.constant 0 : i32
    return %c0_i32, %c0_i32_0 : i32, i32
  }
  func.func @transform_11(%arg0: i32) -> (i32, i32) {
    %c0_i32 = arith.constant 0 : i32
    %c0_i32_0 = arith.constant 0 : i32
    return %arg0, %c0_i32 : i32, i32
  }
}

</mosaic_0001>

<llo_original>
// kernel: _lambda_.1
$region0: #{_lambda_.1}
  #allocation0 [shape = 'u32[]', space=smem, size = 0x4, offset = 0x4, fixed_abs, tag = 'smem constant byte address 0x4 - core index']
  #allocation1 [shape = 'u32[144,128]{1,0:T(1,128)}', space=vmem, size = 0x12000, scoped, tag = 'internal scratch']
  %s0 = inlined_call_operand.vmem [shape: bf16[1024,96], index: 0, kind: input, shape index: {}]
  %s1 = inlined_call_operand.vmem [shape: bf16[5,96,256], index: 1, kind: input, shape index: {}]
  %s2 = inlined_call_operand.vmem [shape: f32[1,112], index: 2, kind: input, shape index: {}]
  %s3 = inlined_call_operand.vmem [shape: bf16[5,112,256], index: 3, kind: input, shape index: {}]
  %s4 = inlined_call_operand.vmem [shape: f32[1,80], index: 4, kind: input, shape index: {}]
  %s5 = inlined_call_operand.vmem [shape: bf16[5,80,120], index: 5, kind: input, shape index: {}]
  %s6 = inlined_call_operand.vmem [shape: f32[1,120], index: 6, kind: input, shape index: {}]
  %s7 = inlined_call_operand.vmem [shape: bf16[120,84], index: 7, kind: input, shape index: {}]
  %s8 = inlined_call_operand.vmem [shape: f32[1,84], index: 8, kind: input, shape index: {}]
  %s9 = inlined_call_operand.vmem [shape: bf16[84,128], index: 9, kind: input, shape index: {}]
  %s10 = inlined_call_operand.vmem [shape: f32[1,128], index: 10, kind: input, shape index: {}]
  %s11 = inlined_call_operand.vmem [shape: f32[32,128], index: 11, kind: output, shape index: {}]
  %s12 = sld [smem:[#allocation0]]
  $region77: #{_lambda_.1} parent=0
    _
  %s14 = ssub.s32 1, %s12
  %s15 = scalar_select 0, %s14, %s12
  loop: start=0, step=1, limit=4
  $region2: #{_lambda_.1} parent=0 // loop_pre_header
    _
  $region3: #{_lambda_.1} parent=0 // loop_header
    %s17 = sphi 0, %s21
    %p18 = scmp.ge.s32.totalorder %s17, 4
    %s27 = sphi 0, %s29
    %s30 = sphi 0, %s27
    %s31 = sphi 0, %s30
    %s47 = sphi 0, %s31
    %s51 = sphi 0, %s51
    %s53 = sphi 0, %s51
    %s54 = sphi 0, %s53
    %s68 = sphi 0, %s54
    %s72 = sphi 0, %s72
    %s74 = sphi 0, %s72
    %s75 = sphi 0, %s74
    %s89 = sphi 0, %s75
    %s93 = sphi 0, %s93
    %s95 = sphi 0, %s93
    %s96 = sphi 0, %s95
    %s110 = sphi 0, %s96
    %s114 = sphi 0, %s114
    %s116 = sphi 0, %s114
    %s117 = sphi 0, %s116
    %s131 = sphi 0, %s117
    %s135 = sphi 0, %s135
    %s137 = sphi 0, %s135
    %s138 = sphi 0, %s137
    %s152 = sphi 0, %s138
    %s156 = sphi 0, %s156
    %s158 = sphi 0, %s156
    %s159 = sphi 0, %s158
    %s173 = sphi 0, %s159
    %s177 = sphi 0, %s177
    %s179 = sphi 0, %s177
    %s180 = sphi 0, %s179
    %s194 = sphi 0, %s180
    %s198 = sphi 0, %s198
    %s200 = sphi 0, %s198
    %s201 = sphi 0, %s200
    %s215 = sphi 0, %s201
    %s219 = sphi 0, %s219
    %s221 = sphi 0, %s219
    %s222 = sphi 0, %s221
    %s236 = sphi 0, %s222
    %s240 = sphi 0, %s240
    %s242 = sphi 0, %s240
    %s243 = sphi 0, %s242
    %s257 = sphi 0, %s243
    %s263 = sphi 0, %s265
    %s266 = sphi 0, %s263
    %s267 = sphi 0, %s266
    %s283 = sphi 0, %s267
  $region4: #{_lambda_.1} parent=0 // loop_header_branch
    %20 = sbr.rel (%p18) target = $region8
  $region5: #{_lambda_.1} parent=0 // loop_body
    %s22 = ssub.s32 %s17, 1
    %s23 = ssub.s32 %s17, 2
    %s24 = sadd.s32 %s17, 1
    %s25 = ssub.s32 %s17, %s24
    %p26 = scmp.eq.s32.totalorder %s25, 0
    %s28 = sadd.s32 %s27, 1
    %s29 = scalar_select %p26, %s27, %s28
    %p32 = pneg %p26
    %p33 = scmp.eq.s32.totalorder %s17, 1
    %p34 = por %p32, %p33
    %p35 = scmp.ne.s32.totalorder %s27, %s30
    %p36 = scmp.eq.s32.totalorder %s17, 0
    %p37 = por %p35, %p36
    %p38 = scmp.ne.s32.totalorder %s27, %s30
    %p39 = scmp.eq.s32.totalorder %s22, 1
    %p40 = por %p38, %p39
    %p41 = scmp.ne.s32.totalorder %s30, %s31
    %p42 = scmp.eq.s32.totalorder %s22, 0
    %p43 = por %p41, %p42
    %p44 = scmp.ne.s32.totalorder %s30, %s31
    %p45 = scmp.eq.s32.totalorder %s23, 1
    %p46 = por %p44, %p45
    %p48 = scmp.ne.s32.totalorder %s31, %s47
    %p49 = scmp.eq.s32.totalorder %s23, 0
    %p50 = por %p48, %p49
    %s52 = sadd.s32 %s51, 1
    %p55 = scmp.eq.s32.totalorder %s17, 1
    %p56 = scmp.ne.s32.totalorder %s51, %s53
    %p57 = scmp.eq.s32.totalorder %s17, 0
    %p58 = por %p56, %p57
    %p59 = scmp.ne.s32.totalorder %s51, %s53
    %p60 = scmp.eq.s32.totalorder %s22, 1
    %p61 = por %p59, %p60
    %p62 = scmp.ne.s32.totalorder %s53, %s54
    %p63 = scmp.eq.s32.totalorder %s22, 0
    %p64 = por %p62, %p63
    %p65 = scmp.ne.s32.totalorder %s53, %s54
    %p66 = scmp.eq.s32.totalorder %s23, 1
    %p67 = por %p65, %p66
    %p69 = scmp.ne.s32.totalorder %s54, %s68
    %p70 = scmp.eq.s32.totalorder %s23, 0
    %p71 = por %p69, %p70
    %s73 = sadd.s32 %s72, 1
    %p76 = scmp.eq.s32.totalorder %s17, 1
    %p77 = scmp.ne.s32.totalorder %s72, %s74
    %p78 = scmp.eq.s32.totalorder %s17, 0
    %p79 = por %p77, %p78
    %p80 = scmp.ne.s32.totalorder %s72, %s74
    %p81 = scmp.eq.s32.totalorder %s22, 1
    %p82 = por %p80, %p81
    %p83 = scmp.ne.s32.totalorder %s74, %s75
    %p84 = scmp.eq.s32.totalorder %s22, 0
    %p85 = por %p83, %p84
    %p86 = scmp.ne.s32.totalorder %s74, %s75
    %p87 = scmp.eq.s32.totalorder %s23, 1
    %p88 = por %p86, %p87
    %p90 = scmp.ne.s32.totalorder %s75, %s89
    %p91 = scmp.eq.s32.totalorder %s23, 0
    %p92 = por %p90, %p91
    %s94 = sadd.s32 %s93, 1
    %p97 = scmp.eq.s32.totalorder %s17, 1
    %p98 = scmp.ne.s32.totalorder %s93, %s95
    %p99 = scmp.eq.s32.totalorder %s17, 0
    %p100 = por %p98, %p99
    %p101 = scmp.ne.s32.totalorder %s93, %s95
    %p102 = scmp.eq.s32.totalorder %s22, 1
    %p103 = por %p101, %p102
    %p104 = scmp.ne.s32.totalorder %s95, %s96
    %p105 = scmp.eq.s32.totalorder %s22, 0
    %p106 = por %p104, %p105
    %p107 = scmp.ne.s32.totalorder %s95, %s96
    %p108 = scmp.eq.s32.totalorder %s23, 1
    %p109 = por %p107, %p108
    %p111 = scmp.ne.s32.totalorder %s96, %s110
    %p112 = scmp.eq.s32.totalorder %s23, 0
    %p113 = por %p111, %p112
    %s115 = sadd.s32 %s114, 1
    %p118 = scmp.eq.s32.totalorder %s17, 1
    %p119 = scmp.ne.s32.totalorder %s114, %s116
    %p120 = scmp.eq.s32.totalorder %s17, 0
    %p121 = por %p119, %p120
    %p122 = scmp.ne.s32.totalorder %s114, %s116
    %p123 = scmp.eq.s32.totalorder %s22, 1
    %p124 = por %p122, %p123
    %p125 = scmp.ne.s32.totalorder %s116, %s117
    %p126 = scmp.eq.s32.totalorder %s22, 0
    %p127 = por %p125, %p126
    %p128 = scmp.ne.s32.totalorder %s116, %s117
    %p129 = scmp.eq.s32.totalorder %s23, 1
    %p130 = por %p128, %p129
    %p132 = scmp.ne.s32.totalorder %s117, %s131
    %p133 = scmp.eq.s32.totalorder %s23, 0
    %p134 = por %p132, %p133
    %s136 = sadd.s32 %s135, 1
    %p139 = scmp.eq.s32.totalorder %s17, 1
    %p140 = scmp.ne.s32.totalorder %s135, %s137
    %p141 = scmp.eq.s32.totalorder %s17, 0
    %p142 = por %p140, %p141
    %p143 = scmp.ne.s32.totalorder %s135, %s137
    %p144 = scmp.eq.s32.totalorder %s22, 1
    %p145 = por %p143, %p144
    %p146 = scmp.ne.s32.totalorder %s137, %s138
    %p147 = scmp.eq.s32.totalorder %s22, 0
    %p148 = por %p146, %p147
    %p149 = scmp.ne.s32.totalorder %s137, %s138
    %p150 = scmp.eq.s32.totalorder %s23, 1
    %p151 = por %p149, %p150
    %p153 = scmp.ne.s32.totalorder %s138, %s152
    %p154 = scmp.eq.s32.totalorder %s23, 0
    %p155 = por %p153, %p154
    %s157 = sadd.s32 %s156, 1
    %p160 = scmp.eq.s32.totalorder %s17, 1
    %p161 = scmp.ne.s32.totalorder %s156, %s158
    %p162 = scmp.eq.s32.totalorder %s17, 0
    %p163 = por %p161, %p162
    %p164 = scmp.ne.s32.totalorder %s156, %s158
    %p165 = scmp.eq.s32.totalorder %s22, 1
    %p166 = por %p164, %p165
    %p167 = scmp.ne.s32.totalorder %s158, %s159
    %p168 = scmp.eq.s32.totalorder %s22, 0
    %p169 = por %p167, %p168
    %p170 = scmp.ne.s32.totalorder %s158, %s159
    %p171 = scmp.eq.s32.totalorder %s23, 1
    %p172 = por %p170, %p171
    %p174 = scmp.ne.s32.totalorder %s159, %s173
    %p175 = scmp.eq.s32.totalorder %s23, 0
    %p176 = por %p174, %p175
    %s178 = sadd.s32 %s177, 1
    %p181 = scmp.eq.s32.totalorder %s17, 1
    %p182 = scmp.ne.s32.totalorder %s177, %s179
    %p183 = scmp.eq.s32.totalorder %s17, 0
    %p184 = por %p182, %p183
    %p185 = scmp.ne.s32.totalorder %s177, %s179
    %p186 = scmp.eq.s32.totalorder %s22, 1
    %p187 = por %p185, %p186
    %p188 = scmp.ne.s32.totalorder %s179, %s180
    %p189 = scmp.eq.s32.totalorder %s22, 0
    %p190 = por %p188, %p189
    %p191 = scmp.ne.s32.totalorder %s179, %s180
    %p192 = scmp.eq.s32.totalorder %s23, 1
    %p193 = por %p191, %p192
    %p195 = scmp.ne.s32.totalorder %s180, %s194
    %p196 = scmp.eq.s32.totalorder %s23, 0
    %p197 = por %p195, %p196
    %s199 = sadd.s32 %s198, 1
    %p202 = scmp.eq.s32.totalorder %s17, 1
    %p203 = scmp.ne.s32.totalorder %s198, %s200
    %p204 = scmp.eq.s32.totalorder %s17, 0
    %p205 = por %p203, %p204
    %p206 = scmp.ne.s32.totalorder %s198, %s200
    %p207 = scmp.eq.s32.totalorder %s22, 1
    %p208 = por %p206, %p207
    %p209 = scmp.ne.s32.totalorder %s200, %s201
    %p210 = scmp.eq.s32.totalorder %s22, 0
    %p211 = por %p209, %p210
    %p212 = scmp.ne.s32.totalorder %s200, %s201
    %p213 = scmp.eq.s32.totalorder %s23, 1
    %p214 = por %p212, %p213
    %p216 = scmp.ne.s32.totalorder %s201, %s215
    %p217 = scmp.eq.s32.totalorder %s23, 0
    %p218 = por %p216, %p217
    %s220 = sadd.s32 %s219, 1
    %p223 = scmp.eq.s32.totalorder %s17, 1
    %p224 = scmp.ne.s32.totalorder %s219, %s221
    %p225 = scmp.eq.s32.totalorder %s17, 0
    %p226 = por %p224, %p225
    %p227 = scmp.ne.s32.totalorder %s219, %s221
    %p228 = scmp.eq.s32.totalorder %s22, 1
    %p229 = por %p227, %p228
    %p230 = scmp.ne.s32.totalorder %s221, %s222
    %p231 = scmp.eq.s32.totalorder %s22, 0
    %p232 = por %p230, %p231
    %p233 = scmp.ne.s32.totalorder %s221, %s222
    %p234 = scmp.eq.s32.totalorder %s23, 1
    %p235 = por %p233, %p234
    %p237 = scmp.ne.s32.totalorder %s222, %s236
    %p238 = scmp.eq.s32.totalorder %s23, 0
    %p239 = por %p237, %p238
    %s241 = sadd.s32 %s240, 1
    %p244 = scmp.eq.s32.totalorder %s17, 1
    %p245 = scmp.ne.s32.totalorder %s240, %s242
    %p246 = scmp.eq.s32.totalorder %s17, 0
    %p247 = por %p245, %p246
    %p248 = scmp.ne.s32.totalorder %s240, %s242
    %p249 = scmp.eq.s32.totalorder %s22, 1
    %p250 = por %p248, %p249
    %p251 = scmp.ne.s32.totalorder %s242, %s243
    %p252 = scmp.eq.s32.totalorder %s22, 0
    %p253 = por %p251, %p252
    %p254 = scmp.ne.s32.totalorder %s242, %s243
    %p255 = scmp.eq.s32.totalorder %s23, 1
    %p256 = por %p254, %p255
    %p258 = scmp.ne.s32.totalorder %s243, %s257
    %p259 = scmp.eq.s32.totalorder %s23, 0
    %p260 = por %p258, %p259
    %s261 = ssub.s32 %s17, %s24
    %p262 = scmp.eq.s32.totalorder %s261, 0
    %s264 = sadd.s32 %s263, 1
    %s265 = scalar_select %p262, %s263, %s264
    %p268 = pneg %p262
    %p269 = scmp.eq.s32.totalorder %s17, 1
    %p270 = por %p268, %p269
    %p271 = scmp.ne.s32.totalorder %s263, %s266
    %p272 = scmp.eq.s32.totalorder %s17, 0
    %p273 = por %p271, %p272
    %p274 = scmp.ne.s32.totalorder %s263, %s266
    %p275 = scmp.eq.s32.totalorder %s22, 1
    %p276 = por %p274, %p275
    %p277 = scmp.ne.s32.totalorder %s266, %s267
    %p278 = scmp.eq.s32.totalorder %s22, 0
    %p279 = por %p277, %p278
    %p280 = scmp.ne.s32.totalorder %s266, %s267
    %p281 = scmp.eq.s32.totalorder %s23, 1
    %p282 = por %p280, %p281
    %p284 = scmp.ne.s32.totalorder %s267, %s283
    %p285 = scmp.eq.s32.totalorder %s23, 0
    %p286 = por %p284, %p285
    %p287 = scmp.le.s32.totalorder 1, %s17
    %p288 = scmp.lt.s32.totalorder %s17, 3
    %p289 = pnand %p287, %p288
    %p290 = pneg %p289
    // Predicated region
    $region9: #{_lambda_.1} parent=5 // pred_check
      _
    $region10: #{_lambda_.1} parent=5 // pred_check_branch
      %292 = sbr.rel (%p289) target = $region12
    $region11: #{_lambda_.1} parent=5 // pred_region
      %s293 = ssub.s32 %s17, 1
      // Predicated region
      $region13: #{_lambda_.1} parent=11 // pred_check
        %p294 = pneg %p64
      $region14: #{_lambda_.1} parent=11 // pred_check_branch
        %296 = sbr.rel (%p294) target = $region16
      $region15: #{_lambda_.1} parent=11 // pred_region
        _
      $region16: #{_lambda_.1} parent=11 // pred_fallthru
        _
      // Predicated region
      $region17: #{_lambda_.1} parent=11 // pred_check
        %p297 = pneg %p85
      $region18: #{_lambda_.1} parent=11 // pred_check_branch
        %299 = sbr.rel (%p297) target = $region20
      $region19: #{_lambda_.1} parent=11 // pred_region
        _
      $region20: #{_lambda_.1} parent=11 // pred_fallthru
        _
      // Predicated region
      $region21: #{_lambda_.1} parent=11 // pred_check
        %p300 = pneg %p106
      $region22: #{_lambda_.1} parent=11 // pred_check_branch
        %302 = sbr.rel (%p300) target = $region24
      $region23: #{_lambda_.1} parent=11 // pred_region
        _
      $region24: #{_lambda_.1} parent=11 // pred_fallthru
        _
      // Predicated region
      $region25: #{_lambda_.1} parent=11 // pred_check
        %p303 = pneg %p127
      $region26: #{_lambda_.1} parent=11 // pred_check_branch
        %305 = sbr.rel (%p303) target = $region28
      $region27: #{_lambda_.1} parent=11 // pred_region
        _
      $region28: #{_lambda_.1} parent=11 // pred_fallthru
        _
      // Predicated region
      $region29: #{_lambda_.1} parent=11 // pred_check
        %p306 = pneg %p148
      $region30: #{_lambda_.1} parent=11 // pred_check_branch
        %308 = sbr.rel (%p306) target = $region32
      $region31: #{_lambda_.1} parent=11 // pred_region
        _
      $region32: #{_lambda_.1} parent=11 // pred_fallthru
        _
      // Predicated region
      $region33: #{_lambda_.1} parent=11 // pred_check
        %p309 = pneg %p169
      $region34: #{_lambda_.1} parent=11 // pred_check_branch
        %311 = sbr.rel (%p309) target = $region36
      $region35: #{_lambda_.1} parent=11 // pred_region
        _
      $region36: #{_lambda_.1} parent=11 // pred_fallthru
        _
      // Predicated region
      $region37: #{_lambda_.1} parent=11 // pred_check
        %p312 = pneg %p190
      $region38: #{_lambda_.1} parent=11 // pred_check_branch
        %314 = sbr.rel (%p312) target = $region40
      $region39: #{_lambda_.1} parent=11 // pred_region
        _
      $region40: #{_lambda_.1} parent=11 // pred_fallthru
        _
      // Predicated region
      $region41: #{_lambda_.1} parent=11 // pred_check
        %p315 = pneg %p211
      $region42: #{_lambda_.1} parent=11 // pred_check_branch
        %317 = sbr.rel (%p315) target = $region44
      $region43: #{_lambda_.1} parent=11 // pred_region
        _
      $region44: #{_lambda_.1} parent=11 // pred_fallthru
        _
      // Predicated region
      $region45: #{_lambda_.1} parent=11 // pred_check
        %p318 = pneg %p232
      $region46: #{_lambda_.1} parent=11 // pred_check_branch
        %320 = sbr.rel (%p318) target = $region48
      $region47: #{_lambda_.1} parent=11 // pred_region
        _
      $region48: #{_lambda_.1} parent=11 // pred_fallthru
        _
      // Predicated region
      $region49: #{_lambda_.1} parent=11 // pred_check
        %p321 = pneg %p253
      $region50: #{_lambda_.1} parent=11 // pred_check_branch
        %323 = sbr.rel (%p321) target = $region52
      $region51: #{_lambda_.1} parent=11 // pred_region
        _
      $region52: #{_lambda_.1} parent=11 // pred_fallthru
        _
    $region12: #{_lambda_.1} parent=5 // pred_fallthru
      _
    %p324 = scmp.lt.s32.totalorder %s17, 2
    // Predicated region
    $region53: #{_lambda_.1} parent=5 // pred_check
      %p325 = pneg %p324
    $region54: #{_lambda_.1} parent=5 // pred_check_branch
      %327 = sbr.rel (%p325) target = $region56
    $region55: #{_lambda_.1} parent=5 // pred_region
      // Predicated region
      $region57: #{_lambda_.1} parent=55 // pred_check
        %p328 = pneg %p37
      $region58: #{_lambda_.1} parent=55 // pred_check_branch
        %330 = sbr.rel (%p328) target = $region60
      $region59: #{_lambda_.1} parent=55 // pred_region
        %s331 = smul.u32 64, %s17
        %p332 = scmp.lt.s32.totalorder %s331, 127
        %s333 = scalar_select %p332, %s331, 127
        %s334 = smul.addr %s333, 4
        %s335 = scalar_lea.vmem %s0, %s334
        %s336 = smul.u32 64, %s17
      $region60: #{_lambda_.1} parent=55 // pred_fallthru
        _
    $region56: #{_lambda_.1} parent=5 // pred_fallthru
      _
    %p337 = scmp.le.s32.totalorder 1, %s17
    %p338 = scmp.lt.s32.totalorder %s17, 3
    %p339 = pnand %p337, %p338
    %p340 = pneg %p339
    // Predicated region
    $region61: #{_lambda_.1} parent=5 // pred_check
      _
    $region62: #{_lambda_.1} parent=5 // pred_check_branch
      %342 = sbr.rel (%p339) target = $region64
    $region63: #{_lambda_.1} parent=5 // pred_region
      %s343 = ssub.s32 %s17, 1
      %s344 = smul.u32 64, %s22
      %p345 = scmp.lt.s32.totalorder %s344, 127
      %s346 = scalar_select %p345, %s344, 127
      %s347 = smul.addr %s346, 4
      %s348 = scalar_lea.vmem %s0, %s347
      %p349 = pneg %p43
      %p350 = pneg %p40
      %p351 = pneg %p64
      %p352 = pneg %p61
      %p353 = pneg %p85
      %p354 = pneg %p82
      %p355 = pneg %p106
      %p356 = pneg %p103
      %p357 = pneg %p127
      %p358 = pneg %p124
      %p359 = pneg %p148
      %p360 = pneg %p145
      %p361 = pneg %p169
      %p362 = pneg %p166
      %p363 = pneg %p190
      %p364 = pneg %p187
      %p365 = pneg %p211
      %p366 = pneg %p208
      %p367 = pneg %p232
      %p368 = pneg %p229
      %p369 = pneg %p253
      %p370 = pneg %p250
      %p371 = pneg %p279
      %p372 = pneg %p276
      %s373 = smul.u32 2, %s22
      %p374 = scmp.lt.s32.totalorder %s373, 3
      %s375 = scalar_select %p374, %s373, 3
      %s376 = smul.addr %s375, 8
      %s377 = scalar_lea.vmem %s11, %s376
      %s378 = smul.u32 64, %s22
      %p379 = scmp.lt.s32.totalorder %s378, 127
      %s380 = scalar_select %p379, %s378, 127
      %s381 = smul.addr %s380, 4
      %s382 = scalar_lea.vmem %s0, %s381
      %s383 = smul.u32 64, %s22
      %s384 = smul.u32 2, %s22
      %p385 = scmp.lt.s32.totalorder %s384, 3
      %s386 = scalar_select %p385, %s384, 3
      %s387 = smul.addr %s386, 8
      %s388 = scalar_lea.vmem %s11, %s387
      %s389 = smul.u32 2, %s22
      %v391 = vld [vmem:[%s382] sm:$0xf]
      %v392 = vld [vmem:[%s382 + $0x4] sm:$0xf]
      %v393 = vld [vmem:[%s382 + $0x8] sm:$0xf]
      %v394 = vld [vmem:[%s382 + $0xc] sm:$0xf]
      %v395 = vld [vmem:[%s382 + $0x10] sm:$0xf]
      %v396 = vld [vmem:[%s382 + $0x14] sm:$0xf]
      %v397 = vld [vmem:[%s382 + $0x18] sm:$0xf]
      %v398 = vld [vmem:[%s382 + $0x1c] sm:$0xf]
      %v399 = vld [vmem:[%s382 + $0x20] sm:$0xf]
      %v400 = vld [vmem:[%s382 + $0x24] sm:$0xf]
      %v401 = vld [vmem:[%s382 + $0x28] sm:$0xf]
      %v402 = vld [vmem:[%s382 + $0x2c] sm:$0xf]
      %v403 = vld [vmem:[%s382 + $0x30] sm:$0xf]
      %v404 = vld [vmem:[%s382 + $0x34] sm:$0xf]
      %v405 = vld [vmem:[%s382 + $0x38] sm:$0xf]
      %v406 = vld [vmem:[%s382 + $0x3c] sm:$0xf]
      %v407 = vld [vmem:[%s382 + $0x40] sm:$0xf]
      %v408 = vld [vmem:[%s382 + $0x44] sm:$0xf]
      %v409 = vld [vmem:[%s382 + $0x48] sm:$0xf]
      %v410 = vld [vmem:[%s382 + $0x4c] sm:$0xf]
      %v411 = vld [vmem:[%s382 + $0x50] sm:$0xf]
      %v412 = vld [vmem:[%s382 + $0x54] sm:$0xf]
      %v413 = vld [vmem:[%s382 + $0x58] sm:$0xf]
      %v414 = vld [vmem:[%s382 + $0x5c] sm:$0xf]
      %v415 = vld [vmem:[%s382 + $0x60] sm:$0xf]
      %v416 = vld [vmem:[%s382 + $0x64] sm:$0xf]
      %v417 = vld [vmem:[%s382 + $0x68] sm:$0xf]
      %v418 = vld [vmem:[%s382 + $0x6c] sm:$0xf]
      %v419 = vld [vmem:[%s382 + $0x70] sm:$0xf]
      %v420 = vld [vmem:[%s382 + $0x74] sm:$0xf]
      %v421 = vld [vmem:[%s382 + $0x78] sm:$0xf]
      %v422 = vld [vmem:[%s382 + $0x7c] sm:$0xf]
      %v423 = vld [vmem:[%s382 + $0x80] sm:$0xf]
      %v424 = vld [vmem:[%s382 + $0x84] sm:$0xf]
      %v425 = vld [vmem:[%s382 + $0x88] sm:$0xf]
      %v426 = vld [vmem:[%s382 + $0x8c] sm:$0xf]
      %v427 = vld [vmem:[%s382 + $0x90] sm:$0xf]
      %v428 = vld [vmem:[%s382 + $0x94] sm:$0xf]
      %v429 = vld [vmem:[%s382 + $0x98] sm:$0xf]
      %v430 = vld [vmem:[%s382 + $0x9c] sm:$0xf]
      %v431 = vld [vmem:[%s382 + $0xa0] sm:$0xf]
      %v432 = vld [vmem:[%s382 + $0xa4] sm:$0xf]
      %v433 = vld [vmem:[%s382 + $0xa8] sm:$0xf]
      %v434 = vld [vmem:[%s382 + $0xac] sm:$0xf]
      %v435 = vld [vmem:[%s382 + $0xb0] sm:$0xf]
      %v436 = vld [vmem:[%s382 + $0xb4] sm:$0xf]
      %v437 = vld [vmem:[%s382 + $0xb8] sm:$0xf]
      %v438 = vld [vmem:[%s382 + $0xbc] sm:$0xf]
      %v439 = vld [vmem:[%s382 + $0xc0] sm:$0xf]
      %v440 = vld [vmem:[%s382 + $0xc4] sm:$0xf]
      %v441 = vld [vmem:[%s382 + $0xc8] sm:$0xf]
      %v442 = vld [vmem:[%s382 + $0xcc] sm:$0xf]
      %v443 = vld [vmem:[%s382 + $0xd0] sm:$0xf]
      %v444 = vld [vmem:[%s382 + $0xd4] sm:$0xf]
      %v445 = vld [vmem:[%s382 + $0xd8] sm:$0xf]
      %v446 = vld [vmem:[%s382 + $0xdc] sm:$0xf]
      %v447 = vld [vmem:[%s382 + $0xe0] sm:$0xf]
      %v448 = vld [vmem:[%s382 + $0xe4] sm:$0xf]
      %v449 = vld [vmem:[%s382 + $0xe8] sm:$0xf]
      %v450 = vld [vmem:[%s382 + $0xec] sm:$0xf]
      %v451 = vld [vmem:[%s382 + $0xf0] sm:$0xf]
      %v452 = vld [vmem:[%s382 + $0xf4] sm:$0xf]
      %v453 = vld [vmem:[%s382 + $0xf8] sm:$0xf]
      %v454 = vld [vmem:[%s382 + $0xfc] sm:$0xf]
      %v457 = vunpack.c.l.b16 %v391
      %v458 = vunpack.c.l.b16 %v392
      %v459 = vpack.c.b16 %v458, %v457
      %v462 = vunpack.c.l.b16 %v395
      %v463 = vunpack.c.l.b16 %v396
      %v464 = vpack.c.b16 %v463, %v462
      %v467 = vunpack.c.l.b16 %v399
      %v468 = vunpack.c.l.b16 %v400
      %v469 = vpack.c.b16 %v468, %v467
      %v472 = vunpack.c.l.b16 %v403
      %v473 = vunpack.c.l.b16 %v404
      %v474 = vpack.c.b16 %v473, %v472
      %v477 = vunpack.c.l.b16 %v407
      %v478 = vunpack.c.l.b16 %v408
      %v479 = vpack.c.b16 %v478, %v477
      %v482 = vunpack.c.l.b16 %v411
      %v483 = vunpack.c.l.b16 %v412
      %v484 = vpack.c.b16 %v483, %v482
      %v487 = vunpack.c.l.b16 %v415
      %v488 = vunpack.c.l.b16 %v416
      %v489 = vpack.c.b16 %v488, %v487
      %v492 = vunpack.c.l.b16 %v419
      %v493 = vunpack.c.l.b16 %v420
      %v494 = vpack.c.b16 %v493, %v492
      %v497 = vunpack.c.l.b16 %v423
      %v498 = vunpack.c.l.b16 %v424
      %v499 = vpack.c.b16 %v498, %v497
      %v502 = vunpack.c.l.b16 %v427
      %v503 = vunpack.c.l.b16 %v428
      %v504 = vpack.c.b16 %v503, %v502
      %v507 = vunpack.c.l.b16 %v431
      %v508 = vunpack.c.l.b16 %v432
      %v509 = vpack.c.b16 %v508, %v507
      %v512 = vunpack.c.l.b16 %v435
      %v513 = vunpack.c.l.b16 %v436
      %v514 = vpack.c.b16 %v513, %v512
      %v517 = vunpack.c.l.b16 %v439
      %v518 = vunpack.c.l.b16 %v440
      %v519 = vpack.c.b16 %v518, %v517
      %v522 = vunpack.c.l.b16 %v443
      %v523 = vunpack.c.l.b16 %v444
      %v524 = vpack.c.b16 %v523, %v522
      %v527 = vunpack.c.l.b16 %v393
      %v528 = vunpack.c.l.b16 %v394
      %v529 = vpack.c.b16 %v528, %v527
      %v532 = vunpack.c.l.b16 %v397
      %v533 = vunpack.c.l.b16 %v398
      %v534 = vpack.c.b16 %v533, %v532
      %v537 = vunpack.c.l.b16 %v401
      %v538 = vunpack.c.l.b16 %v402
      %v539 = vpack.c.b16 %v538, %v537
      %v542 = vunpack.c.l.b16 %v405
      %v543 = vunpack.c.l.b16 %v406
      %v544 = vpack.c.b16 %v543, %v542
      %v547 = vunpack.c.l.b16 %v409
      %v548 = vunpack.c.l.b16 %v410
      %v549 = vpack.c.b16 %v548, %v547
      %v552 = vunpack.c.l.b16 %v413
      %v553 = vunpack.c.l.b16 %v414
      %v554 = vpack.c.b16 %v553, %v552
      %v557 = vunpack.c.l.b16 %v417
      %v558 = vunpack.c.l.b16 %v418
      %v559 = vpack.c.b16 %v558, %v557
      %v562 = vunpack.c.l.b16 %v421
      %v563 = vunpack.c.l.b16 %v422
      %v564 = vpack.c.b16 %v563, %v562
      %v567 = vunpack.c.l.b16 %v425
      %v568 = vunpack.c.l.b16 %v426
      %v569 = vpack.c.b16 %v568, %v567
      %v572 = vunpack.c.l.b16 %v429
      %v573 = vunpack.c.l.b16 %v430
      %v574 = vpack.c.b16 %v573, %v572
      %v577 = vunpack.c.l.b16 %v433
      %v578 = vunpack.c.l.b16 %v434
      %v579 = vpack.c.b16 %v578, %v577
      %v582 = vunpack.c.l.b16 %v437
      %v583 = vunpack.c.l.b16 %v438
      %v584 = vpack.c.b16 %v583, %v582
      %v587 = vunpack.c.l.b16 %v441
      %v588 = vunpack.c.l.b16 %v442
      %v589 = vpack.c.b16 %v588, %v587
      %v592 = vunpack.c.l.b16 %v445
      %v593 = vunpack.c.l.b16 %v446
      %v594 = vpack.c.b16 %v593, %v592
      %v597 = vunpack.c.l.b16 %v447
      %v598 = vunpack.c.l.b16 %v448
      %v599 = vpack.c.b16 %v598, %v597
      %v602 = vunpack.c.l.b16 %v449
      %v603 = vunpack.c.l.b16 %v450
      %v604 = vpack.c.b16 %v603, %v602
      %v607 = vunpack.c.l.b16 %v451
      %v608 = vunpack.c.l.b16 %v452
      %v609 = vpack.c.b16 %v608, %v607
      %v612 = vunpack.c.l.b16 %v453
      %v613 = vunpack.c.l.b16 %v454
      %v614 = vpack.c.b16 %v613, %v612
      %v615 = vld [vmem:[%s1] sm:$0xff]
      %v616 = vld [vmem:[%s1 + $0x8] sm:$0xff]
      %v617 = vld [vmem:[%s1 + $0x10] sm:$0xff]
      %v618 = vld [vmem:[%s1 + $0x18] sm:$0xff]
      %v619 = vld [vmem:[%s1 + $0x20] sm:$0xff]
      %v620 = vld [vmem:[%s1 + $0x28] sm:$0xff]
      %v621 = vld [vmem:[%s1 + $0x30] sm:$0xff]
      %v622 = vld [vmem:[%s1 + $0x38] sm:$0xff]
      %v623 = vld [vmem:[%s1 + $0x40] sm:$0xff]
      %v624 = vld [vmem:[%s1 + $0x48] sm:$0xff]
      %v625 = vld [vmem:[%s1 + $0x50] sm:$0xff]
      %v626 = vld [vmem:[%s1 + $0x58] sm:$0xff]
      %s627 = scalar_lea.vmem %s1, 96
      %v628 = vld [vmem:[%s627] sm:$0xff]
      %v629 = vld [vmem:[%s627 + $0x8] sm:$0xff]
      %v630 = vld [vmem:[%s627 + $0x10] sm:$0xff]
      %v631 = vld [vmem:[%s627 + $0x18] sm:$0xff]
      %v632 = vld [vmem:[%s627 + $0x20] sm:$0xff]
      %v633 = vld [vmem:[%s627 + $0x28] sm:$0xff]
      %v634 = vld [vmem:[%s627 + $0x30] sm:$0xff]
      %v635 = vld [vmem:[%s627 + $0x38] sm:$0xff]
      %v636 = vld [vmem:[%s627 + $0x40] sm:$0xff]
      %v637 = vld [vmem:[%s627 + $0x48] sm:$0xff]
      %v638 = vld [vmem:[%s627 + $0x50] sm:$0xff]
      %v639 = vld [vmem:[%s627 + $0x58] sm:$0xff]
      %v652 = vunpack.c.l.b16 %v628
      %v653 = vunpack.c.h.b16 %v628
      %v654 = vunpack.c.l.b16 %v629
      %v655 = vunpack.c.h.b16 %v629
      %v656 = vunpack.c.l.b16 %v630
      %v657 = vunpack.c.h.b16 %v630
      %v658 = vunpack.c.l.b16 %v631
      %v659 = vunpack.c.h.b16 %v631
      %v660 = vunpack.c.l.b16 %v632
      %v661 = vunpack.c.h.b16 %v632
      %v662 = vunpack.c.l.b16 %v633
      %v663 = vunpack.c.h.b16 %v633
      %v664 = vunpack.c.l.b16 %v634
      %v665 = vunpack.c.h.b16 %v634
      %v666 = vunpack.c.l.b16 %v635
      %v667 = vunpack.c.h.b16 %v635
      %v668 = vunpack.c.l.b16 %v636
      %v669 = vunpack.c.h.b16 %v636
      %v670 = vunpack.c.l.b16 %v637
      %v671 = vunpack.c.h.b16 %v637
      %v672 = vunpack.c.l.b16 %v638
      %v673 = vunpack.c.h.b16 %v638
      %v674 = vunpack.c.l.b16 %v639
      %v675 = vunpack.c.h.b16 %v639
      %v676 = vpack.c.b16 %v654, %v652
      %v677 = vpack.c.b16 %v655, %v653
      %v678 = vpack.c.b16 %v658, %v656
      %v679 = vpack.c.b16 %v659, %v657
      %v680 = vpack.c.b16 %v662, %v660
      %v681 = vpack.c.b16 %v663, %v661
      %v682 = vpack.c.b16 %v666, %v664
      %v683 = vpack.c.b16 %v667, %v665
      %v684 = vpack.c.b16 %v670, %v668
      %v685 = vpack.c.b16 %v671, %v669
      %v686 = vpack.c.b16 %v674, %v672
      %v687 = vpack.c.b16 %v675, %v673
      %vm700 = vcmask 785408
      %v702 = vsel %vm700, %v529, 0
      %v705 = vsel %vm700, %v534, 0
      %v708 = vsel %vm700, %v539, 0
      %v711 = vsel %vm700, %v544, 0
      %v714 = vsel %vm700, %v549, 0
      %v717 = vsel %vm700, %v554, 0
      %v720 = vsel %vm700, %v559, 0
      %v723 = vsel %vm700, %v564, 0
      %v726 = vsel %vm700, %v569, 0
      %v729 = vsel %vm700, %v574, 0
      %v732 = vsel %vm700, %v579, 0
      %v735 = vsel %vm700, %v584, 0
      %v738 = vsel %vm700, %v589, 0
      %v741 = vsel %vm700, %v594, 0
      %743 = vmatprep.subr.bf16.mxu0 %v677
      %744 = vmatpush1.bf16.msra.mxu0 %v676
      %745 = vmatprep.subr.bf16.mxu0 %v679
      %746 = vmatpush1.bf16.msra.mxu0 %v678
      %747 = vmatprep.subr.bf16.mxu0 %v681
      %748 = vmatpush1.bf16.msra.mxu0 %v680
      %749 = vmatprep.subr.bf16.mxu0 %v683
      %750 = vmatpush1.bf16.msra.mxu0 %v682
      %751 = vmatprep.subr.bf16.mxu0 %v685
      %752 = vmatpush1.bf16.msra.mxu0 %v684
      %753 = vmatprep.subr.bf16.mxu0 %v687
      %754 = vmatpush1.bf16.msra.mxu0 %v686
      %755 = vmatprep.subr.bf16.mxu0 0
      %756 = vmatpush1.bf16.msra.mxu0 0
      %757 = vmatprep.subr.bf16.mxu0 0
      %758 = vmatpush1.bf16.msra.mxu0 0
      %759 = vmatprep.subr.bf16.mxu0 0
      %760 = vmatpush1.bf16.msra.mxu0 0
      %761 = vmatprep.subr.bf16.mxu0 0
      %762 = vmatpush1.bf16.msra.mxu0 0
      %763 = vmatprep.subr.bf16.mxu0 0
      %764 = vmatpush1.bf16.msra.mxu0 0
      %765 = vmatprep.subr.bf16.mxu0 0
      %766 = vmatpush1.bf16.msra.mxu0 0
      %767 = vmatprep.subr.bf16.mxu0 0
      %768 = vmatpush1.bf16.msra.mxu0 0
      %769 = vmatprep.subr.bf16.mxu0 0
      %770 = vmatpush1.bf16.msra.mxu0 0
      %771 = vmatprep.subr.bf16.mxu0 0
      %772 = vmatpush1.bf16.msra.mxu0 0
      %773 = vmatprep.subr.bf16.mxu0 0
      %774 = vmatpush1.bf16.msra.mxu0 0
      %775 = vmatprep.mubr.bf16.mxu0 0
      %776 = vmatmul.mubr.bf16.gmra.mrb[0].mxu0 %v702
      %v777 = vpop.f32.mrb[0].mxu0
      %v778 = vadd.f32 0.0, %v777
      %v779 = vpop.f32.mrb[0].mxu0
      %v780 = vadd.f32 0.0, %v779
      %v781 = vpop.f32.mrb[0].mxu0
      %v782 = vadd.f32 0.0, %v781
      %v783 = vpop.f32.mrb[0].mxu0
      %v784 = vadd.f32 0.0, %v783
      %785 = vmatprep.mubr.bf16.mxu0 0
      %786 = vmatmul.mubr.bf16.gmra.mrb[0].mxu0 %v705
      %v787 = vpop.f32.mrb[0].mxu0
      %v788 = vadd.f32 0.0, %v787
      %v789 = vpop.f32.mrb[0].mxu0
      %v790 = vadd.f32 0.0, %v789
      %v791 = vpop.f32.mrb[0].mxu0
      %v792 = vadd.f32 0.0, %v791
      %v793 = vpop.f32.mrb[0].mxu0
      %v794 = vadd.f32 0.0, %v793
      %795 = vmatprep.mubr.bf16.mxu0 0
      %796 = vmatmul.mubr.bf16.gmra.mrb[0].mxu0 %v708
      %v797 = vpop.f32.mrb[0].mxu0
      %v798 = vadd.f32 0.0, %v797
      %v799 = vpop.f32.mrb[0].mxu0
      %v800 = vadd.f32 0.0, %v799
      %v801 = vpop.f32.mrb[0].mxu0
      %v802 = vadd.f32 0.0, %v801
      %v803 = vpop.f32.mrb[0].mxu0
      %v804 = vadd.f32 0.0, %v803
      %805 = vmatprep.mubr.bf16.mxu0 0
      %806 = vmatmul.mubr.bf16.gmra.mrb[0].mxu0 %v711
      %v807 = vpop.f32.mrb[0].mxu0
      %v808 = vadd.f32 0.0, %v807
      %v809 = vpop.f32.mrb[0].mxu0
      %v810 = vadd.f32 0.0, %v809
      %v811 = vpop.f32.mrb[0].mxu0
      %v812 = vadd.f32 0.0, %v811
      %v813 = vpop.f32.mrb[0].mxu0
      %v814 = vadd.f32 0.0, %v813
      %815 = vmatprep.mubr.bf16.mxu0 0
      %816 = vmatmul.mubr.bf16.gmra.mrb[0].mxu0 %v714
      %v817 = vpop.f32.mrb[0].mxu0
      %v818 = vadd.f32 0.0, %v817
      %v819 = vpop.f32.mrb[0].mxu0
      %v820 = vadd.f32 0.0, %v819
      %v821 = vpop.f32.mrb[0].mxu0
      %v822 = vadd.f32 0.0, %v821
      %v823 = vpop.f32.mrb[0].mxu0
      %v824 = vadd.f32 0.0, %v823
      %825 = vmatprep.mubr.bf16.mxu0 0
      %826 = vmatmul.mubr.bf16.gmra.mrb[0].mxu0 %v717
      %v827 = vpop.f32.mrb[0].mxu0
      %v828 = vadd.f32 0.0, %v827
      %v829 = vpop.f32.mrb[0].mxu0
      %v830 = vadd.f32 0.0, %v829
      %v831 = vpop.f32.mrb[0].mxu0
      %v832 = vadd.f32 0.0, %v831
      %v833 = vpop.f32.mrb[0].mxu0
      %v834 = vadd.f32 0.0, %v833
      %835 = vmatprep.mubr.bf16.mxu0 0
      %836 = vmatmul.mubr.bf16.gmra.mrb[0].mxu0 %v720
      %v837 = vpop.f32.mrb[0].mxu0
      %v838 = vadd.f32 0.0, %v837
      %v839 = vpop.f32.mrb[0].mxu0
      %v840 = vadd.f32 0.0, %v839
      %v841 = vpop.f32.mrb[0].mxu0
      %v842 = vadd.f32 0.0, %v841
      %v843 = vpop.f32.mrb[0].mxu0
      %v844 = vadd.f32 0.0, %v843
      %845 = vmatprep.mubr.bf16.mxu0 0
      %846 = vmatmul.mubr.bf16.gmra.mrb[0].mxu0 %v723
      %v847 = vpop.f32.mrb[0].mxu0
      %v848 = vadd.f32 0.0, %v847
      %v849 = vpop.f32.mrb[0].mxu0
      %v850 = vadd.f32 0.0, %v849
      %v851 = vpop.f32.mrb[0].mxu0
      %v852 = vadd.f32 0.0, %v851
      %v853 = vpop.f32.mrb[0].mxu0
      %v854 = vadd.f32 0.0, %v853
      %855 = vmatprep.mubr.bf16.mxu0 0
      %856 = vmatmul.mubr.bf16.gmra.mrb[0].mxu0 %v726
      %v857 = vpop.f32.mrb[0].mxu0
      %v858 = vadd.f32 0.0, %v857
      %v859 = vpop.f32.mrb[0].mxu0
      %v860 = vadd.f32 0.0, %v859
      %v861 = vpop.f32.mrb[0].mxu0
      %v862 = vadd.f32 0.0, %v861
      %v863 = vpop.f32.mrb[0].mxu0
      %v864 = vadd.f32 0.0, %v863
      %865 = vmatprep.mubr.bf16.mxu0 0
      %866 = vmatmul.mubr.bf16.gmra.mrb[0].mxu0 %v729
      %v867 = vpop.f32.mrb[0].mxu0
      %v868 = vadd.f32 0.0, %v867
      %v869 = vpop.f32.mrb[0].mxu0
      %v870 = vadd.f32 0.0, %v869
      %v871 = vpop.f32.mrb[0].mxu0
      %v872 = vadd.f32 0.0, %v871
      %v873 = vpop.f32.mrb[0].mxu0
      %v874 = vadd.f32 0.0, %v873
      %875 = vmatprep.mubr.bf16.mxu0 0
      %876 = vmatmul.mubr.bf16.gmra.mrb[0].mxu0 %v732
      %v877 = vpop.f32.mrb[0].mxu0
      %v878 = vadd.f32 0.0, %v877
      %v879 = vpop.f32.mrb[0].mxu0
      %v880 = vadd.f32 0.0, %v879
      %v881 = vpop.f32.mrb[0].mxu0
      %v882 = vadd.f32 0.0, %v881
      %v883 = vpop.f32.mrb[0].mxu0
      %v884 = vadd.f32 0.0, %v883
      %885 = vmatprep.mubr.bf16.mxu0 0
      %886 = vmatmul.mubr.bf16.gmra.mrb[0].mxu0 %v735
      %v887 = vpop.f32.mrb[0].mxu0
      %v888 = vadd.f32 0.0, %v887
      %v889 = vpop.f32.mrb[0].mxu0
      %v890 = vadd.f32 0.0, %v889
      %v891 = vpop.f32.mrb[0].mxu0
      %v892 = vadd.f32 0.0, %v891
      %v893 = vpop.f32.mrb[0].mxu0
      %v894 = vadd.f32 0.0, %v893
      %895 = vmatprep.mubr.bf16.mxu0 0
      %896 = vmatmul.mubr.bf16.gmra.mrb[0].mxu0 %v738
      %v897 = vpop.f32.mrb[0].mxu0
      %v898 = vadd.f32 0.0, %v897
      %v899 = vpop.f32.mrb[0].mxu0
      %v900 = vadd.f32 0.0, %v899
      %v901 = vpop.f32.mrb[0].mxu0
      %v902 = vadd.f32 0.0, %v901
      %v903 = vpop.f32.mrb[0].mxu0
      %v904 = vadd.f32 0.0, %v903
      %905 = vmatprep.mubr.bf16.mxu0 0
      %906 = vmatmul.mubr.bf16.gmra.mrb[0].mxu0 %v741
      %v907 = vpop.f32.mrb[0].mxu0
      %v908 = vadd.f32 0.0, %v907
      %v909 = vpop.f32.mrb[0].mxu0
      %v910 = vadd.f32 0.0, %v909
      %v911 = vpop.f32.mrb[0].mxu0
      %v912 = vadd.f32 0.0, %v911
      %v913 = vpop.f32.mrb[0].mxu0
      %v914 = vadd.f32 0.0, %v913
      %915 = vdwg.mxu0
      %v928 = vunpack.c.l.b16 %v615
      %v929 = vunpack.c.h.b16 %v615
      %v930 = vunpack.c.l.b16 %v616
      %v931 = vunpack.c.h.b16 %v616
      %v932 = vunpack.c.l.b16 %v617
      %v933 = vunpack.c.h.b16 %v617
      %v934 = vunpack.c.l.b16 %v618
      %v935 = vunpack.c.h.b16 %v618
      %v936 = vunpack.c.l.b16 %v619
      %v937 = vunpack.c.h.b16 %v619
      %v938 = vunpack.c.l.b16 %v620
      %v939 = vunpack.c.h.b16 %v620
      %v940 = vunpack.c.l.b16 %v621
      %v941 = vunpack.c.h.b16 %v621
      %v942 = vunpack.c.l.b16 %v622
      %v943 = vunpack.c.h.b16 %v622
      %v944 = vunpack.c.l.b16 %v623
      %v945 = vunpack.c.h.b16 %v623
      %v946 = vunpack.c.l.b16 %v624
      %v947 = vunpack.c.h.b16 %v624
      %v948 = vunpack.c.l.b16 %v625
      %v949 = vunpack.c.h.b16 %v625
      %v950 = vunpack.c.l.b16 %v626
      %v951 = vunpack.c.h.b16 %v626
      %v952 = vpack.c.b16 %v930, %v928
      %v953 = vpack.c.b16 %v931, %v929
      %v954 = vpack.c.b16 %v934, %v932
      %v955 = vpack.c.b16 %v935, %v933
      %v956 = vpack.c.b16 %v938, %v936
      %v957 = vpack.c.b16 %v939, %v937
      %v958 = vpack.c.b16 %v942, %v940
      %v959 = vpack.c.b16 %v943, %v941
      %v960 = vpack.c.b16 %v946, %v944
      %v961 = vpack.c.b16 %v947, %v945
      %v962 = vpack.c.b16 %v950, %v948
      %v963 = vpack.c.b16 %v951, %v949
      %v977 = vsel %vm700, %v459, 0
      %v980 = vsel %vm700, %v464, 0
      %v983 = vsel %vm700, %v469, 0
      %v986 = vsel %vm700, %v474, 0
      %v989 = vsel %vm700, %v479, 0
      %v992 = vsel %vm700, %v484, 0
      %v995 = vsel %vm700, %v489, 0
      %v998 = vsel %vm700, %v494, 0
      %v1001 = vsel %vm700, %v499, 0
      %v1004 = vsel %vm700, %v504, 0
      %v1007 = vsel %vm700, %v509, 0
      %v1010 = vsel %vm700, %v514, 0
      %v1013 = vsel %vm700, %v519, 0
      %v1016 = vsel %vm700, %v524, 0
      %1018 = vmatprep.subr.bf16.mxu0 %v953
      %1019 = vmatpush1.bf16.msra.mxu0 %v952
      %1020 = vmatprep.subr.bf16.mxu0 %v955
      %1021 = vmatpush1.bf16.msra.mxu0 %v954
      %1022 = vmatprep.subr.bf16.mxu0 %v957
      %1023 = vmatpush1.bf16.msra.mxu0 %v956
      %1024 = vmatprep.subr.bf16.mxu0 %v959
      %1025 = vmatpush1.bf16.msra.mxu0 %v958
      %1026 = vmatprep.subr.bf16.mxu0 %v961
      %1027 = vmatpush1.bf16.msra.mxu0 %v960
      %1028 = vmatprep.subr.bf16.mxu0 %v963
      %1029 = vmatpush1.bf16.msra.mxu0 %v962
      %1030 = vmatprep.subr.bf16.mxu0 0
      %1031 = vmatpush1.bf16.msra.mxu0 0
      %1032 = vmatprep.subr.bf16.mxu0 0
      %1033 = vmatpush1.bf16.msra.mxu0 0
      %1034 = vmatprep.subr.bf16.mxu0 0
      %1035 = vmatpush1.bf16.msra.mxu0 0
      %1036 = vmatprep.subr.bf16.mxu0 0
      %1037 = vmatpush1.bf16.msra.mxu0 0
      %1038 = vmatprep.subr.bf16.mxu0 0
      %1039 = vmatpush1.bf16.msra.mxu0 0
      %1040 = vmatprep.subr.bf16.mxu0 0
      %1041 = vmatpush1.bf16.msra.mxu0 0
      %1042 = vmatprep.subr.bf16.mxu0 0
      %1043 = vmatpush1.bf16.msra.mxu0 0
      %1044 = vmatprep.subr.bf16.mxu0 0
      %1045 = vmatpush1.bf16.msra.mxu0 0
      %1046 = vmatprep.subr.bf16.mxu0 0
      %1047 = vmatpush1.bf16.msra.mxu0 0
      %1048 = vmatprep.subr.bf16.mxu0 0
      %1049 = vmatpush1.bf16.msra.mxu0 0
      %1050 = vmatprep.mubr.bf16.mxu0 0
      %1051 = vmatmul.mubr.bf16.gmra.mrb[0].mxu0 %v977
      %v1052 = vpop.f32.mrb[0].mxu0
      %v1053 = vadd.f32 %v778, %v1052
      %v1054 = vpop.f32.mrb[0].mxu0
      %v1055 = vadd.f32 %v780, %v1054
      %v1056 = vpop.f32.mrb[0].mxu0
      %v1057 = vadd.f32 %v782, %v1056
      %v1058 = vpop.f32.mrb[0].mxu0
      %v1059 = vadd.f32 %v784, %v1058
      %1060 = vmatprep.mubr.bf16.mxu0 0
      %1061 = vmatmul.mubr.bf16.gmra.mrb[0].mxu0 %v980
      %v1062 = vpop.f32.mrb[0].mxu0
      %v1063 = vadd.f32 %v788, %v1062
      %v1064 = vpop.f32.mrb[0].mxu0
      %v1065 = vadd.f32 %v790, %v1064
      %v1066 = vpop.f32.mrb[0].mxu0
      %v1067 = vadd.f32 %v792, %v1066
      %v1068 = vpop.f32.mrb[0].mxu0
      %v1069 = vadd.f32 %v794, %v1068
      %1070 = vmatprep.mubr.bf16.mxu0 0
      %1071 = vmatmul.mubr.bf16.gmra.mrb[0].mxu0 %v983
      %v1072 = vpop.f32.mrb[0].mxu0
      %v1073 = vadd.f32 %v798, %v1072
      %v1074 = vpop.f32.mrb[0].mxu0
      %v1075 = vadd.f32 %v800, %v1074
      %v1076 = vpop.f32.mrb[0].mxu0
      %v1077 = vadd.f32 %v802, %v1076
      %v1078 = vpop.f32.mrb[0].mxu0
      %v1079 = vadd.f32 %v804, %v1078
      %1080 = vmatprep.mubr.bf16.mxu0 0
      %1081 = vmatmul.mubr.bf16.gmra.mrb[0].mxu0 %v986
      %v1082 = vpop.f32.mrb[0].mxu0
      %v1083 = vadd.f32 %v808, %v1082
      %v1084 = vpop.f32.mrb[0].mxu0
      %v1085 = vadd.f32 %v810, %v1084
      %v1086 = vpop.f32.mrb[0].mxu0
      %v1087 = vadd.f32 %v812, %v1086
      %v1088 = vpop.f32.mrb[0].mxu0
      %v1089 = vadd.f32 %v814, %v1088
      %1090 = vmatprep.mubr.bf16.mxu0 0
      %1091 = vmatmul.mubr.bf16.gmra.mrb[0].mxu0 %v989
      %v1092 = vpop.f32.mrb[0].mxu0
      %v1093 = vadd.f32 %v818, %v1092
      %v1094 = vpop.f32.mrb[0].mxu0
      %v1095 = vadd.f32 %v820, %v1094
      %v1096 = vpop.f32.mrb[0].mxu0
      %v1097 = vadd.f32 %v822, %v1096
      %v1098 = vpop.f32.mrb[0].mxu0
      %v1099 = vadd.f32 %v824, %v1098
      %1100 = vmatprep.mubr.bf16.mxu0 0
      %1101 = vmatmul.mubr.bf16.gmra.mrb[0].mxu0 %v992
      %v1102 = vpop.f32.mrb[0].mxu0
      %v1103 = vadd.f32 %v828, %v1102
      %v1104 = vpop.f32.mrb[0].mxu0
      %v1105 = vadd.f32 %v830, %v1104
      %v1106 = vpop.f32.mrb[0].mxu0
      %v1107 = vadd.f32 %v832, %v1106
      %v1108 = vpop.f32.mrb[0].mxu0
      %v1109 = vadd.f32 %v834, %v1108
      %1110 = vmatprep.mubr.bf16.mxu0 0
      %1111 = vmatmul.mubr.bf16.gmra.mrb[0].mxu0 %v995
      %v1112 = vpop.f32.mrb[0].mxu0
      %v1113 = vadd.f32 %v838, %v1112
      %v1114 = vpop.f32.mrb[0].mxu0
      %v1115 = vadd.f32 %v840, %v1114
      %v1116 = vpop.f32.mrb[0].mxu0
      %v1117 = vadd.f32 %v842, %v1116
      %v1118 = vpop.f32.mrb[0].mxu0
      %v1119 = vadd.f32 %v844, %v1118
      %1120 = vmatprep.mubr.bf16.mxu0 0
      %1121 = vmatmul.mubr.bf16.gmra.mrb[0].mxu0 %v998
      %v1122 = vpop.f32.mrb[0].mxu0
      %v1123 = vadd.f32 %v848, %v1122
      %v1124 = vpop.f32.mrb[0].mxu0
      %v1125 = vadd.f32 %v850, %v1124
      %v1126 = vpop.f32.mrb[0].mxu0
      %v1127 = vadd.f32 %v852, %v1126
      %v1128 = vpop.f32.mrb[0].mxu0
      %v1129 = vadd.f32 %v854, %v1128
      %1130 = vmatprep.mubr.bf16.mxu0 0
      %1131 = vmatmul.mubr.bf16.gmra.mrb[0].mxu0 %v1001
      %v1132 = vpop.f32.mrb[0].mxu0
      %v1133 = vadd.f32 %v858, %v1132
      %v1134 = vpop.f32.mrb[0].mxu0
      %v1135 = vadd.f32 %v860, %v1134
      %v1136 = vpop.f32.mrb[0].mxu0
      %v1137 = vadd.f32 %v862, %v1136
      %v1138 = vpop.f32.mrb[0].mxu0
      %v1139 = vadd.f32 %v864, %v1138
      %1140 = vmatprep.mubr.bf16.mxu0 0
      %1141 = vmatmul.mubr.bf16.gmra.mrb[0].mxu0 %v1004
      %v1142 = vpop.f32.mrb[0].mxu0
      %v1143 = vadd.f32 %v868, %v1142
      %v1144 = vpop.f32.mrb[0].mxu0
      %v1145 = vadd.f32 %v870, %v1144
      %v1146 = vpop.f32.mrb[0].mxu0
      %v1147 = vadd.f32 %v872, %v1146
      %v1148 = vpop.f32.mrb[0].mxu0
      %v1149 = vadd.f32 %v874, %v1148
      %1150 = vmatprep.mubr.bf16.mxu0 0
      %1151 = vmatmul.mubr.bf16.gmra.mrb[0].mxu0 %v1007
      %v1152 = vpop.f32.mrb[0].mxu0
      %v1153 = vadd.f32 %v878, %v1152
      %v1154 = vpop.f32.mrb[0].mxu0
      %v1155 = vadd.f32 %v880, %v1154
      %v1156 = vpop.f32.mrb[0].mxu0
      %v1157 = vadd.f32 %v882, %v1156
      %v1158 = vpop.f32.mrb[0].mxu0
      %v1159 = vadd.f32 %v884, %v1158
      %1160 = vmatprep.mubr.bf16.mxu0 0
      %1161 = vmatmul.mubr.bf16.gmra.mrb[0].mxu0 %v1010
      %v1162 = vpop.f32.mrb[0].mxu0
      %v1163 = vadd.f32 %v888, %v1162
      %v1164 = vpop.f32.mrb[0].mxu0
      %v1165 = vadd.f32 %v890, %v1164
      %v1166 = vpop.f32.mrb[0].mxu0
      %v1167 = vadd.f32 %v892, %v1166
      %v1168 = vpop.f32.mrb[0].mxu0
      %v1169 = vadd.f32 %v894, %v1168
      %1170 = vmatprep.mubr.bf16.mxu0 0
      %1171 = vmatmul.mubr.bf16.gmra.mrb[0].mxu0 %v1013
      %v1172 = vpop.f32.mrb[0].mxu0
      %v1173 = vadd.f32 %v898, %v1172
      %v1174 = vpop.f32.mrb[0].mxu0
      %v1175 = vadd.f32 %v900, %v1174
      %v1176 = vpop.f32.mrb[0].mxu0
      %v1177 = vadd.f32 %v902, %v1176
      %v1178 = vpop.f32.mrb[0].mxu0
      %v1179 = vadd.f32 %v904, %v1178
      %1180 = vmatprep.mubr.bf16.mxu0 0
      %1181 = vmatmul.mubr.bf16.gmra.mrb[0].mxu0 %v1016
      %v1182 = vpop.f32.mrb[0].mxu0
      %v1183 = vadd.f32 %v908, %v1182
      %v1184 = vpop.f32.mrb[0].mxu0
      %v1185 = vadd.f32 %v910, %v1184
      %v1186 = vpop.f32.mrb[0].mxu0
      %v1187 = vadd.f32 %v912, %v1186
      %v1188 = vpop.f32.mrb[0].mxu0
      %v1189 = vadd.f32 %v914, %v1188
      %1190 = vdwg.mxu0
      %s1191 = scalar_lea.vmem %s1, 192
      %v1192 = vld [vmem:[%s1191] sm:$0xff]
      %v1193 = vld [vmem:[%s1191 + $0x8] sm:$0xff]
      %v1194 = vld [vmem:[%s1191 + $0x10] sm:$0xff]
      %v1195 = vld [vmem:[%s1191 + $0x18] sm:$0xff]
      %v1196 = vld [vmem:[%s1191 + $0x20] sm:$0xff]
      %v1197 = vld [vmem:[%s1191 + $0x28] sm:$0xff]
      %v1198 = vld [vmem:[%s1191 + $0x30] sm:$0xff]
      %v1199 = vld [vmem:[%s1191 + $0x38] sm:$0xff]
      %v1200 = vld [vmem:[%s1191 + $0x40] sm:$0xff]
      %v1201 = vld [vmem:[%s1191 + $0x48] sm:$0xff]
      %v1202 = vld [vmem:[%s1191 + $0x50] sm:$0xff]
      %v1203 = vld [vmem:[%s1191 + $0x58] sm:$0xff]
      %v1216 = vunpack.c.l.b16 %v1192
      %v1217 = vunpack.c.h.b16 %v1192
      %v1218 = vunpack.c.l.b16 %v1193
      %v1219 = vunpack.c.h.b16 %v1193
      %v1220 = vunpack.c.l.b16 %v1194
      %v1221 = vunpack.c.h.b16 %v1194
      %v1222 = vunpack.c.l.b16 %v1195
      %v1223 = vunpack.c.h.b16 %v1195
      %v1224 = vunpack.c.l.b16 %v1196
      %v1225 = vunpack.c.h.b16 %v1196
      %v1226 = vunpack.c.l.b16 %v1197
      %v1227 = vunpack.c.h.b16 %v1197
      %v1228 = vunpack.c.l.b16 %v1198
      %v1229 = vunpack.c.h.b16 %v1198
      %v1230 = vunpack.c.l.b16 %v1199
      %v1231 = vunpack.c.h.b16 %v1199
      %v1232 = vunpack.c.l.b16 %v1200
      %v1233 = vunpack.c.h.b16 %v1200
      %v1234 = vunpack.c.l.b16 %v1201
      %v1235 = vunpack.c.h.b16 %v1201
      %v1236 = vunpack.c.l.b16 %v1202
      %v1237 = vunpack.c.h.b16 %v1202
      %v1238 = vunpack.c.l.b16 %v1203
      %v1239 = vunpack.c.h.b16 %v1203
      %v1240 = vpack.c.b16 %v1218, %v1216
      %v1241 = vpack.c.b16 %v1219, %v1217
      %v1242 = vpack.c.b16 %v1222, %v1220
      %v1243 = vpack.c.b16 %v1223, %v1221
      %v1244 = vpack.c.b16 %v1226, %v1224
      %v1245 = vpack.c.b16 %v1227, %v1225
      %v1246 = vpack.c.b16 %v1230, %v1228
      %v1247 = vpack.c.b16 %v1231, %v1229
      %v1248 = vpack.c.b16 %v1234, %v1232
      %v1249 = vpack.c.b16 %v1235, %v1233
      %v1250 = vpack.c.b16 %v1238, %v1236
      %v1251 = vpack.c.b16 %v1239, %v1237
      %v1265 = vsel %vm700, %v599, 0
      %1267 = vmatprep.subr.bf16.mxu0 %v1241
      %1268 = vmatpush1.bf16.msra.mxu0 %v1240
      %1269 = vmatprep.subr.bf16.mxu0 %v1243
      %1270 = vmatpush1.bf16.msra.mxu0 %v1242
      %1271 = vmatprep.subr.bf16.mxu0 %v1245
      %1272 = vmatpush1.bf16.msra.mxu0 %v1244
      %1273 = vmatprep.subr.bf16.mxu0 %v1247
      %1274 = vmatpush1.bf16.msra.mxu0 %v1246
      %1275 = vmatprep.subr.bf16.mxu0 %v1249
      %1276 = vmatpush1.bf16.msra.mxu0 %v1248
      %1277 = vmatprep.subr.bf16.mxu0 %v1251
      %1278 = vmatpush1.bf16.msra.mxu0 %v1250
      %1279 = vmatprep.subr.bf16.mxu0 0
      %1280 = vmatpush1.bf16.msra.mxu0 0
      %1281 = vmatprep.subr.bf16.mxu0 0
      %1282 = vmatpush1.bf16.msra.mxu0 0
      %1283 = vmatprep.subr.bf16.mxu0 0
      %1284 = vmatpush1.bf16.msra.mxu0 0
      %1285 = vmatprep.subr.bf16.mxu0 0
      %1286 = vmatpush1.bf16.msra.mxu0 0
      %1287 = vmatprep.subr.bf16.mxu0 0
      %1288 = vmatpush1.bf16.msra.mxu0 0
      %1289 = vmatprep.subr.bf16.mxu0 0
      %1290 = vmatpush1.bf16.msra.mxu0 0
      %1291 = vmatprep.subr.bf16.mxu0 0
      %1292 = vmatpush1.bf16.msra.mxu0 0
      %1293 = vmatprep.subr.bf16.mxu0 0
      %1294 = vmatpush1.bf16.msra.mxu0 0
      %1295 = vmatprep.subr.bf16.mxu0 0
      %1296 = vmatpush1.bf16.msra.mxu0 0
      %1297 = vmatprep.subr.bf16.mxu0 0
      %1298 = vmatpush1.bf16.msra.mxu0 0
      %1299 = vmatprep.mubr.bf16.mxu0 0
      %1300 = vmatmul.mubr.bf16.gmra.mrb[0].mxu0 %v980
      %v1301 = vpop.f32.mrb[0].mxu0
      %v1302 = vadd.f32 0.0, %v1301
      %v1303 = vpop.f32.mrb[0].mxu0
      %v1304 = vadd.f32 0.0, %v1303
      %v1305 = vpop.f32.mrb[0].mxu0
      %v1306 = vadd.f32 0.0, %v1305
      %v1307 = vpop.f32.mrb[0].mxu0
      %v1308 = vadd.f32 0.0, %v1307
      %1309 = vmatprep.mubr.bf16.mxu0 0
      %1310 = vmatmul.mubr.bf16.gmra.mrb[0].mxu0 %v983
      %v1311 = vpop.f32.mrb[0].mxu0
      %v1312 = vadd.f32 0.0, %v1311
      %v1313 = vpop.f32.mrb[0].mxu0
      %v1314 = vadd.f32 0.0, %v1313
      %v1315 = vpop.f32.mrb[0].mxu0
      %v1316 = vadd.f32 0.0, %v1315
      %v1317 = vpop.f32.mrb[0].mxu0
      %v1318 = vadd.f32 0.0, %v1317
      %1319 = vmatprep.mubr.bf16.mxu0 0
      %1320 = vmatmul.mubr.bf16.gmra.mrb[0].mxu0 %v986
      %v1321 = vpop.f32.mrb[0].mxu0
      %v1322 = vadd.f32 0.0, %v1321
      %v1323 = vpop.f32.mrb[0].mxu0
      %v1324 = vadd.f32 0.0, %v1323
      %v1325 = vpop.f32.mrb[0].mxu0
      %v1326 = vadd.f32 0.0, %v1325
      %v1327 = vpop.f32.mrb[0].mxu0
      %v1328 = vadd.f32 0.0, %v1327
      %1329 = vmatprep.mubr.bf16.mxu0 0
      %1330 = vmatmul.mubr.bf16.gmra.mrb[0].mxu0 %v989
      %v1331 = vpop.f32.mrb[0].mxu0
      %v1332 = vadd.f32 0.0, %v1331
      %v1333 = vpop.f32.mrb[0].mxu0
      %v1334 = vadd.f32 0.0, %v1333
      %v1335 = vpop.f32.mrb[0].mxu0
      %v1336 = vadd.f32 0.0, %v1335
      %v1337 = vpop.f32.mrb[0].mxu0
      %v1338 = vadd.f32 0.0, %v1337
      %1339 = vmatprep.mubr.bf16.mxu0 0
      %1340 = vmatmul.mubr.bf16.gmra.mrb[0].mxu0 %v992
      %v1341 = vpop.f32.mrb[0].mxu0
      %v1342 = vadd.f32 0.0, %v1341
      %v1343 = vpop.f32.mrb[0].mxu0
      %v1344 = vadd.f32 0.0, %v1343
      %v1345 = vpop.f32.mrb[0].mxu0
      %v1346 = vadd.f32 0.0, %v1345
      %v1347 = vpop.f32.mrb[0].mxu0
      %v1348 = vadd.f32 0.0, %v1347
      %1349 = vmatprep.mubr.bf16.mxu0 0
      %1350 = vmatmul.mubr.bf16.gmra.mrb[0].mxu0 %v995
      %v1351 = vpop.f32.mrb[0].mxu0
      %v1352 = vadd.f32 0.0, %v1351
      %v1353 = vpop.f32.mrb[0].mxu0
      %v1354 = vadd.f32 0.0, %v1353
      %v1355 = vpop.f32.mrb[0].mxu0
      %v1356 = vadd.f32 0.0, %v1355
      %v1357 = vpop.f32.mrb[0].mxu0
      %v1358 = vadd.f32 0.0, %v1357
      %1359 = vmatprep.mubr.bf16.mxu0 0
      %1360 = vmatmul.mubr.bf16.gmra.mrb[0].mxu0 %v998
      %v1361 = vpop.f32.mrb[0].mxu0
      %v1362 = vadd.f32 0.0, %v1361
      %v1363 = vpop.f32.mrb[0].mxu0
      %v1364 = vadd.f32 0.0, %v1363
      %v1365 = vpop.f32.mrb[0].mxu0
      %v1366 = vadd.f32 0.0, %v1365
      %v1367 = vpop.f32.mrb[0].mxu0
      %v1368 = vadd.f32 0.0, %v1367
      %1369 = vmatprep.mubr.bf16.mxu0 0
      %1370 = vmatmul.mubr.bf16.gmra.mrb[0].mxu0 %v1001
      %v1371 = vpop.f32.mrb[0].mxu0
      %v1372 = vadd.f32 0.0, %v1371
      %v1373 = vpop.f32.mrb[0].mxu0
      %v1374 = vadd.f32 0.0, %v1373
      %v1375 = vpop.f32.mrb[0].mxu0
      %v1376 = vadd.f32 0.0, %v1375
      %v1377 = vpop.f32.mrb[0].mxu0
      %v1378 = vadd.f32 0.0, %v1377
      %1379 = vmatprep.mubr.bf16.mxu0 0
      %1380 = vmatmul.mubr.bf16.gmra.mrb[0].mxu0 %v1004
      %v1381 = vpop.f32.mrb[0].mxu0
      %v1382 = vadd.f32 0.0, %v1381
      %v1383 = vpop.f32.mrb[0].mxu0
      %v1384 = vadd.f32 0.0, %v1383
      %v1385 = vpop.f32.mrb[0].mxu0
      %v1386 = vadd.f32 0.0, %v1385
      %v1387 = vpop.f32.mrb[0].mxu0
      %v1388 = vadd.f32 0.0, %v1387
      %1389 = vmatprep.mubr.bf16.mxu0 0
      %1390 = vmatmul.mubr.bf16.gmra.mrb[0].mxu0 %v1007
      %v1391 = vpop.f32.mrb[0].mxu0
      %v1392 = vadd.f32 0.0, %v1391
      %v1393 = vpop.f32.mrb[0].mxu0
      %v1394 = vadd.f32 0.0, %v1393
      %v1395 = vpop.f32.mrb[0].mxu0
      %v1396 = vadd.f32 0.0, %v1395
      %v1397 = vpop.f32.mrb[0].mxu0
      %v1398 = vadd.f32 0.0, %v1397
      %1399 = vmatprep.mubr.bf16.mxu0 0
      %1400 = vmatmul.mubr.bf16.gmra.mrb[0].mxu0 %v1010
      %v1401 = vpop.f32.mrb[0].mxu0
      %v1402 = vadd.f32 0.0, %v1401
      %v1403 = vpop.f32.mrb[0].mxu0
      %v1404 = vadd.f32 0.0, %v1403
      %v1405 = vpop.f32.mrb[0].mxu0
      %v1406 = vadd.f32 0.0, %v1405
      %v1407 = vpop.f32.mrb[0].mxu0
      %v1408 = vadd.f32 0.0, %v1407
      %1409 = vmatprep.mubr.bf16.mxu0 0
      %1410 = vmatmul.mubr.bf16.gmra.mrb[0].mxu0 %v1013
      %v1411 = vpop.f32.mrb[0].mxu0
      %v1412 = vadd.f32 0.0, %v1411
      %v1413 = vpop.f32.mrb[0].mxu0
      %v1414 = vadd.f32 0.0, %v1413
      %v1415 = vpop.f32.mrb[0].mxu0
      %v1416 = vadd.f32 0.0, %v1415
      %v1417 = vpop.f32.mrb[0].mxu0
      %v1418 = vadd.f32 0.0, %v1417
      %1419 = vmatprep.mubr.bf16.mxu0 0
      %1420 = vmatmul.mubr.bf16.gmra.mrb[0].mxu0 %v1016
      %v1421 = vpop.f32.mrb[0].mxu0
      %v1422 = vadd.f32 0.0, %v1421
      %v1423 = vpop.f32.mrb[0].mxu0
      %v1424 = vadd.f32 0.0, %v1423
      %v1425 = vpop.f32.mrb[0].mxu0
      %v1426 = vadd.f32 0.0, %v1425
      %v1427 = vpop.f32.mrb[0].mxu0
      %v1428 = vadd.f32 0.0, %v1427
      %1429 = vmatprep.mubr.bf16.mxu0 0
      %1430 = vmatmul.mubr.bf16.gmra.mrb[0].mxu0 %v1265
      %v1431 = vpop.f32.mrb[0].mxu0
      %v1432 = vadd.f32 0.0, %v1431
      %v1433 = vpop.f32.mrb[0].mxu0
      %v1434 = vadd.f32 0.0, %v1433
      %v1435 = vpop.f32.mrb[0].mxu0
      %v1436 = vadd.f32 0.0, %v1435
      %v1437 = vpop.f32.mrb[0].mxu0
      %v1438 = vadd.f32 0.0, %v1437
      %1439 = vdwg.mxu0
      %v1440 = vadd.f32 %v1053, %v1302
      %v1441 = vadd.f32 %v1055, %v1304
      %v1442 = vadd.f32 %v1057, %v1306
      %v1443 = vadd.f32 %v1059, %v1308
      %v1444 = vadd.f32 %v1063, %v1312
      %v1445 = vadd.f32 %v1065, %v1314
      %v1446 = vadd.f32 %v1067, %v1316
      %v1447 = vadd.f32 %v1069, %v1318
      %v1448 = vadd.f32 %v1073, %v1322
      %v1449 = vadd.f32 %v1075, %v1324
      %v1450 = vadd.f32 %v1077, %v1326
      %v1451 = vadd.f32 %v1079, %v1328
      %v1452 = vadd.f32 %v1083, %v1332
      %v1453 = vadd.f32 %v1085, %v1334
      %v1454 = vadd.f32 %v1087, %v1336
      %v1455 = vadd.f32 %v1089, %v1338
      %v1456 = vadd.f32 %v1093, %v1342
      %v1457 = vadd.f32 %v1095, %v1344
      %v1458 = vadd.f32 %v1097, %v1346
      %v1459 = vadd.f32 %v1099, %v1348
      %v1460 = vadd.f32 %v1103, %v1352
      %v1461 = vadd.f32 %v1105, %v1354
      %v1462 = vadd.f32 %v1107, %v1356
      %v1463 = vadd.f32 %v1109, %v1358
      %v1464 = vadd.f32 %v1113, %v1362
      %v1465 = vadd.f32 %v1115, %v1364
      %v1466 = vadd.f32 %v1117, %v1366
      %v1467 = vadd.f32 %v1119, %v1368
      %v1468 = vadd.f32 %v1123, %v1372
      %v1469 = vadd.f32 %v1125, %v1374
      %v1470 = vadd.f32 %v1127, %v1376
      %v1471 = vadd.f32 %v1129, %v1378
      %v1472 = vadd.f32 %v1133, %v1382
      %v1473 = vadd.f32 %v1135, %v1384
      %v1474 = vadd.f32 %v1137, %v1386
      %v1475 = vadd.f32 %v1139, %v1388
      %v1476 = vadd.f32 %v1143, %v1392
      %v1477 = vadd.f32 %v1145, %v1394
      %v1478 = vadd.f32 %v1147, %v1396
      %v1479 = vadd.f32 %v1149, %v1398
      %v1480 = vadd.f32 %v1153, %v1402
      %v1481 = vadd.f32 %v1155, %v1404
      %v1482 = vadd.f32 %v1157, %v1406
      %v1483 = vadd.f32 %v1159, %v1408
      %v1484 = vadd.f32 %v1163, %v1412
      %v1485 = vadd.f32 %v1165, %v1414
      %v1486 = vadd.f32 %v1167, %v1416
      %v1487 = vadd.f32 %v1169, %v1418
      %v1488 = vadd.f32 %v1173, %v1422
      %v1489 = vadd.f32 %v1175, %v1424
      %v1490 = vadd.f32 %v1177, %v1426
      %v1491 = vadd.f32 %v1179, %v1428
      %v1492 = vadd.f32 %v1183, %v1432
      %v1493 = vadd.f32 %v1185, %v1434
      %v1494 = vadd.f32 %v1187, %v1436
      %v1495 = vadd.f32 %v1189, %v1438
      %s1496 = scalar_lea.vmem %s1, 288
      %v1497 = vld [vmem:[%s1496] sm:$0xff]
      %v1498 = vld [vmem:[%s1496 + $0x8] sm:$0xff]
      %v1499 = vld [vmem:[%s1496 + $0x10] sm:$0xff]
      %v1500 = vld [vmem:[%s1496 + $0x18] sm:$0xff]
      %v1501 = vld [vmem:[%s1496 + $0x20] sm:$0xff]
      %v1502 = vld [vmem:[%s1496 + $0x28] sm:$0xff]
      %v1503 = vld [vmem:[%s1496 + $0x30] sm:$0xff]
      %v1504 = vld [vmem:[%s1496 + $0x38] sm:$0xff]
      %v1505 = vld [vmem:[%s1496 + $0x40] sm:$0xff]
      %v1506 = vld [vmem:[%s1496 + $0x48] sm:$0xff]
      %v1507 = vld [vmem:[%s1496 + $0x50] sm:$0xff]
      %v1508 = vld [vmem:[%s1496 + $0x58] sm:$0xff]
      %v1521 = vunpack.c.l.b16 %v1497
      %v1522 = vunpack.c.h.b16 %v1497
      %v1523 = vunpack.c.l.b16 %v1498
      %v1524 = vunpack.c.h.b16 %v1498
      %v1525 = vunpack.c.l.b16 %v1499
      %v1526 = vunpack.c.h.b16 %v1499
      %v1527 = vunpack.c.l.b16 %v1500
      %v1528 = vunpack.c.h.b16 %v1500
      %v1529 = vunpack.c.l.b16 %v1501
      %v1530 = vunpack.c.h.b16 %v1501
      %v1531 = vunpack.c.l.b16 %v1502
      %v1532 = vunpack.c.h.b16 %v1502
      %v1533 = vunpack.c.l.b16 %v1503
      %v1534 = vunpack.c.h.b16 %v1503
      %v1535 = vunpack.c.l.b16 %v1504
      %v1536 = vunpack.c.h.b16 %v1504
      %v1537 = vunpack.c.l.b16 %v1505
      %v1538 = vunpack.c.h.b16 %v1505
      %v1539 = vunpack.c.l.b16 %v1506
      %v1540 = vunpack.c.h.b16 %v1506
      %v1541 = vunpack.c.l.b16 %v1507
      %v1542 = vunpack.c.h.b16 %v1507
      %v1543 = vunpack.c.l.b16 %v1508
      %v1544 = vunpack.c.h.b16 %v1508
      %v1545 = vpack.c.b16 %v1523, %v1521
      %v1546 = vpack.c.b16 %v1524, %v1522
      %v1547 = vpack.c.b16 %v1527, %v1525
      %v1548 = vpack.c.b16 %v1528, %v1526
      %v1549 = vpack.c.b16 %v1531, %v1529
      %v1550 = vpack.c.b16 %v1532, %v1530
      %v1551 = vpack.c.b16 %v1535, %v1533
      %v1552 = vpack.c.b16 %v1536, %v1534
      %v1553 = vpack.c.b16 %v1539, %v1537
      %v1554 = vpack.c.b16 %v1540, %v1538
      %v1555 = vpack.c.b16 %v1543, %v1541
      %v1556 = vpack.c.b16 %v1544, %v1542
      %v1570 = vsel %vm700, %v604, 0
      %1572 = vmatprep.subr.bf16.mxu0 %v1546
      %1573 = vmatpush1.bf16.msra.mxu0 %v1545
      %1574 = vmatprep.subr.bf16.mxu0 %v1548
      %1575 = vmatpush1.bf16.msra.mxu0 %v1547
      %1576 = vmatprep.subr.bf16.mxu0 %v1550
      %1577 = vmatpush1.bf16.msra.mxu0 %v1549
      %1578 = vmatprep.subr.bf16.mxu0 %v1552
      %1579 = vmatpush1.bf16.msra.mxu0 %v1551
      %1580 = vmatprep.subr.bf16.mxu0 %v1554
      %1581 = vmatpush1.bf16.msra.mxu0 %v1553
      %1582 = vmatprep.subr.bf16.mxu0 %v1556
      %1583 = vmatpush1.bf16.msra.mxu0 %v1555
      %1584 = vmatprep.subr.bf16.mxu0 0
      %1585 = vmatpush1.bf16.msra.mxu0 0
      %1586 = vmatprep.subr.bf16.mxu0 0
      %1587 = vmatpush1.bf16.msra.mxu0 0
      %1588 = vmatprep.subr.bf16.mxu0 0
      %1589 = vmatpush1.bf16.msra.mxu0 0
      %1590 = vmatprep.subr.bf16.mxu0 0
      %1591 = vmatpush1.bf16.msra.mxu0 0
      %1592 = vmatprep.subr.bf16.mxu0 0
      %1593 = vmatpush1.bf16.msra.mxu0 0
      %1594 = vmatprep.subr.bf16.mxu0 0
      %1595 = vmatpush1.bf16.msra.mxu0 0
      %1596 = vmatprep.subr.bf16.mxu0 0
      %1597 = vmatpush1.bf16.msra.mxu0 0
      %1598 = vmatprep.subr.bf16.mxu0 0
      %1599 = vmatpush1.bf16.msra.mxu0 0
      %1600 = vmatprep.subr.bf16.mxu0 0
      %1601 = vmatpush1.bf16.msra.mxu0 0
      %1602 = vmatprep.subr.bf16.mxu0 0
      %1603 = vmatpush1.bf16.msra.mxu0 0
      %1604 = vmatprep.mubr.bf16.mxu0 0
      %1605 = vmatmul.mubr.bf16.gmra.mrb[0].mxu0 %v705
      %v1606 = vpop.f32.mrb[0].mxu0
      %v1607 = vadd.f32 0.0, %v1606
      %v1608 = vpop.f32.mrb[0].mxu0
      %v1609 = vadd.f32 0.0, %v1608
      %v1610 = vpop.f32.mrb[0].mxu0
      %v1611 = vadd.f32 0.0, %v1610
      %v1612 = vpop.f32.mrb[0].mxu0
      %v1613 = vadd.f32 0.0, %v1612
      %1614 = vmatprep.mubr.bf16.mxu0 0
      %1615 = vmatmul.mubr.bf16.gmra.mrb[0].mxu0 %v708
      %v1616 = vpop.f32.mrb[0].mxu0
      %v1617 = vadd.f32 0.0, %v1616
      %v1618 = vpop.f32.mrb[0].mxu0
      %v1619 = vadd.f32 0.0, %v1618
      %v1620 = vpop.f32.mrb[0].mxu0
      %v1621 = vadd.f32 0.0, %v1620
      %v1622 = vpop.f32.mrb[0].mxu0
      %v1623 = vadd.f32 0.0, %v1622
      %1624 = vmatprep.mubr.bf16.mxu0 0
      %1625 = vmatmul.mubr.bf16.gmra.mrb[0].mxu0 %v711
      %v1626 = vpop.f32.mrb[0].mxu0
      %v1627 = vadd.f32 0.0, %v1626
      %v1628 = vpop.f32.mrb[0].mxu0
      %v1629 = vadd.f32 0.0, %v1628
      %v1630 = vpop.f32.mrb[0].mxu0
      %v1631 = vadd.f32 0.0, %v1630
      %v1632 = vpop.f32.mrb[0].mxu0
      %v1633 = vadd.f32 0.0, %v1632
      %1634 = vmatprep.mubr.bf16.mxu0 0
      %1635 = vmatmul.mubr.bf16.gmra.mrb[0].mxu0 %v714
      %v1636 = vpop.f32.mrb[0].mxu0
      %v1637 = vadd.f32 0.0, %v1636
      %v1638 = vpop.f32.mrb[0].mxu0
      %v1639 = vadd.f32 0.0, %v1638
      %v1640 = vpop.f32.mrb[0].mxu0
      %v1641 = vadd.f32 0.0, %v1640
      %v1642 = vpop.f32.mrb[0].mxu0
      %v1643 = vadd.f32 0.0, %v1642
      %1644 = vmatprep.mubr.bf16.mxu0 0
      %1645 = vmatmul.mubr.bf16.gmra.mrb[0].mxu0 %v717
      %v1646 = vpop.f32.mrb[0].mxu0
      %v1647 = vadd.f32 0.0, %v1646
      %v1648 = vpop.f32.mrb[0].mxu0
      %v1649 = vadd.f32 0.0, %v1648
      %v1650 = vpop.f32.mrb[0].mxu0
      %v1651 = vadd.f32 0.0, %v1650
      %v1652 = vpop.f32.mrb[0].mxu0
      %v1653 = vadd.f32 0.0, %v1652
      %1654 = vmatprep.mubr.bf16.mxu0 0
      %1655 = vmatmul.mubr.bf16.gmra.mrb[0].mxu0 %v720
      %v1656 = vpop.f32.mrb[0].mxu0
      %v1657 = vadd.f32 0.0, %v1656
      %v1658 = vpop.f32.mrb[0].mxu0
      %v1659 = vadd.f32 0.0, %v1658
      %v1660 = vpop.f32.mrb[0].mxu0
      %v1661 = vadd.f32 0.0, %v1660
      %v1662 = vpop.f32.mrb[0].mxu0
      %v1663 = vadd.f32 0.0, %v1662
      %1664 = vmatprep.mubr.bf16.mxu0 0
      %1665 = vmatmul.mubr.bf16.gmra.mrb[0].mxu0 %v723
      %v1666 = vpop.f32.mrb[0].mxu0
      %v1667 = vadd.f32 0.0, %v1666
      %v1668 = vpop.f32.mrb[0].mxu0
      %v1669 = vadd.f32 0.0, %v1668
      %v1670 = vpop.f32.mrb[0].mxu0
      %v1671 = vadd.f32 0.0, %v1670
      %v1672 = vpop.f32.mrb[0].mxu0
      %v1673 = vadd.f32 0.0, %v1672
      %1674 = vmatprep.mubr.bf16.mxu0 0
      %1675 = vmatmul.mubr.bf16.gmra.mrb[0].mxu0 %v726
      %v1676 = vpop.f32.mrb[0].mxu0
      %v1677 = vadd.f32 0.0, %v1676
      %v1678 = vpop.f32.mrb[0].mxu0
      %v1679 = vadd.f32 0.0, %v1678
      %v1680 = vpop.f32.mrb[0].mxu0
      %v1681 = vadd.f32 0.0, %v1680
      %v1682 = vpop.f32.mrb[0].mxu0
      %v1683 = vadd.f32 0.0, %v1682
      %1684 = vmatprep.mubr.bf16.mxu0 0
      %1685 = vmatmul.mubr.bf16.gmra.mrb[0].mxu0 %v729
      %v1686 = vpop.f32.mrb[0].mxu0
      %v1687 = vadd.f32 0.0, %v1686
      %v1688 = vpop.f32.mrb[0].mxu0
      %v1689 = vadd.f32 0.0, %v1688
      %v1690 = vpop.f32.mrb[0].mxu0
      %v1691 = vadd.f32 0.0, %v1690
      %v1692 = vpop.f32.mrb[0].mxu0
      %v1693 = vadd.f32 0.0, %v1692
      %1694 = vmatprep.mubr.bf16.mxu0 0
      %1695 = vmatmul.mubr.bf16.gmra.mrb[0].mxu0 %v732
      %v1696 = vpop.f32.mrb[0].mxu0
      %v1697 = vadd.f32 0.0, %v1696
      %v1698 = vpop.f32.mrb[0].mxu0
      %v1699 = vadd.f32 0.0, %v1698
      %v1700 = vpop.f32.mrb[0].mxu0
      %v1701 = vadd.f32 0.0, %v1700
      %v1702 = vpop.f32.mrb[0].mxu0
      %v1703 = vadd.f32 0.0, %v1702
      %1704 = vmatprep.mubr.bf16.mxu0 0
      %1705 = vmatmul.mubr.bf16.gmra.mrb[0].mxu0 %v735
      %v1706 = vpop.f32.mrb[0].mxu0
      %v1707 = vadd.f32 0.0, %v1706
      %v1708 = vpop.f32.mrb[0].mxu0
      %v1709 = vadd.f32 0.0, %v1708
      %v1710 = vpop.f32.mrb[0].mxu0
      %v1711 = vadd.f32 0.0, %v1710
      %v1712 = vpop.f32.mrb[0].mxu0
      %v1713 = vadd.f32 0.0, %v1712
      %1714 = vmatprep.mubr.bf16.mxu0 0
      %1715 = vmatmul.mubr.bf16.gmra.mrb[0].mxu0 %v738
      %v1716 = vpop.f32.mrb[0].mxu0
      %v1717 = vadd.f32 0.0, %v1716
      %v1718 = vpop.f32.mrb[0].mxu0
      %v1719 = vadd.f32 0.0, %v1718
      %v1720 = vpop.f32.mrb[0].mxu0
      %v1721 = vadd.f32 0.0, %v1720
      %v1722 = vpop.f32.mrb[0].mxu0
      %v1723 = vadd.f32 0.0, %v1722
      %1724 = vmatprep.mubr.bf16.mxu0 0
      %1725 = vmatmul.mubr.bf16.gmra.mrb[0].mxu0 %v741
      %v1726 = vpop.f32.mrb[0].mxu0
      %v1727 = vadd.f32 0.0, %v1726
      %v1728 = vpop.f32.mrb[0].mxu0
      %v1729 = vadd.f32 0.0, %v1728
      %v1730 = vpop.f32.mrb[0].mxu0
      %v1731 = vadd.f32 0.0, %v1730
      %v1732 = vpop.f32.mrb[0].mxu0
      %v1733 = vadd.f32 0.0, %v1732
      %1734 = vmatprep.mubr.bf16.mxu0 0
      %1735 = vmatmul.mubr.bf16.gmra.mrb[0].mxu0 %v1570
      %v1736 = vpop.f32.mrb[0].mxu0
      %v1737 = vadd.f32 0.0, %v1736
      %v1738 = vpop.f32.mrb[0].mxu0
      %v1739 = vadd.f32 0.0, %v1738
      %v1740 = vpop.f32.mrb[0].mxu0
      %v1741 = vadd.f32 0.0, %v1740
      %v1742 = vpop.f32.mrb[0].mxu0
      %v1743 = vadd.f32 0.0, %v1742
      %1744 = vdwg.mxu0
      %v1745 = vadd.f32 %v1440, %v1607
      %v1746 = vadd.f32 %v1441, %v1609
      %v1747 = vadd.f32 %v1442, %v1611
      %v1748 = vadd.f32 %v1443, %v1613
      %v1749 = vadd.f32 %v1444, %v1617
      %v1750 = vadd.f32 %v1445, %v1619
      %v1751 = vadd.f32 %v1446, %v1621
      %v1752 = vadd.f32 %v1447, %v1623
      %v1753 = vadd.f32 %v1448, %v1627
      %v1754 = vadd.f32 %v1449, %v1629
      %v1755 = vadd.f32 %v1450, %v1631
      %v1756 = vadd.f32 %v1451, %v1633
      %v1757 = vadd.f32 %v1452, %v1637
      %v1758 = vadd.f32 %v1453, %v1639
      %v1759 = vadd.f32 %v1454, %v1641
      %v1760 = vadd.f32 %v1455, %v1643
      %v1761 = vadd.f32 %v1456, %v1647
      %v1762 = vadd.f32 %v1457, %v1649
      %v1763 = vadd.f32 %v1458, %v1651
      %v1764 = vadd.f32 %v1459, %v1653
      %v1765 = vadd.f32 %v1460, %v1657
      %v1766 = vadd.f32 %v1461, %v1659
      %v1767 = vadd.f32 %v1462, %v1661
      %v1768 = vadd.f32 %v1463, %v1663
      %v1769 = vadd.f32 %v1464, %v1667
      %v1770 = vadd.f32 %v1465, %v1669
      %v1771 = vadd.f32 %v1466, %v1671
      %v1772 = vadd.f32 %v1467, %v1673
      %v1773 = vadd.f32 %v1468, %v1677
      %v1774 = vadd.f32 %v1469, %v1679
      %v1775 = vadd.f32 %v1470, %v1681
      %v1776 = vadd.f32 %v1471, %v1683
      %v1777 = vadd.f32 %v1472, %v1687
      %v1778 = vadd.f32 %v1473, %v1689
      %v1779 = vadd.f32 %v1474, %v1691
      %v1780 = vadd.f32 %v1475, %v1693
      %v1781 = vadd.f32 %v1476, %v1697
      %v1782 = vadd.f32 %v1477, %v1699
      %v1783 = vadd.f32 %v1478, %v1701
      %v1784 = vadd.f32 %v1479, %v1703
      %v1785 = vadd.f32 %v1480, %v1707
      %v1786 = vadd.f32 %v1481, %v1709
      %v1787 = vadd.f32 %v1482, %v1711
      %v1788 = vadd.f32 %v1483, %v1713
      %v1789 = vadd.f32 %v1484, %v1717
      %v1790 = vadd.f32 %v1485, %v1719
      %v1791 = vadd.f32 %v1486, %v1721
      %v1792 = vadd.f32 %v1487, %v1723
      %v1793 = vadd.f32 %v1488, %v1727
      %v1794 = vadd.f32 %v1489, %v1729
      %v1795 = vadd.f32 %v1490, %v1731
      %v1796 = vadd.f32 %v1491, %v1733
      %v1797 = vadd.f32 %v1492, %v1737
      %v1798 = vadd.f32 %v1493, %v1739
      %v1799 = vadd.f32 %v1494, %v1741
      %v1800 = vadd.f32 %v1495, %v1743
      %s1801 = scalar_lea.vmem %s1, 384
      %v1802 = vld [vmem:[%s1801] sm:$0xff]
      %v1803 = vld [vmem:[%s1801 + $0x8] sm:$0xff]
      %v1804 = vld [vmem:[%s1801 + $0x10] sm:$0xff]
      %v1805 = vld [vmem:[%s1801 + $0x18] sm:$0xff]
      %v1806 = vld [vmem:[%s1801 + $0x20] sm:$0xff]
      %v1807 = vld [vmem:[%s1801 + $0x28] sm:$0xff]
      %v1808 = vld [vmem:[%s1801 + $0x30] sm:$0xff]
      %v1809 = vld [vmem:[%s1801 + $0x38] sm:$0xff]
      %v1810 = vld [vmem:[%s1801 + $0x40] sm:$0xff]
      %v1811 = vld [vmem:[%s1801 + $0x48] sm:$0xff]
      %v1812 = vld [vmem:[%s1801 + $0x50] sm:$0xff]
      %v1813 = vld [vmem:[%s1801 + $0x58] sm:$0xff]
      %v1826 = vunpack.c.l.b16 %v1802
      %v1827 = vunpack.c.h.b16 %v1802
      %v1828 = vunpack.c.l.b16 %v1803
      %v1829 = vunpack.c.h.b16 %v1803
      %v1830 = vunpack.c.l.b16 %v1804
      %v1831 = vunpack.c.h.b16 %v1804
      %v1832 = vunpack.c.l.b16 %v1805
      %v1833 = vunpack.c.h.b16 %v1805
      %v1834 = vunpack.c.l.b16 %v1806
      %v1835 = vunpack.c.h.b16 %v1806
      %v1836 = vunpack.c.l.b16 %v1807
      %v1837 = vunpack.c.h.b16 %v1807
      %v1838 = vunpack.c.l.b16 %v1808
      %v1839 = vunpack.c.h.b16 %v1808
      %v1840 = vunpack.c.l.b16 %v1809
      %v1841 = vunpack.c.h.b16 %v1809
      %v1842 = vunpack.c.l.b16 %v1810
      %v1843 = vunpack.c.h.b16 %v1810
      %v1844 = vunpack.c.l.b16 %v1811
      %v1845 = vunpack.c.h.b16 %v1811
      %v1846 = vunpack.c.l.b16 %v1812
      %v1847 = vunpack.c.h.b16 %v1812
      %v1848 = vunpack.c.l.b16 %v1813
      %v1849 = vunpack.c.h.b16 %v1813
      %v1850 = vpack.c.b16 %v1828, %v1826
      %v1851 = vpack.c.b16 %v1829, %v1827
      %v1852 = vpack.c.b16 %v1832, %v1830
      %v1853 = vpack.c.b16 %v1833, %v1831
      %v1854 = vpack.c.b16 %v1836, %v1834
      %v1855 = vpack.c.b16 %v1837, %v1835
      %v1856 = vpack.c.b16 %v1840, %v1838
      %v1857 = vpack.c.b16 %v1841, %v1839
      %v1858 = vpack.c.b16 %v1844, %v1842
      %v1859 = vpack.c.b16 %v1845, %v1843
      %v1860 = vpack.c.b16 %v1848, %v1846
      %v1861 = vpack.c.b16 %v1849, %v1847
      %v1875 = vsel %vm700, %v609, 0
      %1877 = vmatprep.subr.bf16.mxu0 %v1851
      %1878 = vmatpush1.bf16.msra.mxu0 %v1850
      %1879 = vmatprep.subr.bf16.mxu0 %v1853
      %1880 = vmatpush1.bf16.msra.mxu0 %v1852
      %1881 = vmatprep.subr.bf16.mxu0 %v1855
      %1882 = vmatpush1.bf16.msra.mxu0 %v1854
      %1883 = vmatprep.subr.bf16.mxu0 %v1857
      %1884 = vmatpush1.bf16.msra.mxu0 %v1856
      %1885 = vmatprep.subr.bf16.mxu0 %v1859
      %1886 = vmatpush1.bf16.msra.mxu0 %v1858
      %1887 = vmatprep.subr.bf16.mxu0 %v1861
      %1888 = vmatpush1.bf16.msra.mxu0 %v1860
      %1889 = vmatprep.subr.bf16.mxu0 0
      %1890 = vmatpush1.bf16.msra.mxu0 0
      %1891 = vmatprep.subr.bf16.mxu0 0
      %1892 = vmatpush1.bf16.msra.mxu0 0
      %1893 = vmatprep.subr.bf16.mxu0 0
      %1894 = vmatpush1.bf16.msra.mxu0 0
      %1895 = vmatprep.subr.bf16.mxu0 0
      %1896 = vmatpush1.bf16.msra.mxu0 0
      %1897 = vmatprep.subr.bf16.mxu0 0
      %1898 = vmatpush1.bf16.msra.mxu0 0
      %1899 = vmatprep.subr.bf16.mxu0 0
      %1900 = vmatpush1.bf16.msra.mxu0 0
      %1901 = vmatprep.subr.bf16.mxu0 0
      %1902 = vmatpush1.bf16.msra.mxu0 0
      %1903 = vmatprep.subr.bf16.mxu0 0
      %1904 = vmatpush1.bf16.msra.mxu0 0
      %1905 = vmatprep.subr.bf16.mxu0 0
      %1906 = vmatpush1.bf16.msra.mxu0 0
      %1907 = vmatprep.subr.bf16.mxu0 0
      %1908 = vmatpush1.bf16.msra.mxu0 0
      %1909 = vmatprep.mubr.bf16.mxu0 0
      %1910 = vmatmul.mubr.bf16.gmra.mrb[0].mxu0 %v983
      %v1911 = vpop.f32.mrb[0].mxu0
      %v1912 = vadd.f32 0.0, %v1911
      %v1913 = vpop.f32.mrb[0].mxu0
      %v1914 = vadd.f32 0.0, %v1913
      %v1915 = vpop.f32.mrb[0].mxu0
      %v1916 = vadd.f32 0.0, %v1915
      %v1917 = vpop.f32.mrb[0].mxu0
      %v1918 = vadd.f32 0.0, %v1917
      %1919 = vmatprep.mubr.bf16.mxu0 0
      %1920 = vmatmul.mubr.bf16.gmra.mrb[0].mxu0 %v986
      %v1921 = vpop.f32.mrb[0].mxu0
      %v1922 = vadd.f32 0.0, %v1921
      %v1923 = vpop.f32.mrb[0].mxu0
      %v1924 = vadd.f32 0.0, %v1923
      %v1925 = vpop.f32.mrb[0].mxu0
      %v1926 = vadd.f32 0.0, %v1925
      %v1927 = vpop.f32.mrb[0].mxu0
      %v1928 = vadd.f32 0.0, %v1927
      %1929 = vmatprep.mubr.bf16.mxu0 0
      %1930 = vmatmul.mubr.bf16.gmra.mrb[0].mxu0 %v989
      %v1931 = vpop.f32.mrb[0].mxu0
      %v1932 = vadd.f32 0.0, %v1931
      %v1933 = vpop.f32.mrb[0].mxu0
      %v1934 = vadd.f32 0.0, %v1933
      %v1935 = vpop.f32.mrb[0].mxu0
      %v1936 = vadd.f32 0.0, %v1935
      %v1937 = vpop.f32.mrb[0].mxu0
      %v1938 = vadd.f32 0.0, %v1937
      %1939 = vmatprep.mubr.bf16.mxu0 0
      %1940 = vmatmul.mubr.bf16.gmra.mrb[0].mxu0 %v992
      %v1941 = vpop.f32.mrb[0].mxu0
      %v1942 = vadd.f32 0.0, %v1941
      %v1943 = vpop.f32.mrb[0].mxu0
      %v1944 = vadd.f32 0.0, %v1943
      %v1945 = vpop.f32.mrb[0].mxu0
      %v1946 = vadd.f32 0.0, %v1945
      %v1947 = vpop.f32.mrb[0].mxu0
      %v1948 = vadd.f32 0.0, %v1947
      %1949 = vmatprep.mubr.bf16.mxu0 0
      %1950 = vmatmul.mubr.bf16.gmra.mrb[0].mxu0 %v995
      %v1951 = vpop.f32.mrb[0].mxu0
      %v1952 = vadd.f32 0.0, %v1951
      %v1953 = vpop.f32.mrb[0].mxu0
      %v1954 = vadd.f32 0.0, %v1953
      %v1955 = vpop.f32.mrb[0].mxu0
      %v1956 = vadd.f32 0.0, %v1955
      %v1957 = vpop.f32.mrb[0].mxu0
      %v1958 = vadd.f32 0.0, %v1957
      %1959 = vmatprep.mubr.bf16.mxu0 0
      %1960 = vmatmul.mubr.bf16.gmra.mrb[0].mxu0 %v998
      %v1961 = vpop.f32.mrb[0].mxu0
      %v1962 = vadd.f32 0.0, %v1961
      %v1963 = vpop.f32.mrb[0].mxu0
      %v1964 = vadd.f32 0.0, %v1963
      %v1965 = vpop.f32.mrb[0].mxu0
      %v1966 = vadd.f32 0.0, %v1965
      %v1967 = vpop.f32.mrb[0].mxu0
      %v1968 = vadd.f32 0.0, %v1967
      %1969 = vmatprep.mubr.bf16.mxu0 0
      %1970 = vmatmul.mubr.bf16.gmra.mrb[0].mxu0 %v1001
      %v1971 = vpop.f32.mrb[0].mxu0
      %v1972 = vadd.f32 0.0, %v1971
      %v1973 = vpop.f32.mrb[0].mxu0
      %v1974 = vadd.f32 0.0, %v1973
      %v1975 = vpop.f32.mrb[0].mxu0
      %v1976 = vadd.f32 0.0, %v1975
      %v1977 = vpop.f32.mrb[0].mxu0
      %v1978 = vadd.f32 0.0, %v1977
      %1979 = vmatprep.mubr.bf16.mxu0 0
      %1980 = vmatmul.mubr.bf16.gmra.mrb[0].mxu0 %v1004
      %v1981 = vpop.f32.mrb[0].mxu0
      %v1982 = vadd.f32 0.0, %v1981
      %v1983 = vpop.f32.mrb[0].mxu0
      %v1984 = vadd.f32 0.0, %v1983
      %v1985 = vpop.f32.mrb[0].mxu0
      %v1986 = vadd.f32 0.0, %v1985
      %v1987 = vpop.f32.mrb[0].mxu0
      %v1988 = vadd.f32 0.0, %v1987
      %1989 = vmatprep.mubr.bf16.mxu0 0
      %1990 = vmatmul.mubr.bf16.gmra.mrb[0].mxu0 %v1007
      %v1991 = vpop.f32.mrb[0].mxu0
      %v1992 = vadd.f32 0.0, %v1991
      %v1993 = vpop.f32.mrb[0].mxu0
      %v1994 = vadd.f32 0.0, %v1993
      %v1995 = vpop.f32.mrb[0].mxu0
      %v1996 = vadd.f32 0.0, %v1995
      %v1997 = vpop.f32.mrb[0].mxu0
      %v1998 = vadd.f32 0.0, %v1997
      %1999 = vmatprep.mubr.bf16.mxu0 0
      %2000 = vmatmul.mubr.bf16.gmra.mrb[0].mxu0 %v1010
      %v2001 = vpop.f32.mrb[0].mxu0
      %v2002 = vadd.f32 0.0, %v2001
      %v2003 = vpop.f32.mrb[0].mxu0
      %v2004 = vadd.f32 0.0, %v2003
      %v2005 = vpop.f32.mrb[0].mxu0
      %v2006 = vadd.f32 0.0, %v2005
      %v2007 = vpop.f32.mrb[0].mxu0
      %v2008 = vadd.f32 0.0, %v2007
      %2009 = vmatprep.mubr.bf16.mxu0 0
      %2010 = vmatmul.mubr.bf16.gmra.mrb[0].mxu0 %v1013
      %v2011 = vpop.f32.mrb[0].mxu0
      %v2012 = vadd.f32 0.0, %v2011
      %v2013 = vpop.f32.mrb[0].mxu0
      %v2014 = vadd.f32 0.0, %v2013
      %v2015 = vpop.f32.mrb[0].mxu0
      %v2016 = vadd.f32 0.0, %v2015
      %v2017 = vpop.f32.mrb[0].mxu0
      %v2018 = vadd.f32 0.0, %v2017
      %2019 = vmatprep.mubr.bf16.mxu0 0
      %2020 = vmatmul.mubr.bf16.gmra.mrb[0].mxu0 %v1016
      %v2021 = vpop.f32.mrb[0].mxu0
      %v2022 = vadd.f32 0.0, %v2021
      %v2023 = vpop.f32.mrb[0].mxu0
      %v2024 = vadd.f32 0.0, %v2023
      %v2025 = vpop.f32.mrb[0].mxu0
      %v2026 = vadd.f32 0.0, %v2025
      %v2027 = vpop.f32.mrb[0].mxu0
      %v2028 = vadd.f32 0.0, %v2027
      %2029 = vmatprep.mubr.bf16.mxu0 0
      %2030 = vmatmul.mubr.bf16.gmra.mrb[0].mxu0 %v1265
      %v2031 = vpop.f32.mrb[0].mxu0
      %v2032 = vadd.f32 0.0, %v2031
      %v2033 = vpop.f32.mrb[0].mxu0
      %v2034 = vadd.f32 0.0, %v2033
      %v2035 = vpop.f32.mrb[0].mxu0
      %v2036 = vadd.f32 0.0, %v2035
      %v2037 = vpop.f32.mrb[0].mxu0
      %v2038 = vadd.f32 0.0, %v2037
      %2039 = vmatprep.mubr.bf16.mxu0 0
      %2040 = vmatmul.mubr.bf16.gmra.mrb[0].mxu0 %v1875
      %v2041 = vpop.f32.mrb[0].mxu0
      %v2042 = vadd.f32 0.0, %v2041
      %v2043 = vpop.f32.mrb[0].mxu0
      %v2044 = vadd.f32 0.0, %v2043
      %v2045 = vpop.f32.mrb[0].mxu0
      %v2046 = vadd.f32 0.0, %v2045
      %v2047 = vpop.f32.mrb[0].mxu0
      %v2048 = vadd.f32 0.0, %v2047
      %2049 = vdwg.mxu0
      %v2050 = vadd.f32 %v1745, %v1912
      %v2051 = vadd.f32 %v1746, %v1914
      %v2052 = vadd.f32 %v1747, %v1916
      %v2053 = vadd.f32 %v1748, %v1918
      %v2054 = vadd.f32 %v1749, %v1922
      %v2055 = vadd.f32 %v1750, %v1924
      %v2056 = vadd.f32 %v1751, %v1926
      %v2057 = vadd.f32 %v1752, %v1928
      %v2058 = vadd.f32 %v1753, %v1932
      %v2059 = vadd.f32 %v1754, %v1934
      %v2060 = vadd.f32 %v1755, %v1936
      %v2061 = vadd.f32 %v1756, %v1938
      %v2062 = vadd.f32 %v1757, %v1942
      %v2063 = vadd.f32 %v1758, %v1944
      %v2064 = vadd.f32 %v1759, %v1946
      %v2065 = vadd.f32 %v1760, %v1948
      %v2066 = vadd.f32 %v1761, %v1952
      %v2067 = vadd.f32 %v1762, %v1954
      %v2068 = vadd.f32 %v1763, %v1956
      %v2069 = vadd.f32 %v1764, %v1958
      %v2070 = vadd.f32 %v1765, %v1962
      %v2071 = vadd.f32 %v1766, %v1964
      %v2072 = vadd.f32 %v1767, %v1966
      %v2073 = vadd.f32 %v1768, %v1968
      %v2074 = vadd.f32 %v1769, %v1972
      %v2075 = vadd.f32 %v1770, %v1974
      %v2076 = vadd.f32 %v1771, %v1976
      %v2077 = vadd.f32 %v1772, %v1978
      %v2078 = vadd.f32 %v1773, %v1982
      %v2079 = vadd.f32 %v1774, %v1984
      %v2080 = vadd.f32 %v1775, %v1986
      %v2081 = vadd.f32 %v1776, %v1988
      %v2082 = vadd.f32 %v1777, %v1992
      %v2083 = vadd.f32 %v1778, %v1994
      %v2084 = vadd.f32 %v1779, %v1996
      %v2085 = vadd.f32 %v1780, %v1998
      %v2086 = vadd.f32 %v1781, %v2002
      %v2087 = vadd.f32 %v1782, %v2004
      %v2088 = vadd.f32 %v1783, %v2006
      %v2089 = vadd.f32 %v1784, %v2008
      %v2090 = vadd.f32 %v1785, %v2012
      %v2091 = vadd.f32 %v1786, %v2014
      %v2092 = vadd.f32 %v1787, %v2016
      %v2093 = vadd.f32 %v1788, %v2018
      %v2094 = vadd.f32 %v1789, %v2022
      %v2095 = vadd.f32 %v1790, %v2024
      %v2096 = vadd.f32 %v1791, %v2026
      %v2097 = vadd.f32 %v1792, %v2028
      %v2098 = vadd.f32 %v1793, %v2032
      %v2099 = vadd.f32 %v1794, %v2034
      %v2100 = vadd.f32 %v1795, %v2036
      %v2101 = vadd.f32 %v1796, %v2038
      %v2102 = vadd.f32 %v1797, %v2042
      %v2103 = vadd.f32 %v1798, %v2044
      %v2104 = vadd.f32 %v1799, %v2046
      %v2105 = vadd.f32 %v1800, %v2048
      %2106 = vmatprep.subr.bf16.mxu0 %v677
      %2107 = vmatpush1.bf16.msra.mxu0 %v676
      %2108 = vmatprep.subr.bf16.mxu0 %v679
      %2109 = vmatpush1.bf16.msra.mxu0 %v678
      %2110 = vmatprep.subr.bf16.mxu0 %v681
      %2111 = vmatpush1.bf16.msra.mxu0 %v680
      %2112 = vmatprep.subr.bf16.mxu0 %v683
      %2113 = vmatpush1.bf16.msra.mxu0 %v682
      %2114 = vmatprep.subr.bf16.mxu0 %v685
      %2115 = vmatpush1.bf16.msra.mxu0 %v684
      %2116 = vmatprep.subr.bf16.mxu0 %v687
      %2117 = vmatpush1.bf16.msra.mxu0 %v686
      %2118 = vmatprep.subr.bf16.mxu0 0
      %2119 = vmatpush1.bf16.msra.mxu0 0
      %2120 = vmatprep.subr.bf16.mxu0 0
      %2121 = vmatpush1.bf16.msra.mxu0 0
      %2122 = vmatprep.subr.bf16.mxu0 0
      %2123 = vmatpush1.bf16.msra.mxu0 0
      %2124 = vmatprep.subr.bf16.mxu0 0
      %2125 = vmatpush1.bf16.msra.mxu0 0
      %2126 = vmatprep.subr.bf16.mxu0 0
      %2127 = vmatpush1.bf16.msra.mxu0 0
      %2128 = vmatprep.subr.bf16.mxu0 0
      %2129 = vmatpush1.bf16.msra.mxu0 0
      %2130 = vmatprep.subr.bf16.mxu0 0
      %2131 = vmatpush1.bf16.msra.mxu0 0
      %2132 = vmatprep.subr.bf16.mxu0 0
      %2133 = vmatpush1.bf16.msra.mxu0 0
      %2134 = vmatprep.subr.bf16.mxu0 0
      %2135 = vmatpush1.bf16.msra.mxu0 0
      %2136 = vmatprep.subr.bf16.mxu0 0
      %2137 = vmatpush1.bf16.msra.mxu0 0
      %2138 = vmatprep.mubr.bf16.mxu0 0
      %2139 = vmatmul.mubr.bf16.gmra.mrb[0].mxu0 %v980
      %v2140 = vpop.f32.mrb[0].mxu0
      %v2141 = vadd.f32 0.0, %v2140
      %v2142 = vpop.f32.mrb[0].mxu0
      %v2143 = vadd.f32 0.0, %v2142
      %v2144 = vpop.f32.mrb[0].mxu0
      %v2145 = vadd.f32 0.0, %v2144
      %v2146 = vpop.f32.mrb[0].mxu0
      %v2147 = vadd.f32 0.0, %v2146
      %2148 = vmatprep.mubr.bf16.mxu0 0
      %2149 = vmatmul.mubr.bf16.gmra.mrb[0].mxu0 %v983
      %v2150 = vpop.f32.mrb[0].mxu0
      %v2151 = vadd.f32 0.0, %v2150
      %v2152 = vpop.f32.mrb[0].mxu0
      %v2153 = vadd.f32 0.0, %v2152
      %v2154 = vpop.f32.mrb[0].mxu0
      %v2155 = vadd.f32 0.0, %v2154
      %v2156 = vpop.f32.mrb[0].mxu0
      %v2157 = vadd.f32 0.0, %v2156
      %2158 = vmatprep.mubr.bf16.mxu0 0
      %2159 = vmatmul.mubr.bf16.gmra.mrb[0].mxu0 %v986
      %v2160 = vpop.f32.mrb[0].mxu0
      %v2161 = vadd.f32 0.0, %v2160
      %v2162 = vpop.f32.mrb[0].mxu0
      %v2163 = vadd.f32 0.0, %v2162
      %v2164 = vpop.f32.mrb[0].mxu0
      %v2165 = vadd.f32 0.0, %v2164
      %v2166 = vpop.f32.mrb[0].mxu0
      %v2167 = vadd.f32 0.0, %v2166
      %2168 = vmatprep.mubr.bf16.mxu0 0
      %2169 = vmatmul.mubr.bf16.gmra.mrb[0].mxu0 %v989
      %v2170 = vpop.f32.mrb[0].mxu0
      %v2171 = vadd.f32 0.0, %v2170
      %v2172 = vpop.f32.mrb[0].mxu0
      %v2173 = vadd.f32 0.0, %v2172
      %v2174 = vpop.f32.mrb[0].mxu0
      %v2175 = vadd.f32 0.0, %v2174
      %v2176 = vpop.f32.mrb[0].mxu0
      %v2177 = vadd.f32 0.0, %v2176
      %2178 = vmatprep.mubr.bf16.mxu0 0
      %2179 = vmatmul.mubr.bf16.gmra.mrb[0].mxu0 %v992
      %v2180 = vpop.f32.mrb[0].mxu0
      %v2181 = vadd.f32 0.0, %v2180
      %v2182 = vpop.f32.mrb[0].mxu0
      %v2183 = vadd.f32 0.0, %v2182
      %v2184 = vpop.f32.mrb[0].mxu0
      %v2185 = vadd.f32 0.0, %v2184
      %v2186 = vpop.f32.mrb[0].mxu0
      %v2187 = vadd.f32 0.0, %v2186
      %2188 = vmatprep.mubr.bf16.mxu0 0
      %2189 = vmatmul.mubr.bf16.gmra.mrb[0].mxu0 %v995
      %v2190 = vpop.f32.mrb[0].mxu0
      %v2191 = vadd.f32 0.0, %v2190
      %v2192 = vpop.f32.mrb[0].mxu0
      %v2193 = vadd.f32 0.0, %v2192
      %v2194 = vpop.f32.mrb[0].mxu0
      %v2195 = vadd.f32 0.0, %v2194
      %v2196 = vpop.f32.mrb[0].mxu0
      %v2197 = vadd.f32 0.0, %v2196
      %2198 = vmatprep.mubr.bf16.mxu0 0
      %2199 = vmatmul.mubr.bf16.gmra.mrb[0].mxu0 %v998
      %v2200 = vpop.f32.mrb[0].mxu0
      %v2201 = vadd.f32 0.0, %v2200
      %v2202 = vpop.f32.mrb[0].mxu0
      %v2203 = vadd.f32 0.0, %v2202
      %v2204 = vpop.f32.mrb[0].mxu0
      %v2205 = vadd.f32 0.0, %v2204
      %v2206 = vpop.f32.mrb[0].mxu0
      %v2207 = vadd.f32 0.0, %v2206
      %2208 = vmatprep.mubr.bf16.mxu0 0
      %2209 = vmatmul.mubr.bf16.gmra.mrb[0].mxu0 %v1001
      %v2210 = vpop.f32.mrb[0].mxu0
      %v2211 = vadd.f32 0.0, %v2210
      %v2212 = vpop.f32.mrb[0].mxu0
      %v2213 = vadd.f32 0.0, %v2212
      %v2214 = vpop.f32.mrb[0].mxu0
      %v2215 = vadd.f32 0.0, %v2214
      %v2216 = vpop.f32.mrb[0].mxu0
      %v2217 = vadd.f32 0.0, %v2216
      %2218 = vmatprep.mubr.bf16.mxu0 0
      %2219 = vmatmul.mubr.bf16.gmra.mrb[0].mxu0 %v1004
      %v2220 = vpop.f32.mrb[0].mxu0
      %v2221 = vadd.f32 0.0, %v2220
      %v2222 = vpop.f32.mrb[0].mxu0
      %v2223 = vadd.f32 0.0, %v2222
      %v2224 = vpop.f32.mrb[0].mxu0
      %v2225 = vadd.f32 0.0, %v2224
      %v2226 = vpop.f32.mrb[0].mxu0
      %v2227 = vadd.f32 0.0, %v2226
      %2228 = vmatprep.mubr.bf16.mxu0 0
      %2229 = vmatmul.mubr.bf16.gmra.mrb[0].mxu0 %v1007
      %v2230 = vpop.f32.mrb[0].mxu0
      %v2231 = vadd.f32 0.0, %v2230
      %v2232 = vpop.f32.mrb[0].mxu0
      %v2233 = vadd.f32 0.0, %v2232
      %v2234 = vpop.f32.mrb[0].mxu0
      %v2235 = vadd.f32 0.0, %v2234
      %v2236 = vpop.f32.mrb[0].mxu0
      %v2237 = vadd.f32 0.0, %v2236
      %2238 = vmatprep.mubr.bf16.mxu0 0
      %2239 = vmatmul.mubr.bf16.gmra.mrb[0].mxu0 %v1010
      %v2240 = vpop.f32.mrb[0].mxu0
      %v2241 = vadd.f32 0.0, %v2240
      %v2242 = vpop.f32.mrb[0].mxu0
      %v2243 = vadd.f32 0.0, %v2242
      %v2244 = vpop.f32.mrb[0].mxu0
      %v2245 = vadd.f32 0.0, %v2244
      %v2246 = vpop.f32.mrb[0].mxu0
      %v2247 = vadd.f32 0.0, %v2246
      %2248 = vmatprep.mubr.bf16.mxu0 0
      %2249 = vmatmul.mubr.bf16.gmra.mrb[0].mxu0 %v1013
      %v2250 = vpop.f32.mrb[0].mxu0
      %v2251 = vadd.f32 0.0, %v2250
      %v2252 = vpop.f32.mrb[0].mxu0
      %v2253 = vadd.f32 0.0, %v2252
      %v2254 = vpop.f32.mrb[0].mxu0
      %v2255 = vadd.f32 0.0, %v2254
      %v2256 = vpop.f32.mrb[0].mxu0
      %v2257 = vadd.f32 0.0, %v2256
      %2258 = vmatprep.mubr.bf16.mxu0 0
      %2259 = vmatmul.mubr.bf16.gmra.mrb[0].mxu0 %v1016
      %v2260 = vpop.f32.mrb[0].mxu0
      %v2261 = vadd.f32 0.0, %v2260
      %v2262 = vpop.f32.mrb[0].mxu0
      %v2263 = vadd.f32 0.0, %v2262
      %v2264 = vpop.f32.mrb[0].mxu0
      %v2265 = vadd.f32 0.0, %v2264
      %v2266 = vpop.f32.mrb[0].mxu0
      %v2267 = vadd.f32 0.0, %v2266
      %2268 = vmatprep.mubr.bf16.mxu0 0
      %2269 = vmatmul.mubr.bf16.gmra.mrb[0].mxu0 %v1265
      %v2270 = vpop.f32.mrb[0].mxu0
      %v2271 = vadd.f32 0.0, %v2270
      %v2272 = vpop.f32.mrb[0].mxu0
      %v2273 = vadd.f32 0.0, %v2272
      %v2274 = vpop.f32.mrb[0].mxu0
      %v2275 = vadd.f32 0.0, %v2274
      %v2276 = vpop.f32.mrb[0].mxu0
      %v2277 = vadd.f32 0.0, %v2276
      %2278 = vdwg.mxu0
      %2279 = vmatprep.subr.bf16.mxu0 %v953
      %2280 = vmatpush1.bf16.msra.mxu0 %v952
      %2281 = vmatprep.subr.bf16.mxu0 %v955
      %2282 = vmatpush1.bf16.msra.mxu0 %v954
      %2283 = vmatprep.subr.bf16.mxu0 %v957
      %2284 = vmatpush1.bf16.msra.mxu0 %v956
      %2285 = vmatprep.subr.bf16.mxu0 %v959
      %2286 = vmatpush1.bf16.msra.mxu0 %v958
      %2287 = vmatprep.subr.bf16.mxu0 %v961
      %2288 = vmatpush1.bf16.msra.mxu0 %v960
      %2289 = vmatprep.subr.bf16.mxu0 %v963
      %2290 = vmatpush1.bf16.msra.mxu0 %v962
      %2291 = vmatprep.subr.bf16.mxu0 0
      %2292 = vmatpush1.bf16.msra.mxu0 0
      %2293 = vmatprep.subr.bf16.mxu0 0
      %2294 = vmatpush1.bf16.msra.mxu0 0
      %2295 = vmatprep.subr.bf16.mxu0 0
      %2296 = vmatpush1.bf16.msra.mxu0 0
      %2297 = vmatprep.subr.bf16.mxu0 0
      %2298 = vmatpush1.bf16.msra.mxu0 0
      %2299 = vmatprep.subr.bf16.mxu0 0
      %2300 = vmatpush1.bf16.msra.mxu0 0
      %2301 = vmatprep.subr.bf16.mxu0 0
      %2302 = vmatpush1.bf16.msra.mxu0 0
      %2303 = vmatprep.subr.bf16.mxu0 0
      %2304 = vmatpush1.bf16.msra.mxu0 0
      %2305 = vmatprep.subr.bf16.mxu0 0
      %2306 = vmatpush1.bf16.msra.mxu0 0
      %2307 = vmatprep.subr.bf16.mxu0 0
      %2308 = vmatpush1.bf16.msra.mxu0 0
      %2309 = vmatprep.subr.bf16.mxu0 0
      %2310 = vmatpush1.bf16.msra.mxu0 0
      %2311 = vmatprep.mubr.bf16.mxu0 0
      %2312 = vmatmul.mubr.bf16.gmra.mrb[0].mxu0 %v702
      %v2313 = vpop.f32.mrb[0].mxu0
      %v2314 = vadd.f32 %v2141, %v2313
      %v2315 = vpop.f32.mrb[0].mxu0
      %v2316 = vadd.f32 %v2143, %v2315
      %v2317 = vpop.f32.mrb[0].mxu0
      %v2318 = vadd.f32 %v2145, %v2317
      %v2319 = vpop.f32.mrb[0].mxu0
      %v2320 = vadd.f32 %v2147, %v2319
      %2321 = vmatprep.mubr.bf16.mxu0 0
      %2322 = vmatmul.mubr.bf16.gmra.mrb[0].mxu0 %v705
      %v2323 = vpop.f32.mrb[0].mxu0
      %v2324 = vadd.f32 %v2151, %v2323
      %v2325 = vpop.f32.mrb[0].mxu0
      %v2326 = vadd.f32 %v2153, %v2325
      %v2327 = vpop.f32.mrb[0].mxu0
      %v2328 = vadd.f32 %v2155, %v2327
      %v2329 = vpop.f32.mrb[0].mxu0
      %v2330 = vadd.f32 %v2157, %v2329
      %2331 = vmatprep.mubr.bf16.mxu0 0
      %2332 = vmatmul.mubr.bf16.gmra.mrb[0].mxu0 %v708
      %v2333 = vpop.f32.mrb[0].mxu0
      %v2334 = vadd.f32 %v2161, %v2333
      %v2335 = vpop.f32.mrb[0].mxu0
      %v2336 = vadd.f32 %v2163, %v2335
      %v2337 = vpop.f32.mrb[0].mxu0
      %v2338 = vadd.f32 %v2165, %v2337
      %v2339 = vpop.f32.mrb[0].mxu0
      %v2340 = vadd.f32 %v2167, %v2339
      %2341 = vmatprep.mubr.bf16.mxu0 0
      %2342 = vmatmul.mubr.bf16.gmra.mrb[0].mxu0 %v711
      %v2343 = vpop.f32.mrb[0].mxu0
      %v2344 = vadd.f32 %v2171, %v2343
      %v2345 = vpop.f32.mrb[0].mxu0
      %v2346 = vadd.f32 %v2173, %v2345
      %v2347 = vpop.f32.mrb[0].mxu0
      %v2348 = vadd.f32 %v2175, %v2347
      %v2349 = vpop.f32.mrb[0].mxu0
      %v2350 = vadd.f32 %v2177, %v2349
      %2351 = vmatprep.mubr.bf16.mxu0 0
      %2352 = vmatmul.mubr.bf16.gmra.mrb[0].mxu0 %v714
      %v2353 = vpop.f32.mrb[0].mxu0
      %v2354 = vadd.f32 %v2181, %v2353
      %v2355 = vpop.f32.mrb[0].mxu0
      %v2356 = vadd.f32 %v2183, %v2355
      %v2357 = vpop.f32.mrb[0].mxu0
      %v2358 = vadd.f32 %v2185, %v2357
      %v2359 = vpop.f32.mrb[0].mxu0
      %v2360 = vadd.f32 %v2187, %v2359
      %2361 = vmatprep.mubr.bf16.mxu0 0
      %2362 = vmatmul.mubr.bf16.gmra.mrb[0].mxu0 %v717
      %v2363 = vpop.f32.mrb[0].mxu0
      %v2364 = vadd.f32 %v2191, %v2363
      %v2365 = vpop.f32.mrb[0].mxu0
      %v2366 = vadd.f32 %v2193, %v2365
      %v2367 = vpop.f32.mrb[0].mxu0
      %v2368 = vadd.f32 %v2195, %v2367
      %v2369 = vpop.f32.mrb[0].mxu0
      %v2370 = vadd.f32 %v2197, %v2369
      %2371 = vmatprep.mubr.bf16.mxu0 0
      %2372 = vmatmul.mubr.bf16.gmra.mrb[0].mxu0 %v720
      %v2373 = vpop.f32.mrb[0].mxu0
      %v2374 = vadd.f32 %v2201, %v2373
      %v2375 = vpop.f32.mrb[0].mxu0
      %v2376 = vadd.f32 %v2203, %v2375
      %v2377 = vpop.f32.mrb[0].mxu0
      %v2378 = vadd.f32 %v2205, %v2377
      %v2379 = vpop.f32.mrb[0].mxu0
      %v2380 = vadd.f32 %v2207, %v2379
      %2381 = vmatprep.mubr.bf16.mxu0 0
      %2382 = vmatmul.mubr.bf16.gmra.mrb[0].mxu0 %v723
      %v2383 = vpop.f32.mrb[0].mxu0
      %v2384 = vadd.f32 %v2211, %v2383
      %v2385 = vpop.f32.mrb[0].mxu0
      %v2386 = vadd.f32 %v2213, %v2385
      %v2387 = vpop.f32.mrb[0].mxu0
      %v2388 = vadd.f32 %v2215, %v2387
      %v2389 = vpop.f32.mrb[0].mxu0
      %v2390 = vadd.f32 %v2217, %v2389
      %2391 = vmatprep.mubr.bf16.mxu0 0
      %2392 = vmatmul.mubr.bf16.gmra.mrb[0].mxu0 %v726
      %v2393 = vpop.f32.mrb[0].mxu0
      %v2394 = vadd.f32 %v2221, %v2393
      %v2395 = vpop.f32.mrb[0].mxu0
      %v2396 = vadd.f32 %v2223, %v2395
      %v2397 = vpop.f32.mrb[0].mxu0
      %v2398 = vadd.f32 %v2225, %v2397
      %v2399 = vpop.f32.mrb[0].mxu0
      %v2400 = vadd.f32 %v2227, %v2399
      %2401 = vmatprep.mubr.bf16.mxu0 0
      %2402 = vmatmul.mubr.bf16.gmra.mrb[0].mxu0 %v729
      %v2403 = vpop.f32.mrb[0].mxu0
      %v2404 = vadd.f32 %v2231, %v2403
      %v2405 = vpop.f32.mrb[0].mxu0
      %v2406 = vadd.f32 %v2233, %v2405
      %v2407 = vpop.f32.mrb[0].mxu0
      %v2408 = vadd.f32 %v2235, %v2407
      %v2409 = vpop.f32.mrb[0].mxu0
      %v2410 = vadd.f32 %v2237, %v2409
      %2411 = vmatprep.mubr.bf16.mxu0 0
      %2412 = vmatmul.mubr.bf16.gmra.mrb[0].mxu0 %v732
      %v2413 = vpop.f32.mrb[0].mxu0
      %v2414 = vadd.f32 %v2241, %v2413
      %v2415 = vpop.f32.mrb[0].mxu0
      %v2416 = vadd.f32 %v2243, %v2415
      %v2417 = vpop.f32.mrb[0].mxu0
      %v2418 = vadd.f32 %v2245, %v2417
      %v2419 = vpop.f32.mrb[0].mxu0
      %v2420 = vadd.f32 %v2247, %v2419
      %2421 = vmatprep.mubr.bf16.mxu0 0
      %2422 = vmatmul.mubr.bf16.gmra.mrb[0].mxu0 %v735
      %v2423 = vpop.f32.mrb[0].mxu0
      %v2424 = vadd.f32 %v2251, %v2423
      %v2425 = vpop.f32.mrb[0].mxu0
      %v2426 = vadd.f32 %v2253, %v2425
      %v2427 = vpop.f32.mrb[0].mxu0
      %v2428 = vadd.f32 %v2255, %v2427
      %v2429 = vpop.f32.mrb[0].mxu0
      %v2430 = vadd.f32 %v2257, %v2429
      %2431 = vmatprep.mubr.bf16.mxu0 0
      %2432 = vmatmul.mubr.bf16.gmra.mrb[0].mxu0 %v738
      %v2433 = vpop.f32.mrb[0].mxu0
      %v2434 = vadd.f32 %v2261, %v2433
      %v2435 = vpop.f32.mrb[0].mxu0
      %v2436 = vadd.f32 %v2263, %v2435
      %v2437 = vpop.f32.mrb[0].mxu0
      %v2438 = vadd.f32 %v2265, %v2437
      %v2439 = vpop.f32.mrb[0].mxu0
      %v2440 = vadd.f32 %v2267, %v2439
      %2441 = vmatprep.mubr.bf16.mxu0 0
      %2442 = vmatmul.mubr.bf16.gmra.mrb[0].mxu0 %v741
      %v2443 = vpop.f32.mrb[0].mxu0
      %v2444 = vadd.f32 %v2271, %v2443
      %v2445 = vpop.f32.mrb[0].mxu0
      %v2446 = vadd.f32 %v2273, %v2445
      %v2447 = vpop.f32.mrb[0].mxu0
      %v2448 = vadd.f32 %v2275, %v2447
      %v2449 = vpop.f32.mrb[0].mxu0
      %v2450 = vadd.f32 %v2277, %v2449
      %2451 = vdwg.mxu0
      %2452 = vmatprep.subr.bf16.mxu0 %v1241
      %2453 = vmatpush1.bf16.msra.mxu0 %v1240
      %2454 = vmatprep.subr.bf16.mxu0 %v1243
      %2455 = vmatpush1.bf16.msra.mxu0 %v1242
      %2456 = vmatprep.subr.bf16.mxu0 %v1245
      %2457 = vmatpush1.bf16.msra.mxu0 %v1244
      %2458 = vmatprep.subr.bf16.mxu0 %v1247
      %2459 = vmatpush1.bf16.msra.mxu0 %v1246
      %2460 = vmatprep.subr.bf16.mxu0 %v1249
      %2461 = vmatpush1.bf16.msra.mxu0 %v1248
      %2462 = vmatprep.subr.bf16.mxu0 %v1251
      %2463 = vmatpush1.bf16.msra.mxu0 %v1250
      %2464 = vmatprep.subr.bf16.mxu0 0
      %2465 = vmatpush1.bf16.msra.mxu0 0
      %2466 = vmatprep.subr.bf16.mxu0 0
      %2467 = vmatpush1.bf16.msra.mxu0 0
      %2468 = vmatprep.subr.bf16.mxu0 0
      %2469 = vmatpush1.bf16.msra.mxu0 0
      %2470 = vmatprep.subr.bf16.mxu0 0
      %2471 = vmatpush1.bf16.msra.mxu0 0
      %2472 = vmatprep.subr.bf16.mxu0 0
      %2473 = vmatpush1.bf16.msra.mxu0 0
      %2474 = vmatprep.subr.bf16.mxu0 0
      %2475 = vmatpush1.bf16.msra.mxu0 0
      %2476 = vmatprep.subr.bf16.mxu0 0
      %2477 = vmatpush1.bf16.msra.mxu0 0
      %2478 = vmatprep.subr.bf16.mxu0 0
      %2479 = vmatpush1.bf16.msra.mxu0 0
      %2480 = vmatprep.subr.bf16.mxu0 0
      %2481 = vmatpush1.bf16.msra.mxu0 0
      %2482 = vmatprep.subr.bf16.mxu0 0
      %2483 = vmatpush1.bf16.msra.mxu0 0
      %2484 = vmatprep.mubr.bf16.mxu0 0
      %2485 = vmatmul.mubr.bf16.gmra.mrb[0].mxu0 %v705
      %v2486 = vpop.f32.mrb[0].mxu0
      %v2487 = vadd.f32 0.0, %v2486
      %v2488 = vpop.f32.mrb[0].mxu0
      %v2489 = vadd.f32 0.0, %v2488
      %v2490 = vpop.f32.mrb[0].mxu0
      %v2491 = vadd.f32 0.0, %v2490
      %v2492 = vpop.f32.mrb[0].mxu0
      %v2493 = vadd.f32 0.0, %v2492
      %2494 = vmatprep.mubr.bf16.mxu0 0
      %2495 = vmatmul.mubr.bf16.gmra.mrb[0].mxu0 %v708
      %v2496 = vpop.f32.mrb[0].mxu0
      %v2497 = vadd.f32 0.0, %v2496
      %v2498 = vpop.f32.mrb[0].mxu0
      %v2499 = vadd.f32 0.0, %v2498
      %v2500 = vpop.f32.mrb[0].mxu0
      %v2501 = vadd.f32 0.0, %v2500
      %v2502 = vpop.f32.mrb[0].mxu0
      %v2503 = vadd.f32 0.0, %v2502
      %2504 = vmatprep.mubr.bf16.mxu0 0
      %2505 = vmatmul.mubr.bf16.gmra.mrb[0].mxu0 %v711
      %v2506 = vpop.f32.mrb[0].mxu0
      %v2507 = vadd.f32 0.0, %v2506
      %v2508 = vpop.f32.mrb[0].mxu0
      %v2509 = vadd.f32 0.0, %v2508
      %v2510 = vpop.f32.mrb[0].mxu0
      %v2511 = vadd.f32 0.0, %v2510
      %v2512 = vpop.f32.mrb[0].mxu0
      %v2513 = vadd.f32 0.0, %v2512
      %2514 = vmatprep.mubr.bf16.mxu0 0
      %2515 = vmatmul.mubr.bf16.gmra.mrb[0].mxu0 %v714
      %v2516 = vpop.f32.mrb[0].mxu0
      %v2517 = vadd.f32 0.0, %v2516
      %v2518 = vpop.f32.mrb[0].mxu0
      %v2519 = vadd.f32 0.0, %v2518
      %v2520 = vpop.f32.mrb[0].mxu0
      %v2521 = vadd.f32 0.0, %v2520
      %v2522 = vpop.f32.mrb[0].mxu0
      %v2523 = vadd.f32 0.0, %v2522
      %2524 = vmatprep.mubr.bf16.mxu0 0
      %2525 = vmatmul.mubr.bf16.gmra.mrb[0].mxu0 %v717
      %v2526 = vpop.f32.mrb[0].mxu0
      %v2527 = vadd.f32 0.0, %v2526
      %v2528 = vpop.f32.mrb[0].mxu0
      %v2529 = vadd.f32 0.0, %v2528
      %v2530 = vpop.f32.mrb[0].mxu0
      %v2531 = vadd.f32 0.0, %v2530
      %v2532 = vpop.f32.mrb[0].mxu0
      %v2533 = vadd.f32 0.0, %v2532
      %2534 = vmatprep.mubr.bf16.mxu0 0
      %2535 = vmatmul.mubr.bf16.gmra.mrb[0].mxu0 %v720
      %v2536 = vpop.f32.mrb[0].mxu0
      %v2537 = vadd.f32 0.0, %v2536
      %v2538 = vpop.f32.mrb[0].mxu0
      %v2539 = vadd.f32 0.0, %v2538
      %v2540 = vpop.f32.mrb[0].mxu0
      %v2541 = vadd.f32 0.0, %v2540
      %v2542 = vpop.f32.mrb[0].mxu0
      %v2543 = vadd.f32 0.0, %v2542
      %2544 = vmatprep.mubr.bf16.mxu0 0
      %2545 = vmatmul.mubr.bf16.gmra.mrb[0].mxu0 %v723
      %v2546 = vpop.f32.mrb[0].mxu0
      %v2547 = vadd.f32 0.0, %v2546
      %v2548 = vpop.f32.mrb[0].mxu0
      %v2549 = vadd.f32 0.0, %v2548
      %v2550 = vpop.f32.mrb[0].mxu0
      %v2551 = vadd.f32 0.0, %v2550
      %v2552 = vpop.f32.mrb[0].mxu0
      %v2553 = vadd.f32 0.0, %v2552
      %2554 = vmatprep.mubr.bf16.mxu0 0
      %2555 = vmatmul.mubr.bf16.gmra.mrb[0].mxu0 %v726
      %v2556 = vpop.f32.mrb[0].mxu0
      %v2557 = vadd.f32 0.0, %v2556
      %v2558 = vpop.f32.mrb[0].mxu0
      %v2559 = vadd.f32 0.0, %v2558
      %v2560 = vpop.f32.mrb[0].mxu0
      %v2561 = vadd.f32 0.0, %v2560
      %v2562 = vpop.f32.mrb[0].mxu0
      %v2563 = vadd.f32 0.0, %v2562
      %2564 = vmatprep.mubr.bf16.mxu0 0
      %2565 = vmatmul.mubr.bf16.gmra.mrb[0].mxu0 %v729
      %v2566 = vpop.f32.mrb[0].mxu0
      %v2567 = vadd.f32 0.0, %v2566
      %v2568 = vpop.f32.mrb[0].mxu0
      %v2569 = vadd.f32 0.0, %v2568
      %v2570 = vpop.f32.mrb[0].mxu0
      %v2571 = vadd.f32 0.0, %v2570
      %v2572 = vpop.f32.mrb[0].mxu0
      %v2573 = vadd.f32 0.0, %v2572
      %2574 = vmatprep.mubr.bf16.mxu0 0
      %2575 = vmatmul.mubr.bf16.gmra.mrb[0].mxu0 %v732
      %v2576 = vpop.f32.mrb[0].mxu0
      %v2577 = vadd.f32 0.0, %v2576
      %v2578 = vpop.f32.mrb[0].mxu0
      %v2579 = vadd.f32 0.0, %v2578
      %v2580 = vpop.f32.mrb[0].mxu0
      %v2581 = vadd.f32 0.0, %v2580
      %v2582 = vpop.f32.mrb[0].mxu0
      %v2583 = vadd.f32 0.0, %v2582
      %2584 = vmatprep.mubr.bf16.mxu0 0
      %2585 = vmatmul.mubr.bf16.gmra.mrb[0].mxu0 %v735
      %v2586 = vpop.f32.mrb[0].mxu0
      %v2587 = vadd.f32 0.0, %v2586
      %v2588 = vpop.f32.mrb[0].mxu0
      %v2589 = vadd.f32 0.0, %v2588
      %v2590 = vpop.f32.mrb[0].mxu0
      %v2591 = vadd.f32 0.0, %v2590
      %v2592 = vpop.f32.mrb[0].mxu0
      %v2593 = vadd.f32 0.0, %v2592
      %2594 = vmatprep.mubr.bf16.mxu0 0
      %2595 = vmatmul.mubr.bf16.gmra.mrb[0].mxu0 %v738
      %v2596 = vpop.f32.mrb[0].mxu0
      %v2597 = vadd.f32 0.0, %v2596
      %v2598 = vpop.f32.mrb[0].mxu0
      %v2599 = vadd.f32 0.0, %v2598
      %v2600 = vpop.f32.mrb[0].mxu0
      %v2601 = vadd.f32 0.0, %v2600
      %v2602 = vpop.f32.mrb[0].mxu0
      %v2603 = vadd.f32 0.0, %v2602
      %2604 = vmatprep.mubr.bf16.mxu0 0
      %2605 = vmatmul.mubr.bf16.gmra.mrb[0].mxu0 %v741
      %v2606 = vpop.f32.mrb[0].mxu0
      %v2607 = vadd.f32 0.0, %v2606
      %v2608 = vpop.f32.mrb[0].mxu0
      %v2609 = vadd.f32 0.0, %v2608
      %v2610 = vpop.f32.mrb[0].mxu0
      %v2611 = vadd.f32 0.0, %v2610
      %v2612 = vpop.f32.mrb[0].mxu0
      %v2613 = vadd.f32 0.0, %v2612
      %2614 = vmatprep.mubr.bf16.mxu0 0
      %2615 = vmatmul.mubr.bf16.gmra.mrb[0].mxu0 %v1570
      %v2616 = vpop.f32.mrb[0].mxu0
      %v2617 = vadd.f32 0.0, %v2616
      %v2618 = vpop.f32.mrb[0].mxu0
      %v2619 = vadd.f32 0.0, %v2618
      %v2620 = vpop.f32.mrb[0].mxu0
      %v2621 = vadd.f32 0.0, %v2620
      %v2622 = vpop.f32.mrb[0].mxu0
      %v2623 = vadd.f32 0.0, %v2622
      %2624 = vdwg.mxu0
      %v2625 = vadd.f32 %v2314, %v2487
      %v2626 = vadd.f32 %v2316, %v2489
      %v2627 = vadd.f32 %v2318, %v2491
      %v2628 = vadd.f32 %v2320, %v2493
      %v2629 = vadd.f32 %v2324, %v2497
      %v2630 = vadd.f32 %v2326, %v2499
      %v2631 = vadd.f32 %v2328, %v2501
      %v2632 = vadd.f32 %v2330, %v2503
      %v2633 = vadd.f32 %v2334, %v2507
      %v2634 = vadd.f32 %v2336, %v2509
      %v2635 = vadd.f32 %v2338, %v2511
      %v2636 = vadd.f32 %v2340, %v2513
      %v2637 = vadd.f32 %v2344, %v2517
      %v2638 = vadd.f32 %v2346, %v2519
      %v2639 = vadd.f32 %v2348, %v2521
      %v2640 = vadd.f32 %v2350, %v2523
      %v2641 = vadd.f32 %v2354, %v2527
      %v2642 = vadd.f32 %v2356, %v2529
      %v2643 = vadd.f32 %v2358, %v2531
      %v2644 = vadd.f32 %v2360, %v2533
      %v2645 = vadd.f32 %v2364, %v2537
      %v2646 = vadd.f32 %v2366, %v2539
      %v2647 = vadd.f32 %v2368, %v2541
      %v2648 = vadd.f32 %v2370, %v2543
      %v2649 = vadd.f32 %v2374, %v2547
      %v2650 = vadd.f32 %v2376, %v2549
      %v2651 = vadd.f32 %v2378, %v2551
      %v2652 = vadd.f32 %v2380, %v2553
      %v2653 = vadd.f32 %v2384, %v2557
      %v2654 = vadd.f32 %v2386, %v2559
      %v2655 = vadd.f32 %v2388, %v2561
      %v2656 = vadd.f32 %v2390, %v2563
      %v2657 = vadd.f32 %v2394, %v2567
      %v2658 = vadd.f32 %v2396, %v2569
      %v2659 = vadd.f32 %v2398, %v2571
      %v2660 = vadd.f32 %v2400, %v2573
      %v2661 = vadd.f32 %v2404, %v2577
      %v2662 = vadd.f32 %v2406, %v2579
      %v2663 = vadd.f32 %v2408, %v2581
      %v2664 = vadd.f32 %v2410, %v2583
      %v2665 = vadd.f32 %v2414, %v2587
      %v2666 = vadd.f32 %v2416, %v2589
      %v2667 = vadd.f32 %v2418, %v2591
      %v2668 = vadd.f32 %v2420, %v2593
      %v2669 = vadd.f32 %v2424, %v2597
      %v2670 = vadd.f32 %v2426, %v2599
      %v2671 = vadd.f32 %v2428, %v2601
      %v2672 = vadd.f32 %v2430, %v2603
      %v2673 = vadd.f32 %v2434, %v2607
      %v2674 = vadd.f32 %v2436, %v2609
      %v2675 = vadd.f32 %v2438, %v2611
      %v2676 = vadd.f32 %v2440, %v2613
      %v2677 = vadd.f32 %v2444, %v2617
      %v2678 = vadd.f32 %v2446, %v2619
      %v2679 = vadd.f32 %v2448, %v2621
      %v2680 = vadd.f32 %v2450, %v2623
      %2681 = vmatprep.subr.bf16.mxu0 %v1546
      %2682 = vmatpush1.bf16.msra.mxu0 %v1545
      %2683 = vmatprep.subr.bf16.mxu0 %v1548
      %2684 = vmatpush1.bf16.msra.mxu0 %v1547
      %2685 = vmatprep.subr.bf16.mxu0 %v1550
      %2686 = vmatpush1.bf16.msra.mxu0 %v1549
      %2687 = vmatprep.subr.bf16.mxu0 %v1552
      %2688 = vmatpush1.bf16.msra.mxu0 %v1551
      %2689 = vmatprep.subr.bf16.mxu0 %v1554
      %2690 = vmatpush1.bf16.msra.mxu0 %v1553
      %2691 = vmatprep.subr.bf16.mxu0 %v1556
      %2692 = vmatpush1.bf16.msra.mxu0 %v1555
      %2693 = vmatprep.subr.bf16.mxu0 0
      %2694 = vmatpush1.bf16.msra.mxu0 0
      %2695 = vmatprep.subr.bf16.mxu0 0
      %2696 = vmatpush1.bf16.msra.mxu0 0
      %2697 = vmatprep.subr.bf16.mxu0 0
      %2698 = vmatpush1.bf16.msra.mxu0 0
      %2699 = vmatprep.subr.bf16.mxu0 0
      %2700 = vmatpush1.bf16.msra.mxu0 0
      %2701 = vmatprep.subr.bf16.mxu0 0
      %2702 = vmatpush1.bf16.msra.mxu0 0
      %2703 = vmatprep.subr.bf16.mxu0 0
      %2704 = vmatpush1.bf16.msra.mxu0 0
      %2705 = vmatprep.subr.bf16.mxu0 0
      %2706 = vmatpush1.bf16.msra.mxu0 0
      %2707 = vmatprep.subr.bf16.mxu0 0
      %2708 = vmatpush1.bf16.msra.mxu0 0
      %2709 = vmatprep.subr.bf16.mxu0 0
      %2710 = vmatpush1.bf16.msra.mxu0 0
      %2711 = vmatprep.subr.bf16.mxu0 0
      %2712 = vmatpush1.bf16.msra.mxu0 0
      %2713 = vmatprep.mubr.bf16.mxu0 0
      %2714 = vmatmul.mubr.bf16.gmra.mrb[0].mxu0 %v983
      %v2715 = vpop.f32.mrb[0].mxu0
      %v2716 = vadd.f32 0.0, %v2715
      %v2717 = vpop.f32.mrb[0].mxu0
      %v2718 = vadd.f32 0.0, %v2717
      %v2719 = vpop.f32.mrb[0].mxu0
      %v2720 = vadd.f32 0.0, %v2719
      %v2721 = vpop.f32.mrb[0].mxu0
      %v2722 = vadd.f32 0.0, %v2721
      %2723 = vmatprep.mubr.bf16.mxu0 0
      %2724 = vmatmul.mubr.bf16.gmra.mrb[0].mxu0 %v986
      %v2725 = vpop.f32.mrb[0].mxu0
      %v2726 = vadd.f32 0.0, %v2725
      %v2727 = vpop.f32.mrb[0].mxu0
      %v2728 = vadd.f32 0.0, %v2727
      %v2729 = vpop.f32.mrb[0].mxu0
      %v2730 = vadd.f32 0.0, %v2729
      %v2731 = vpop.f32.mrb[0].mxu0
      %v2732 = vadd.f32 0.0, %v2731
      %2733 = vmatprep.mubr.bf16.mxu0 0
      %2734 = vmatmul.mubr.bf16.gmra.mrb[0].mxu0 %v989
      %v2735 = vpop.f32.mrb[0].mxu0
      %v2736 = vadd.f32 0.0, %v2735
      %v2737 = vpop.f32.mrb[0].mxu0
      %v2738 = vadd.f32 0.0, %v2737
      %v2739 = vpop.f32.mrb[0].mxu0
      %v2740 = vadd.f32 0.0, %v2739
      %v2741 = vpop.f32.mrb[0].mxu0
      %v2742 = vadd.f32 0.0, %v2741
      %2743 = vmatprep.mubr.bf16.mxu0 0
      %2744 = vmatmul.mubr.bf16.gmra.mrb[0].mxu0 %v992
      %v2745 = vpop.f32.mrb[0].mxu0
      %v2746 = vadd.f32 0.0, %v2745
      %v2747 = vpop.f32.mrb[0].mxu0
      %v2748 = vadd.f32 0.0, %v2747
      %v2749 = vpop.f32.mrb[0].mxu0
      %v2750 = vadd.f32 0.0, %v2749
      %v2751 = vpop.f32.mrb[0].mxu0
      %v2752 = vadd.f32 0.0, %v2751
      %2753 = vmatprep.mubr.bf16.mxu0 0
      %2754 = vmatmul.mubr.bf16.gmra.mrb[0].mxu0 %v995
      %v2755 = vpop.f32.mrb[0].mxu0
      %v2756 = vadd.f32 0.0, %v2755
      %v2757 = vpop.f32.mrb[0].mxu0
      %v2758 = vadd.f32 0.0, %v2757
      %v2759 = vpop.f32.mrb[0].mxu0
      %v2760 = vadd.f32 0.0, %v2759
      %v2761 = vpop.f32.mrb[0].mxu0
      %v2762 = vadd.f32 0.0, %v2761
      %2763 = vmatprep.mubr.bf16.mxu0 0
      %2764 = vmatmul.mubr.bf16.gmra.mrb[0].mxu0 %v998
      %v2765 = vpop.f32.mrb[0].mxu0
      %v2766 = vadd.f32 0.0, %v2765
      %v2767 = vpop.f32.mrb[0].mxu0
      %v2768 = vadd.f32 0.0, %v2767
      %v2769 = vpop.f32.mrb[0].mxu0
      %v2770 = vadd.f32 0.0, %v2769
      %v2771 = vpop.f32.mrb[0].mxu0
      %v2772 = vadd.f32 0.0, %v2771
      %2773 = vmatprep.mubr.bf16.mxu0 0
      %2774 = vmatmul.mubr.bf16.gmra.mrb[0].mxu0 %v1001
      %v2775 = vpop.f32.mrb[0].mxu0
      %v2776 = vadd.f32 0.0, %v2775
      %v2777 = vpop.f32.mrb[0].mxu0
      %v2778 = vadd.f32 0.0, %v2777
      %v2779 = vpop.f32.mrb[0].mxu0
      %v2780 = vadd.f32 0.0, %v2779
      %v2781 = vpop.f32.mrb[0].mxu0
      %v2782 = vadd.f32 0.0, %v2781
      %2783 = vmatprep.mubr.bf16.mxu0 0
      %2784 = vmatmul.mubr.bf16.gmra.mrb[0].mxu0 %v1004
      %v2785 = vpop.f32.mrb[0].mxu0
      %v2786 = vadd.f32 0.0, %v2785
      %v2787 = vpop.f32.mrb[0].mxu0
      %v2788 = vadd.f32 0.0, %v2787
      %v2789 = vpop.f32.mrb[0].mxu0
      %v2790 = vadd.f32 0.0, %v2789
      %v2791 = vpop.f32.mrb[0].mxu0
      %v2792 = vadd.f32 0.0, %v2791
      %2793 = vmatprep.mubr.bf16.mxu0 0
      %2794 = vmatmul.mubr.bf16.gmra.mrb[0].mxu0 %v1007
      %v2795 = vpop.f32.mrb[0].mxu0
      %v2796 = vadd.f32 0.0, %v2795
      %v2797 = vpop.f32.mrb[0].mxu0
      %v2798 = vadd.f32 0.0, %v2797
      %v2799 = vpop.f32.mrb[0].mxu0
      %v2800 = vadd.f32 0.0, %v2799
      %v2801 = vpop.f32.mrb[0].mxu0
      %v2802 = vadd.f32 0.0, %v2801
      %2803 = vmatprep.mubr.bf16.mxu0 0
      %2804 = vmatmul.mubr.bf16.gmra.mrb[0].mxu0 %v1010
      %v2805 = vpop.f32.mrb[0].mxu0
      %v2806 = vadd.f32 0.0, %v2805
      %v2807 = vpop.f32.mrb[0].mxu0
      %v2808 = vadd.f32 0.0, %v2807
      %v2809 = vpop.f32.mrb[0].mxu0
      %v2810 = vadd.f32 0.0, %v2809
      %v2811 = vpop.f32.mrb[0].mxu0
      %v2812 = vadd.f32 0.0, %v2811
      %2813 = vmatprep.mubr.bf16.mxu0 0
      %2814 = vmatmul.mubr.bf16.gmra.mrb[0].mxu0 %v1013
      %v2815 = vpop.f32.mrb[0].mxu0
      %v2816 = vadd.f32 0.0, %v2815
      %v2817 = vpop.f32.mrb[0].mxu0
      %v2818 = vadd.f32 0.0, %v2817
      %v2819 = vpop.f32.mrb[0].mxu0
      %v2820 = vadd.f32 0.0, %v2819
      %v2821 = vpop.f32.mrb[0].mxu0
      %v2822 = vadd.f32 0.0, %v2821
      %2823 = vmatprep.mubr.bf16.mxu0 0
      %2824 = vmatmul.mubr.bf16.gmra.mrb[0].mxu0 %v1016
      %v2825 = vpop.f32.mrb[0].mxu0
      %v2826 = vadd.f32 0.0, %v2825
      %v2827 = vpop.f32.mrb[0].mxu0
      %v2828 = vadd.f32 0.0, %v2827
      %v2829 = vpop.f32.mrb[0].mxu0
      %v2830 = vadd.f32 0.0, %v2829
      %v2831 = vpop.f32.mrb[0].mxu0
      %v2832 = vadd.f32 0.0, %v2831
      %2833 = vmatprep.mubr.bf16.mxu0 0
      %2834 = vmatmul.mubr.bf16.gmra.mrb[0].mxu0 %v1265
      %v2835 = vpop.f32.mrb[0].mxu0
      %v2836 = vadd.f32 0.0, %v2835
      %v2837 = vpop.f32.mrb[0].mxu0
      %v2838 = vadd.f32 0.0, %v2837
      %v2839 = vpop.f32.mrb[0].mxu0
      %v2840 = vadd.f32 0.0, %v2839
      %v2841 = vpop.f32.mrb[0].mxu0
      %v2842 = vadd.f32 0.0, %v2841
      %2843 = vmatprep.mubr.bf16.mxu0 0
      %2844 = vmatmul.mubr.bf16.gmra.mrb[0].mxu0 %v1875
      %v2845 = vpop.f32.mrb[0].mxu0
      %v2846 = vadd.f32 0.0, %v2845
      %v2847 = vpop.f32.mrb[0].mxu0
      %v2848 = vadd.f32 0.0, %v2847
      %v2849 = vpop.f32.mrb[0].mxu0
      %v2850 = vadd.f32 0.0, %v2849
      %v2851 = vpop.f32.mrb[0].mxu0
      %v2852 = vadd.f32 0.0, %v2851
      %2853 = vdwg.mxu0
      %v2854 = vadd.f32 %v2625, %v2716
      %v2855 = vadd.f32 %v2626, %v2718
      %v2856 = vadd.f32 %v2627, %v2720
      %v2857 = vadd.f32 %v2628, %v2722
      %v2858 = vadd.f32 %v2629, %v2726
      %v2859 = vadd.f32 %v2630, %v2728
      %v2860 = vadd.f32 %v2631, %v2730
      %v2861 = vadd.f32 %v2632, %v2732
      %v2862 = vadd.f32 %v2633, %v2736
      %v2863 = vadd.f32 %v2634, %v2738
      %v2864 = vadd.f32 %v2635, %v2740
      %v2865 = vadd.f32 %v2636, %v2742
      %v2866 = vadd.f32 %v2637, %v2746
      %v2867 = vadd.f32 %v2638, %v2748
      %v2868 = vadd.f32 %v2639, %v2750
      %v2869 = vadd.f32 %v2640, %v2752
      %v2870 = vadd.f32 %v2641, %v2756
      %v2871 = vadd.f32 %v2642, %v2758
      %v2872 = vadd.f32 %v2643, %v2760
      %v2873 = vadd.f32 %v2644, %v2762
      %v2874 = vadd.f32 %v2645, %v2766
      %v2875 = vadd.f32 %v2646, %v2768
      %v2876 = vadd.f32 %v2647, %v2770
      %v2877 = vadd.f32 %v2648, %v2772
      %v2878 = vadd.f32 %v2649, %v2776
      %v2879 = vadd.f32 %v2650, %v2778
      %v2880 = vadd.f32 %v2651, %v2780
      %v2881 = vadd.f32 %v2652, %v2782
      %v2882 = vadd.f32 %v2653, %v2786
      %v2883 = vadd.f32 %v2654, %v2788
      %v2884 = vadd.f32 %v2655, %v2790
      %v2885 = vadd.f32 %v2656, %v2792
      %v2886 = vadd.f32 %v2657, %v2796
      %v2887 = vadd.f32 %v2658, %v2798
      %v2888 = vadd.f32 %v2659, %v2800
      %v2889 = vadd.f32 %v2660, %v2802
      %v2890 = vadd.f32 %v2661, %v2806
      %v2891 = vadd.f32 %v2662, %v2808
      %v2892 = vadd.f32 %v2663, %v2810
      %v2893 = vadd.f32 %v2664, %v2812
      %v2894 = vadd.f32 %v2665, %v2816
      %v2895 = vadd.f32 %v2666, %v2818
      %v2896 = vadd.f32 %v2667, %v2820
      %v2897 = vadd.f32 %v2668, %v2822
      %v2898 = vadd.f32 %v2669, %v2826
      %v2899 = vadd.f32 %v2670, %v2828
      %v2900 = vadd.f32 %v2671, %v2830
      %v2901 = vadd.f32 %v2672, %v2832
      %v2902 = vadd.f32 %v2673, %v2836
      %v2903 = vadd.f32 %v2674, %v2838
      %v2904 = vadd.f32 %v2675, %v2840
      %v2905 = vadd.f32 %v2676, %v2842
      %v2906 = vadd.f32 %v2677, %v2846
      %v2907 = vadd.f32 %v2678, %v2848
      %v2908 = vadd.f32 %v2679, %v2850
      %v2909 = vadd.f32 %v2680, %v2852
      %v2911 = vsel %vm700, %v614, 0
      %2913 = vmatprep.subr.bf16.mxu0 %v1851
      %2914 = vmatpush1.bf16.msra.mxu0 %v1850
      %2915 = vmatprep.subr.bf16.mxu0 %v1853
      %2916 = vmatpush1.bf16.msra.mxu0 %v1852
      %2917 = vmatprep.subr.bf16.mxu0 %v1855
      %2918 = vmatpush1.bf16.msra.mxu0 %v1854
      %2919 = vmatprep.subr.bf16.mxu0 %v1857
      %2920 = vmatpush1.bf16.msra.mxu0 %v1856
      %2921 = vmatprep.subr.bf16.mxu0 %v1859
      %2922 = vmatpush1.bf16.msra.mxu0 %v1858
      %2923 = vmatprep.subr.bf16.mxu0 %v1861
      %2924 = vmatpush1.bf16.msra.mxu0 %v1860
      %2925 = vmatprep.subr.bf16.mxu0 0
      %2926 = vmatpush1.bf16.msra.mxu0 0
      %2927 = vmatprep.subr.bf16.mxu0 0
      %2928 = vmatpush1.bf16.msra.mxu0 0
      %2929 = vmatprep.subr.bf16.mxu0 0
      %2930 = vmatpush1.bf16.msra.mxu0 0
      %2931 = vmatprep.subr.bf16.mxu0 0
      %2932 = vmatpush1.bf16.msra.mxu0 0
      %2933 = vmatprep.subr.bf16.mxu0 0
      %2934 = vmatpush1.bf16.msra.mxu0 0
      %2935 = vmatprep.subr.bf16.mxu0 0
      %2936 = vmatpush1.bf16.msra.mxu0 0
      %2937 = vmatprep.subr.bf16.mxu0 0
      %2938 = vmatpush1.bf16.msra.mxu0 0
      %2939 = vmatprep.subr.bf16.mxu0 0
      %2940 = vmatpush1.bf16.msra.mxu0 0
      %2941 = vmatprep.subr.bf16.mxu0 0
      %2942 = vmatpush1.bf16.msra.mxu0 0
      %2943 = vmatprep.subr.bf16.mxu0 0
      %2944 = vmatpush1.bf16.msra.mxu0 0
      %2945 = vmatprep.mubr.bf16.mxu0 0
      %2946 = vmatmul.mubr.bf16.gmra.mrb[0].mxu0 %v708
      %v2947 = vpop.f32.mrb[0].mxu0
      %v2948 = vadd.f32 0.0, %v2947
      %v2949 = vpop.f32.mrb[0].mxu0
      %v2950 = vadd.f32 0.0, %v2949
      %v2951 = vpop.f32.mrb[0].mxu0
      %v2952 = vadd.f32 0.0, %v2951
      %v2953 = vpop.f32.mrb[0].mxu0
      %v2954 = vadd.f32 0.0, %v2953
      %2955 = vmatprep.mubr.bf16.mxu0 0
      %2956 = vmatmul.mubr.bf16.gmra.mrb[0].mxu0 %v711
      %v2957 = vpop.f32.mrb[0].mxu0
      %v2958 = vadd.f32 0.0, %v2957
      %v2959 = vpop.f32.mrb[0].mxu0
      %v2960 = vadd.f32 0.0, %v2959
      %v2961 = vpop.f32.mrb[0].mxu0
      %v2962 = vadd.f32 0.0, %v2961
      %v2963 = vpop.f32.mrb[0].mxu0
      %v2964 = vadd.f32 0.0, %v2963
      %2965 = vmatprep.mubr.bf16.mxu0 0
      %2966 = vmatmul.mubr.bf16.gmra.mrb[0].mxu0 %v714
      %v2967 = vpop.f32.mrb[0].mxu0
      %v2968 = vadd.f32 0.0, %v2967
      %v2969 = vpop.f32.mrb[0].mxu0
      %v2970 = vadd.f32 0.0, %v2969
      %v2971 = vpop.f32.mrb[0].mxu0
      %v2972 = vadd.f32 0.0, %v2971
      %v2973 = vpop.f32.mrb[0].mxu0
      %v2974 = vadd.f32 0.0, %v2973
      %2975 = vmatprep.mubr.bf16.mxu0 0
      %2976 = vmatmul.mubr.bf16.gmra.mrb[0].mxu0 %v717
      %v2977 = vpop.f32.mrb[0].mxu0
      %v2978 = vadd.f32 0.0, %v2977
      %v2979 = vpop.f32.mrb[0].mxu0
      %v2980 = vadd.f32 0.0, %v2979
      %v2981 = vpop.f32.mrb[0].mxu0
      %v2982 = vadd.f32 0.0, %v2981
      %v2983 = vpop.f32.mrb[0].mxu0
      %v2984 = vadd.f32 0.0, %v2983
      %2985 = vmatprep.mubr.bf16.mxu0 0
      %2986 = vmatmul.mubr.bf16.gmra.mrb[0].mxu0 %v720
      %v2987 = vpop.f32.mrb[0].mxu0
      %v2988 = vadd.f32 0.0, %v2987
      %v2989 = vpop.f32.mrb[0].mxu0
      %v2990 = vadd.f32 0.0, %v2989
      %v2991 = vpop.f32.mrb[0].mxu0
      %v2992 = vadd.f32 0.0, %v2991
      %v2993 = vpop.f32.mrb[0].mxu0
      %v2994 = vadd.f32 0.0, %v2993
      %2995 = vmatprep.mubr.bf16.mxu0 0
      %2996 = vmatmul.mubr.bf16.gmra.mrb[0].mxu0 %v723
      %v2997 = vpop.f32.mrb[0].mxu0
      %v2998 = vadd.f32 0.0, %v2997
      %v2999 = vpop.f32.mrb[0].mxu0
      %v3000 = vadd.f32 0.0, %v2999
      %v3001 = vpop.f32.mrb[0].mxu0
      %v3002 = vadd.f32 0.0, %v3001
      %v3003 = vpop.f32.mrb[0].mxu0
      %v3004 = vadd.f32 0.0, %v3003
      %3005 = vmatprep.mubr.bf16.mxu0 0
      %3006 = vmatmul.mubr.bf16.gmra.mrb[0].mxu0 %v726
      %v3007 = vpop.f32.mrb[0].mxu0
      %v3008 = vadd.f32 0.0, %v3007
      %v3009 = vpop.f32.mrb[0].mxu0
      %v3010 = vadd.f32 0.0, %v3009
      %v3011 = vpop.f32.mrb[0].mxu0
      %v3012 = vadd.f32 0.0, %v3011
      %v3013 = vpop.f32.mrb[0].mxu0
      %v3014 = vadd.f32 0.0, %v3013
      %3015 = vmatprep.mubr.bf16.mxu0 0
      %3016 = vmatmul.mubr.bf16.gmra.mrb[0].mxu0 %v729
      %v3017 = vpop.f32.mrb[0].mxu0
      %v3018 = vadd.f32 0.0, %v3017
      %v3019 = vpop.f32.mrb[0].mxu0
      %v3020 = vadd.f32 0.0, %v3019
      %v3021 = vpop.f32.mrb[0].mxu0
      %v3022 = vadd.f32 0.0, %v3021
      %v3023 = vpop.f32.mrb[0].mxu0
      %v3024 = vadd.f32 0.0, %v3023
      %3025 = vmatprep.mubr.bf16.mxu0 0
      %3026 = vmatmul.mubr.bf16.gmra.mrb[0].mxu0 %v732
      %v3027 = vpop.f32.mrb[0].mxu0
      %v3028 = vadd.f32 0.0, %v3027
      %v3029 = vpop.f32.mrb[0].mxu0
      %v3030 = vadd.f32 0.0, %v3029
      %v3031 = vpop.f32.mrb[0].mxu0
      %v3032 = vadd.f32 0.0, %v3031
      %v3033 = vpop.f32.mrb[0].mxu0
      %v3034 = vadd.f32 0.0, %v3033
      %3035 = vmatprep.mubr.bf16.mxu0 0
      %3036 = vmatmul.mubr.bf16.gmra.mrb[0].mxu0 %v735
      %v3037 = vpop.f32.mrb[0].mxu0
      %v3038 = vadd.f32 0.0, %v3037
      %v3039 = vpop.f32.mrb[0].mxu0
      %v3040 = vadd.f32 0.0, %v3039
      %v3041 = vpop.f32.mrb[0].mxu0
      %v3042 = vadd.f32 0.0, %v3041
      %v3043 = vpop.f32.mrb[0].mxu0
      %v3044 = vadd.f32 0.0, %v3043
      %3045 = vmatprep.mubr.bf16.mxu0 0
      %3046 = vmatmul.mubr.bf16.gmra.mrb[0].mxu0 %v738
      %v3047 = vpop.f32.mrb[0].mxu0
      %v3048 = vadd.f32 0.0, %v3047
      %v3049 = vpop.f32.mrb[0].mxu0
      %v3050 = vadd.f32 0.0, %v3049
      %v3051 = vpop.f32.mrb[0].mxu0
      %v3052 = vadd.f32 0.0, %v3051
      %v3053 = vpop.f32.mrb[0].mxu0
      %v3054 = vadd.f32 0.0, %v3053
      %3055 = vmatprep.mubr.bf16.mxu0 0
      %3056 = vmatmul.mubr.bf16.gmra.mrb[0].mxu0 %v741
      %v3057 = vpop.f32.mrb[0].mxu0
      %v3058 = vadd.f32 0.0, %v3057
      %v3059 = vpop.f32.mrb[0].mxu0
      %v3060 = vadd.f32 0.0, %v3059
      %v3061 = vpop.f32.mrb[0].mxu0
      %v3062 = vadd.f32 0.0, %v3061
      %v3063 = vpop.f32.mrb[0].mxu0
      %v3064 = vadd.f32 0.0, %v3063
      %3065 = vmatprep.mubr.bf16.mxu0 0
      %3066 = vmatmul.mubr.bf16.gmra.mrb[0].mxu0 %v1570
      %v3067 = vpop.f32.mrb[0].mxu0
      %v3068 = vadd.f32 0.0, %v3067
      %v3069 = vpop.f32.mrb[0].mxu0
      %v3070 = vadd.f32 0.0, %v3069
      %v3071 = vpop.f32.mrb[0].mxu0
      %v3072 = vadd.f32 0.0, %v3071
      %v3073 = vpop.f32.mrb[0].mxu0
      %v3074 = vadd.f32 0.0, %v3073
      %3075 = vmatprep.mubr.bf16.mxu0 0
      %3076 = vmatmul.mubr.bf16.gmra.mrb[0].mxu0 %v2911
      %v3077 = vpop.f32.mrb[0].mxu0
      %v3078 = vadd.f32 0.0, %v3077
      %v3079 = vpop.f32.mrb[0].mxu0
      %v3080 = vadd.f32 0.0, %v3079
      %v3081 = vpop.f32.mrb[0].mxu0
      %v3082 = vadd.f32 0.0, %v3081
      %v3083 = vpop.f32.mrb[0].mxu0
      %v3084 = vadd.f32 0.0, %v3083
      %3085 = vdwg.mxu0
      %v3086 = vadd.f32 %v2854, %v2948
      %v3087 = vadd.f32 %v2855, %v2950
      %v3088 = vadd.f32 %v2856, %v2952
      %v3089 = vadd.f32 %v2857, %v2954
      %v3090 = vadd.f32 %v2858, %v2958
      %v3091 = vadd.f32 %v2859, %v2960
      %v3092 = vadd.f32 %v2860, %v2962
      %v3093 = vadd.f32 %v2861, %v2964
      %v3094 = vadd.f32 %v2862, %v2968
      %v3095 = vadd.f32 %v2863, %v2970
      %v3096 = vadd.f32 %v2864, %v2972
      %v3097 = vadd.f32 %v2865, %v2974
      %v3098 = vadd.f32 %v2866, %v2978
      %v3099 = vadd.f32 %v2867, %v2980
      %v3100 = vadd.f32 %v2868, %v2982
      %v3101 = vadd.f32 %v2869, %v2984
      %v3102 = vadd.f32 %v2870, %v2988
      %v3103 = vadd.f32 %v2871, %v2990
      %v3104 = vadd.f32 %v2872, %v2992
      %v3105 = vadd.f32 %v2873, %v2994
      %v3106 = vadd.f32 %v2874, %v2998
      %v3107 = vadd.f32 %v2875, %v3000
      %v3108 = vadd.f32 %v2876, %v3002
      %v3109 = vadd.f32 %v2877, %v3004
      %v3110 = vadd.f32 %v2878, %v3008
      %v3111 = vadd.f32 %v2879, %v3010
      %v3112 = vadd.f32 %v2880, %v3012
      %v3113 = vadd.f32 %v2881, %v3014
      %v3114 = vadd.f32 %v2882, %v3018
      %v3115 = vadd.f32 %v2883, %v3020
      %v3116 = vadd.f32 %v2884, %v3022
      %v3117 = vadd.f32 %v2885, %v3024
      %v3118 = vadd.f32 %v2886, %v3028
      %v3119 = vadd.f32 %v2887, %v3030
      %v3120 = vadd.f32 %v2888, %v3032
      %v3121 = vadd.f32 %v2889, %v3034
      %v3122 = vadd.f32 %v2890, %v3038
      %v3123 = vadd.f32 %v2891, %v3040
      %v3124 = vadd.f32 %v2892, %v3042
      %v3125 = vadd.f32 %v2893, %v3044
      %v3126 = vadd.f32 %v2894, %v3048
      %v3127 = vadd.f32 %v2895, %v3050
      %v3128 = vadd.f32 %v2896, %v3052
      %v3129 = vadd.f32 %v2897, %v3054
      %v3130 = vadd.f32 %v2898, %v3058
      %v3131 = vadd.f32 %v2899, %v3060
      %v3132 = vadd.f32 %v2900, %v3062
      %v3133 = vadd.f32 %v2901, %v3064
      %v3134 = vadd.f32 %v2902, %v3068
      %v3135 = vadd.f32 %v2903, %v3070
      %v3136 = vadd.f32 %v2904, %v3072
      %v3137 = vadd.f32 %v2905, %v3074
      %v3138 = vadd.f32 %v2906, %v3078
      %v3139 = vadd.f32 %v2907, %v3080
      %v3140 = vadd.f32 %v2908, %v3082
      %v3141 = vadd.f32 %v2909, %v3084
      %v3142 = vmax.f32 %v2050, %v2051
      %v3143 = vmax.f32 %v2052, %v2053
      %v3144 = vmax.f32 %v2054, %v2055
      %v3145 = vmax.f32 %v2056, %v2057
      %v3146 = vmax.f32 %v2058, %v2059
      %v3147 = vmax.f32 %v2060, %v2061
      %v3148 = vmax.f32 %v2062, %v2063
      %v3149 = vmax.f32 %v2064, %v2065
      %v3150 = vmax.f32 %v2066, %v2067
      %v3151 = vmax.f32 %v2068, %v2069
      %v3152 = vmax.f32 %v2070, %v2071
      %v3153 = vmax.f32 %v2072, %v2073
      %v3154 = vmax.f32 %v2074, %v2075
      %v3155 = vmax.f32 %v2076, %v2077
      %v3156 = vmax.f32 %v2078, %v2079
      %v3157 = vmax.f32 %v2080, %v2081
      %v3158 = vmax.f32 %v2082, %v2083
      %v3159 = vmax.f32 %v2084, %v2085
      %v3160 = vmax.f32 %v2086, %v2087
      %v3161 = vmax.f32 %v2088, %v2089
      %v3162 = vmax.f32 %v2090, %v2091
      %v3163 = vmax.f32 %v2092, %v2093
      %v3164 = vmax.f32 %v2094, %v2095
      %v3165 = vmax.f32 %v2096, %v2097
      %v3166 = vmax.f32 %v2098, %v2099
      %v3167 = vmax.f32 %v2100, %v2101
      %v3168 = vmax.f32 %v2102, %v2103
      %v3169 = vmax.f32 %v2104, %v2105
      %v3170 = vmax.f32 %v3086, %v3087
      %v3171 = vmax.f32 %v3088, %v3089
      %v3172 = vmax.f32 %v3090, %v3091
      %v3173 = vmax.f32 %v3092, %v3093
      %v3174 = vmax.f32 %v3094, %v3095
      %v3175 = vmax.f32 %v3096, %v3097
      %v3176 = vmax.f32 %v3098, %v3099
      %v3177 = vmax.f32 %v3100, %v3101
      %v3178 = vmax.f32 %v3102, %v3103
      %v3179 = vmax.f32 %v3104, %v3105
      %v3180 = vmax.f32 %v3106, %v3107
      %v3181 = vmax.f32 %v3108, %v3109
      %v3182 = vmax.f32 %v3110, %v3111
      %v3183 = vmax.f32 %v3112, %v3113
      %v3184 = vmax.f32 %v3114, %v3115
      %v3185 = vmax.f32 %v3116, %v3117
      %v3186 = vmax.f32 %v3118, %v3119
      %v3187 = vmax.f32 %v3120, %v3121
      %v3188 = vmax.f32 %v3122, %v3123
      %v3189 = vmax.f32 %v3124, %v3125
      %v3190 = vmax.f32 %v3126, %v3127
      %v3191 = vmax.f32 %v3128, %v3129
      %v3192 = vmax.f32 %v3130, %v3131
      %v3193 = vmax.f32 %v3132, %v3133
      %v3194 = vmax.f32 %v3134, %v3135
      %v3195 = vmax.f32 %v3136, %v3137
      %v3196 = vmax.f32 %v3138, %v3139
      %v3197 = vmax.f32 %v3140, %v3141
      %v3198 = vmax.f32 %v3142, %v3170
      %v3199 = vmax.f32 %v3143, %v3171
      %v3200 = vmax.f32 %v3144, %v3172
      %v3201 = vmax.f32 %v3145, %v3173
      %v3202 = vmax.f32 %v3146, %v3174
      %v3203 = vmax.f32 %v3147, %v3175
      %v3204 = vmax.f32 %v3148, %v3176
      %v3205 = vmax.f32 %v3149, %v3177
      %v3206 = vmax.f32 %v3150, %v3178
      %v3207 = vmax.f32 %v3151, %v3179
      %v3208 = vmax.f32 %v3152, %v3180
      %v3209 = vmax.f32 %v3153, %v3181
      %v3210 = vmax.f32 %v3154, %v3182
      %v3211 = vmax.f32 %v3155, %v3183
      %v3212 = vmax.f32 %v3156, %v3184
      %v3213 = vmax.f32 %v3157, %v3185
      %v3214 = vmax.f32 %v3158, %v3186
      %v3215 = vmax.f32 %v3159, %v3187
      %v3216 = vmax.f32 %v3160, %v3188
      %v3217 = vmax.f32 %v3161, %v3189
      %v3218 = vmax.f32 %v3162, %v3190
      %v3219 = vmax.f32 %v3163, %v3191
      %v3220 = vmax.f32 %v3164, %v3192
      %v3221 = vmax.f32 %v3165, %v3193
      %v3222 = vmax.f32 %v3166, %v3194
      %v3223 = vmax.f32 %v3167, %v3195
      %v3224 = vmax.f32 %v3168, %v3196
      %v3225 = vmax.f32 %v3169, %v3197
      %v3226 = vld [vmem:[%s2] sm:$0x1]
      %v3228 = vlaneseq
      %v3229 = vshrl.u32 %v3228, 7
      %v3230 = vsub.s32 0, %v3229
      %v3231 = vrot.slane %v3226, %v3230
      %v3233 = vadd.f32 %v3198, %v3231
      %v3234 = vadd.f32 %v3199, %v3231
      %v3235 = vadd.f32 %v3200, %v3231
      %v3236 = vadd.f32 %v3201, %v3231
      %v3237 = vadd.f32 %v3202, %v3231
      %v3238 = vadd.f32 %v3203, %v3231
      %v3239 = vadd.f32 %v3204, %v3231
      %v3240 = vadd.f32 %v3205, %v3231
      %v3241 = vadd.f32 %v3206, %v3231
      %v3242 = vadd.f32 %v3207, %v3231
      %v3243 = vadd.f32 %v3208, %v3231
      %v3244 = vadd.f32 %v3209, %v3231
      %v3245 = vadd.f32 %v3210, %v3231
      %v3246 = vadd.f32 %v3211, %v3231
      %v3247 = vadd.f32 %v3212, %v3231
      %v3248 = vadd.f32 %v3213, %v3231
      %v3249 = vadd.f32 %v3214, %v3231
      %v3250 = vadd.f32 %v3215, %v3231
      %v3251 = vadd.f32 %v3216, %v3231
      %v3252 = vadd.f32 %v3217, %v3231
      %v3253 = vadd.f32 %v3218, %v3231
      %v3254 = vadd.f32 %v3219, %v3231
      %v3255 = vadd.f32 %v3220, %v3231
      %v3256 = vadd.f32 %v3221, %v3231
      %v3257 = vadd.f32 %v3222, %v3231
      %v3258 = vadd.f32 %v3223, %v3231
      %v3259 = vadd.f32 %v3224, %v3231
      %v3260 = vadd.f32 %v3225, %v3231
      %v3261 = vmax.f32 %v3233, 0.0
      %v3262 = vmax.f32 %v3234, 0.0
      %v3263 = vmax.f32 %v3235, 0.0
      %v3264 = vmax.f32 %v3236, 0.0
      %v3265 = vmax.f32 %v3237, 0.0
      %v3266 = vmax.f32 %v3238, 0.0
      %v3267 = vmax.f32 %v3239, 0.0
      %v3268 = vmax.f32 %v3240, 0.0
      %v3269 = vmax.f32 %v3241, 0.0
      %v3270 = vmax.f32 %v3242, 0.0
      %v3271 = vmax.f32 %v3243, 0.0
      %v3272 = vmax.f32 %v3244, 0.0
      %v3273 = vmax.f32 %v3245, 0.0
      %v3274 = vmax.f32 %v3246, 0.0
      %v3275 = vmax.f32 %v3247, 0.0
      %v3276 = vmax.f32 %v3248, 0.0
      %v3277 = vmax.f32 %v3249, 0.0
      %v3278 = vmax.f32 %v3250, 0.0
      %v3279 = vmax.f32 %v3251, 0.0
      %v3280 = vmax.f32 %v3252, 0.0
      %v3281 = vmax.f32 %v3253, 0.0
      %v3282 = vmax.f32 %v3254, 0.0
      %v3283 = vmax.f32 %v3255, 0.0
      %v3284 = vmax.f32 %v3256, 0.0
      %v3285 = vmax.f32 %v3257, 0.0
      %v3286 = vmax.f32 %v3258, 0.0
      %v3287 = vmax.f32 %v3259, 0.0
      %v3288 = vmax.f32 %v3260, 0.0
      %v3289 = vpack.c.bf16 %v3262, %v3261
      %v3290 = vpack.c.bf16 %v3264, %v3263
      %v3291 = vpack.c.bf16 %v3266, %v3265
      %v3292 = vpack.c.bf16 %v3268, %v3267
      %v3293 = vpack.c.bf16 %v3270, %v3269
      %v3294 = vpack.c.bf16 %v3272, %v3271
      %v3295 = vpack.c.bf16 %v3274, %v3273
      %v3296 = vpack.c.bf16 %v3276, %v3275
      %v3297 = vpack.c.bf16 %v3278, %v3277
      %v3298 = vpack.c.bf16 %v3280, %v3279
      %v3299 = vpack.c.bf16 %v3282, %v3281
      %v3300 = vpack.c.bf16 %v3284, %v3283
      %v3301 = vpack.c.bf16 %v3286, %v3285
      %v3302 = vpack.c.bf16 %v3288, %v3287
      %v3303 = vld [vmem:[%s3] sm:$0xff]
      %v3304 = vld [vmem:[%s3 + $0x8] sm:$0xff]
      %v3305 = vld [vmem:[%s3 + $0x10] sm:$0xff]
      %v3306 = vld [vmem:[%s3 + $0x18] sm:$0xff]
      %v3307 = vld [vmem:[%s3 + $0x20] sm:$0xff]
      %v3308 = vld [vmem:[%s3 + $0x28] sm:$0xff]
      %v3309 = vld [vmem:[%s3 + $0x30] sm:$0xff]
      %v3310 = vld [vmem:[%s3 + $0x38] sm:$0xff]
      %v3311 = vld [vmem:[%s3 + $0x40] sm:$0xff]
      %v3312 = vld [vmem:[%s3 + $0x48] sm:$0xff]
      %v3313 = vld [vmem:[%s3 + $0x50] sm:$0xff]
      %v3314 = vld [vmem:[%s3 + $0x58] sm:$0xff]
      %v3315 = vld [vmem:[%s3 + $0x60] sm:$0xff]
      %v3316 = vld [vmem:[%s3 + $0x68] sm:$0xff]
      %s3317 = scalar_lea.vmem %s3, 112
      %v3318 = vld [vmem:[%s3317] sm:$0xff]
      %v3319 = vld [vmem:[%s3317 + $0x8] sm:$0xff]
      %v3320 = vld [vmem:[%s3317 + $0x10] sm:$0xff]
      %v3321 = vld [vmem:[%s3317 + $0x18] sm:$0xff]
      %v3322 = vld [vmem:[%s3317 + $0x20] sm:$0xff]
      %v3323 = vld [vmem:[%s3317 + $0x28] sm:$0xff]
      %v3324 = vld [vmem:[%s3317 + $0x30] sm:$0xff]
      %v3325 = vld [vmem:[%s3317 + $0x38] sm:$0xff]
      %v3326 = vld [vmem:[%s3317 + $0x40] sm:$0xff]
      %v3327 = vld [vmem:[%s3317 + $0x48] sm:$0xff]
      %v3328 = vld [vmem:[%s3317 + $0x50] sm:$0xff]
      %v3329 = vld [vmem:[%s3317 + $0x58] sm:$0xff]
      %v3330 = vld [vmem:[%s3317 + $0x60] sm:$0xff]
      %v3331 = vld [vmem:[%s3317 + $0x68] sm:$0xff]
      %v3346 = vunpack.c.l.b16 %v3318
      %v3347 = vunpack.c.h.b16 %v3318
      %v3348 = vunpack.c.l.b16 %v3319
      %v3349 = vunpack.c.h.b16 %v3319
      %v3350 = vunpack.c.l.b16 %v3320
      %v3351 = vunpack.c.h.b16 %v3320
      %v3352 = vunpack.c.l.b16 %v3321
      %v3353 = vunpack.c.h.b16 %v3321
      %v3354 = vunpack.c.l.b16 %v3322
      %v3355 = vunpack.c.h.b16 %v3322
      %v3356 = vunpack.c.l.b16 %v3323
      %v3357 = vunpack.c.h.b16 %v3323
      %v3358 = vunpack.c.l.b16 %v3324
      %v3359 = vunpack.c.h.b16 %v3324
      %v3360 = vunpack.c.l.b16 %v3325
      %v3361 = vunpack.c.h.b16 %v3325
      %v3362 = vunpack.c.l.b16 %v3326
      %v3363 = vunpack.c.h.b16 %v3326
      %v3364 = vunpack.c.l.b16 %v3327
      %v3365 = vunpack.c.h.b16 %v3327
      %v3366 = vunpack.c.l.b16 %v3328
      %v3367 = vunpack.c.h.b16 %v3328
      %v3368 = vunpack.c.l.b16 %v3329
      %v3369 = vunpack.c.h.b16 %v3329
      %v3370 = vunpack.c.l.b16 %v3330
      %v3371 = vunpack.c.h.b16 %v3330
      %v3372 = vunpack.c.l.b16 %v3331
      %v3373 = vunpack.c.h.b16 %v3331
      %v3374 = vpack.c.b16 %v3348, %v3346
      %v3375 = vpack.c.b16 %v3349, %v3347
      %v3376 = vpack.c.b16 %v3352, %v3350
      %v3377 = vpack.c.b16 %v3353, %v3351
      %v3378 = vpack.c.b16 %v3356, %v3354
      %v3379 = vpack.c.b16 %v3357, %v3355
      %v3380 = vpack.c.b16 %v3360, %v3358
      %v3381 = vpack.c.b16 %v3361, %v3359
      %v3382 = vpack.c.b16 %v3364, %v3362
      %v3383 = vpack.c.b16 %v3365, %v3363
      %v3384 = vpack.c.b16 %v3368, %v3366
      %v3385 = vpack.c.b16 %v3369, %v3367
      %v3386 = vpack.c.b16 %v3372, %v3370
      %v3387 = vpack.c.b16 %v3373, %v3371
      %vm3402 = vcmask 916480
      %v3404 = vsel %vm3402, %v3290, 0
      %v3407 = vsel %vm3402, %v3292, 0
      %v3410 = vsel %vm3402, %v3294, 0
      %v3413 = vsel %vm3402, %v3296, 0
      %v3416 = vsel %vm3402, %v3298, 0
      %3418 = vmatprep.subr.bf16.mxu0 %v3375
      %3419 = vmatpush1.bf16.msra.mxu0 %v3374
      %3420 = vmatprep.subr.bf16.mxu0 %v3377
      %3421 = vmatpush1.bf16.msra.mxu0 %v3376
      %3422 = vmatprep.subr.bf16.mxu0 %v3379
      %3423 = vmatpush1.bf16.msra.mxu0 %v3378
      %3424 = vmatprep.subr.bf16.mxu0 %v3381
      %3425 = vmatpush1.bf16.msra.mxu0 %v3380
      %3426 = vmatprep.subr.bf16.mxu0 %v3383
      %3427 = vmatpush1.bf16.msra.mxu0 %v3382
      %3428 = vmatprep.subr.bf16.mxu0 %v3385
      %3429 = vmatpush1.bf16.msra.mxu0 %v3384
      %3430 = vmatprep.subr.bf16.mxu0 %v3387
      %3431 = vmatpush1.bf16.msra.mxu0 %v3386
      %3432 = vmatprep.subr.bf16.mxu0 0
      %3433 = vmatpush1.bf16.msra.mxu0 0
      %3434 = vmatprep.subr.bf16.mxu0 0
      %3435 = vmatpush1.bf16.msra.mxu0 0
      %3436 = vmatprep.subr.bf16.mxu0 0
      %3437 = vmatpush1.bf16.msra.mxu0 0
      %3438 = vmatprep.subr.bf16.mxu0 0
      %3439 = vmatpush1.bf16.msra.mxu0 0
      %3440 = vmatprep.subr.bf16.mxu0 0
      %3441 = vmatpush1.bf16.msra.mxu0 0
      %3442 = vmatprep.subr.bf16.mxu0 0
      %3443 = vmatpush1.bf16.msra.mxu0 0
      %3444 = vmatprep.subr.bf16.mxu0 0
      %3445 = vmatpush1.bf16.msra.mxu0 0
      %3446 = vmatprep.subr.bf16.mxu0 0
      %3447 = vmatpush1.bf16.msra.mxu0 0
      %3448 = vmatprep.subr.bf16.mxu0 0
      %3449 = vmatpush1.bf16.msra.mxu0 0
      %3450 = vmatprep.mubr.bf16.mxu0 0
      %3451 = vmatmul.mubr.bf16.gmra.mrb[0].mxu0 %v3404
      %v3452 = vpop.f32.mrb[0].mxu0
      %v3453 = vadd.f32 0.0, %v3452
      %v3454 = vpop.f32.mrb[0].mxu0
      %v3455 = vadd.f32 0.0, %v3454
      %v3456 = vpop.f32.mrb[0].mxu0
      %v3457 = vadd.f32 0.0, %v3456
      %v3458 = vpop.f32.mrb[0].mxu0
      %v3459 = vadd.f32 0.0, %v3458
      %3460 = vmatprep.mubr.bf16.mxu0 0
      %3461 = vmatmul.mubr.bf16.gmra.mrb[0].mxu0 %v3407
      %v3462 = vpop.f32.mrb[0].mxu0
      %v3463 = vadd.f32 0.0, %v3462
      %v3464 = vpop.f32.mrb[0].mxu0
      %v3465 = vadd.f32 0.0, %v3464
      %v3466 = vpop.f32.mrb[0].mxu0
      %v3467 = vadd.f32 0.0, %v3466
      %v3468 = vpop.f32.mrb[0].mxu0
      %v3469 = vadd.f32 0.0, %v3468
      %3470 = vmatprep.mubr.bf16.mxu0 0
      %3471 = vmatmul.mubr.bf16.gmra.mrb[0].mxu0 %v3410
      %v3472 = vpop.f32.mrb[0].mxu0
      %v3473 = vadd.f32 0.0, %v3472
      %v3474 = vpop.f32.mrb[0].mxu0
      %v3475 = vadd.f32 0.0, %v3474
      %v3476 = vpop.f32.mrb[0].mxu0
      %v3477 = vadd.f32 0.0, %v3476
      %v3478 = vpop.f32.mrb[0].mxu0
      %v3479 = vadd.f32 0.0, %v3478
      %3480 = vmatprep.mubr.bf16.mxu0 0
      %3481 = vmatmul.mubr.bf16.gmra.mrb[0].mxu0 %v3413
      %v3482 = vpop.f32.mrb[0].mxu0
      %v3483 = vadd.f32 0.0, %v3482
      %v3484 = vpop.f32.mrb[0].mxu0
      %v3485 = vadd.f32 0.0, %v3484
      %v3486 = vpop.f32.mrb[0].mxu0
      %v3487 = vadd.f32 0.0, %v3486
      %v3488 = vpop.f32.mrb[0].mxu0
      %v3489 = vadd.f32 0.0, %v3488
      %3490 = vmatprep.mubr.bf16.mxu0 0
      %3491 = vmatmul.mubr.bf16.gmra.mrb[0].mxu0 %v3416
      %v3492 = vpop.f32.mrb[0].mxu0
      %v3493 = vadd.f32 0.0, %v3492
      %v3494 = vpop.f32.mrb[0].mxu0
      %v3495 = vadd.f32 0.0, %v3494
      %v3496 = vpop.f32.mrb[0].mxu0
      %v3497 = vadd.f32 0.0, %v3496
      %v3498 = vpop.f32.mrb[0].mxu0
      %v3499 = vadd.f32 0.0, %v3498
      %3500 = vdwg.mxu0
      %v3515 = vunpack.c.l.b16 %v3303
      %v3516 = vunpack.c.h.b16 %v3303
      %v3517 = vunpack.c.l.b16 %v3304
      %v3518 = vunpack.c.h.b16 %v3304
      %v3519 = vunpack.c.l.b16 %v3305
      %v3520 = vunpack.c.h.b16 %v3305
      %v3521 = vunpack.c.l.b16 %v3306
      %v3522 = vunpack.c.h.b16 %v3306
      %v3523 = vunpack.c.l.b16 %v3307
      %v3524 = vunpack.c.h.b16 %v3307
      %v3525 = vunpack.c.l.b16 %v3308
      %v3526 = vunpack.c.h.b16 %v3308
      %v3527 = vunpack.c.l.b16 %v3309
      %v3528 = vunpack.c.h.b16 %v3309
      %v3529 = vunpack.c.l.b16 %v3310
      %v3530 = vunpack.c.h.b16 %v3310
      %v3531 = vunpack.c.l.b16 %v3311
      %v3532 = vunpack.c.h.b16 %v3311
      %v3533 = vunpack.c.l.b16 %v3312
      %v3534 = vunpack.c.h.b16 %v3312
      %v3535 = vunpack.c.l.b16 %v3313
      %v3536 = vunpack.c.h.b16 %v3313
      %v3537 = vunpack.c.l.b16 %v3314
      %v3538 = vunpack.c.h.b16 %v3314
      %v3539 = vunpack.c.l.b16 %v3315
      %v3540 = vunpack.c.h.b16 %v3315
      %v3541 = vunpack.c.l.b16 %v3316
      %v3542 = vunpack.c.h.b16 %v3316
      %v3543 = vpack.c.b16 %v3517, %v3515
      %v3544 = vpack.c.b16 %v3518, %v3516
      %v3545 = vpack.c.b16 %v3521, %v3519
      %v3546 = vpack.c.b16 %v3522, %v3520
      %v3547 = vpack.c.b16 %v3525, %v3523
      %v3548 = vpack.c.b16 %v3526, %v3524
      %v3549 = vpack.c.b16 %v3529, %v3527
      %v3550 = vpack.c.b16 %v3530, %v3528
      %v3551 = vpack.c.b16 %v3533, %v3531
      %v3552 = vpack.c.b16 %v3534, %v3532
      %v3553 = vpack.c.b16 %v3537, %v3535
      %v3554 = vpack.c.b16 %v3538, %v3536
      %v3555 = vpack.c.b16 %v3541, %v3539
      %v3556 = vpack.c.b16 %v3542, %v3540
      %v3572 = vsel %vm3402, %v3289, 0
      %v3575 = vsel %vm3402, %v3291, 0
      %v3578 = vsel %vm3402, %v3293, 0
      %v3581 = vsel %vm3402, %v3295, 0
      %v3584 = vsel %vm3402, %v3297, 0
      %3586 = vmatprep.subr.bf16.mxu0 %v3544
      %3587 = vmatpush1.bf16.msra.mxu0 %v3543
      %3588 = vmatprep.subr.bf16.mxu0 %v3546
      %3589 = vmatpush1.bf16.msra.mxu0 %v3545
      %3590 = vmatprep.subr.bf16.mxu0 %v3548
      %3591 = vmatpush1.bf16.msra.mxu0 %v3547
      %3592 = vmatprep.subr.bf16.mxu0 %v3550
      %3593 = vmatpush1.bf16.msra.mxu0 %v3549
      %3594 = vmatprep.subr.bf16.mxu0 %v3552
      %3595 = vmatpush1.bf16.msra.mxu0 %v3551
      %3596 = vmatprep.subr.bf16.mxu0 %v3554
      %3597 = vmatpush1.bf16.msra.mxu0 %v3553
      %3598 = vmatprep.subr.bf16.mxu0 %v3556
      %3599 = vmatpush1.bf16.msra.mxu0 %v3555
      %3600 = vmatprep.subr.bf16.mxu0 0
      %3601 = vmatpush1.bf16.msra.mxu0 0
      %3602 = vmatprep.subr.bf16.mxu0 0
      %3603 = vmatpush1.bf16.msra.mxu0 0
      %3604 = vmatprep.subr.bf16.mxu0 0
      %3605 = vmatpush1.bf16.msra.mxu0 0
      %3606 = vmatprep.subr.bf16.mxu0 0
      %3607 = vmatpush1.bf16.msra.mxu0 0
      %3608 = vmatprep.subr.bf16.mxu0 0
      %3609 = vmatpush1.bf16.msra.mxu0 0
      %3610 = vmatprep.subr.bf16.mxu0 0
      %3611 = vmatpush1.bf16.msra.mxu0 0
      %3612 = vmatprep.subr.bf16.mxu0 0
      %3613 = vmatpush1.bf16.msra.mxu0 0
      %3614 = vmatprep.subr.bf16.mxu0 0
      %3615 = vmatpush1.bf16.msra.mxu0 0
      %3616 = vmatprep.subr.bf16.mxu0 0
      %3617 = vmatpush1.bf16.msra.mxu0 0
      %3618 = vmatprep.mubr.bf16.mxu0 0
      %3619 = vmatmul.mubr.bf16.gmra.mrb[0].mxu0 %v3572
      %v3620 = vpop.f32.mrb[0].mxu0
      %v3621 = vadd.f32 %v3453, %v3620
      %v3622 = vpop.f32.mrb[0].mxu0
      %v3623 = vadd.f32 %v3455, %v3622
      %v3624 = vpop.f32.mrb[0].mxu0
      %v3625 = vadd.f32 %v3457, %v3624
      %v3626 = vpop.f32.mrb[0].mxu0
      %v3627 = vadd.f32 %v3459, %v3626
      %3628 = vmatprep.mubr.bf16.mxu0 0
      %3629 = vmatmul.mubr.bf16.gmra.mrb[0].mxu0 %v3575
      %v3630 = vpop.f32.mrb[0].mxu0
      %v3631 = vadd.f32 %v3463, %v3630
      %v3632 = vpop.f32.mrb[0].mxu0
      %v3633 = vadd.f32 %v3465, %v3632
      %v3634 = vpop.f32.mrb[0].mxu0
      %v3635 = vadd.f32 %v3467, %v3634
      %v3636 = vpop.f32.mrb[0].mxu0
      %v3637 = vadd.f32 %v3469, %v3636
      %3638 = vmatprep.mubr.bf16.mxu0 0
      %3639 = vmatmul.mubr.bf16.gmra.mrb[0].mxu0 %v3578
      %v3640 = vpop.f32.mrb[0].mxu0
      %v3641 = vadd.f32 %v3473, %v3640
      %v3642 = vpop.f32.mrb[0].mxu0
      %v3643 = vadd.f32 %v3475, %v3642
      %v3644 = vpop.f32.mrb[0].mxu0
      %v3645 = vadd.f32 %v3477, %v3644
      %v3646 = vpop.f32.mrb[0].mxu0
      %v3647 = vadd.f32 %v3479, %v3646
      %3648 = vmatprep.mubr.bf16.mxu0 0
      %3649 = vmatmul.mubr.bf16.gmra.mrb[0].mxu0 %v3581
      %v3650 = vpop.f32.mrb[0].mxu0
      %v3651 = vadd.f32 %v3483, %v3650
      %v3652 = vpop.f32.mrb[0].mxu0
      %v3653 = vadd.f32 %v3485, %v3652
      %v3654 = vpop.f32.mrb[0].mxu0
      %v3655 = vadd.f32 %v3487, %v3654
      %v3656 = vpop.f32.mrb[0].mxu0
      %v3657 = vadd.f32 %v3489, %v3656
      %3658 = vmatprep.mubr.bf16.mxu0 0
      %3659 = vmatmul.mubr.bf16.gmra.mrb[0].mxu0 %v3584
      %v3660 = vpop.f32.mrb[0].mxu0
      %v3661 = vadd.f32 %v3493, %v3660
      %v3662 = vpop.f32.mrb[0].mxu0
      %v3663 = vadd.f32 %v3495, %v3662
      %v3664 = vpop.f32.mrb[0].mxu0
      %v3665 = vadd.f32 %v3497, %v3664
      %v3666 = vpop.f32.mrb[0].mxu0
      %v3667 = vadd.f32 %v3499, %v3666
      %3668 = vdwg.mxu0
      %s3669 = scalar_lea.vmem %s3, 224
      %v3670 = vld [vmem:[%s3669] sm:$0xff]
      %v3671 = vld [vmem:[%s3669 + $0x8] sm:$0xff]
      %v3672 = vld [vmem:[%s3669 + $0x10] sm:$0xff]
      %v3673 = vld [vmem:[%s3669 + $0x18] sm:$0xff]
      %v3674 = vld [vmem:[%s3669 + $0x20] sm:$0xff]
      %v3675 = vld [vmem:[%s3669 + $0x28] sm:$0xff]
      %v3676 = vld [vmem:[%s3669 + $0x30] sm:$0xff]
      %v3677 = vld [vmem:[%s3669 + $0x38] sm:$0xff]
      %v3678 = vld [vmem:[%s3669 + $0x40] sm:$0xff]
      %v3679 = vld [vmem:[%s3669 + $0x48] sm:$0xff]
      %v3680 = vld [vmem:[%s3669 + $0x50] sm:$0xff]
      %v3681 = vld [vmem:[%s3669 + $0x58] sm:$0xff]
      %v3682 = vld [vmem:[%s3669 + $0x60] sm:$0xff]
      %v3683 = vld [vmem:[%s3669 + $0x68] sm:$0xff]
      %v3698 = vunpack.c.l.b16 %v3670
      %v3699 = vunpack.c.h.b16 %v3670
      %v3700 = vunpack.c.l.b16 %v3671
      %v3701 = vunpack.c.h.b16 %v3671
      %v3702 = vunpack.c.l.b16 %v3672
      %v3703 = vunpack.c.h.b16 %v3672
      %v3704 = vunpack.c.l.b16 %v3673
      %v3705 = vunpack.c.h.b16 %v3673
      %v3706 = vunpack.c.l.b16 %v3674
      %v3707 = vunpack.c.h.b16 %v3674
      %v3708 = vunpack.c.l.b16 %v3675
      %v3709 = vunpack.c.h.b16 %v3675
      %v3710 = vunpack.c.l.b16 %v3676
      %v3711 = vunpack.c.h.b16 %v3676
      %v3712 = vunpack.c.l.b16 %v3677
      %v3713 = vunpack.c.h.b16 %v3677
      %v3714 = vunpack.c.l.b16 %v3678
      %v3715 = vunpack.c.h.b16 %v3678
      %v3716 = vunpack.c.l.b16 %v3679
      %v3717 = vunpack.c.h.b16 %v3679
      %v3718 = vunpack.c.l.b16 %v3680
      %v3719 = vunpack.c.h.b16 %v3680
      %v3720 = vunpack.c.l.b16 %v3681
      %v3721 = vunpack.c.h.b16 %v3681
      %v3722 = vunpack.c.l.b16 %v3682
      %v3723 = vunpack.c.h.b16 %v3682
      %v3724 = vunpack.c.l.b16 %v3683
      %v3725 = vunpack.c.h.b16 %v3683
      %v3726 = vpack.c.b16 %v3700, %v3698
      %v3727 = vpack.c.b16 %v3701, %v3699
      %v3728 = vpack.c.b16 %v3704, %v3702
      %v3729 = vpack.c.b16 %v3705, %v3703
      %v3730 = vpack.c.b16 %v3708, %v3706
      %v3731 = vpack.c.b16 %v3709, %v3707
      %v3732 = vpack.c.b16 %v3712, %v3710
      %v3733 = vpack.c.b16 %v3713, %v3711
      %v3734 = vpack.c.b16 %v3716, %v3714
      %v3735 = vpack.c.b16 %v3717, %v3715
      %v3736 = vpack.c.b16 %v3720, %v3718
      %v3737 = vpack.c.b16 %v3721, %v3719
      %v3738 = vpack.c.b16 %v3724, %v3722
      %v3739 = vpack.c.b16 %v3725, %v3723
      %v3755 = vsel %vm3402, %v3299, 0
      %3757 = vmatprep.subr.bf16.mxu0 %v3727
      %3758 = vmatpush1.bf16.msra.mxu0 %v3726
      %3759 = vmatprep.subr.bf16.mxu0 %v3729
      %3760 = vmatpush1.bf16.msra.mxu0 %v3728
      %3761 = vmatprep.subr.bf16.mxu0 %v3731
      %3762 = vmatpush1.bf16.msra.mxu0 %v3730
      %3763 = vmatprep.subr.bf16.mxu0 %v3733
      %3764 = vmatpush1.bf16.msra.mxu0 %v3732
      %3765 = vmatprep.subr.bf16.mxu0 %v3735
      %3766 = vmatpush1.bf16.msra.mxu0 %v3734
      %3767 = vmatprep.subr.bf16.mxu0 %v3737
      %3768 = vmatpush1.bf16.msra.mxu0 %v3736
      %3769 = vmatprep.subr.bf16.mxu0 %v3739
      %3770 = vmatpush1.bf16.msra.mxu0 %v3738
      %3771 = vmatprep.subr.bf16.mxu0 0
      %3772 = vmatpush1.bf16.msra.mxu0 0
      %3773 = vmatprep.subr.bf16.mxu0 0
      %3774 = vmatpush1.bf16.msra.mxu0 0
      %3775 = vmatprep.subr.bf16.mxu0 0
      %3776 = vmatpush1.bf16.msra.mxu0 0
      %3777 = vmatprep.subr.bf16.mxu0 0
      %3778 = vmatpush1.bf16.msra.mxu0 0
      %3779 = vmatprep.subr.bf16.mxu0 0
      %3780 = vmatpush1.bf16.msra.mxu0 0
      %3781 = vmatprep.subr.bf16.mxu0 0
      %3782 = vmatpush1.bf16.msra.mxu0 0
      %3783 = vmatprep.subr.bf16.mxu0 0
      %3784 = vmatpush1.bf16.msra.mxu0 0
      %3785 = vmatprep.subr.bf16.mxu0 0
      %3786 = vmatpush1.bf16.msra.mxu0 0
      %3787 = vmatprep.subr.bf16.mxu0 0
      %3788 = vmatpush1.bf16.msra.mxu0 0
      %3789 = vmatprep.mubr.bf16.mxu0 0
      %3790 = vmatmul.mubr.bf16.gmra.mrb[0].mxu0 %v3575
      %v3791 = vpop.f32.mrb[0].mxu0
      %v3792 = vadd.f32 0.0, %v3791
      %v3793 = vpop.f32.mrb[0].mxu0
      %v3794 = vadd.f32 0.0, %v3793
      %v3795 = vpop.f32.mrb[0].mxu0
      %v3796 = vadd.f32 0.0, %v3795
      %v3797 = vpop.f32.mrb[0].mxu0
      %v3798 = vadd.f32 0.0, %v3797
      %3799 = vmatprep.mubr.bf16.mxu0 0
      %3800 = vmatmul.mubr.bf16.gmra.mrb[0].mxu0 %v3578
      %v3801 = vpop.f32.mrb[0].mxu0
      %v3802 = vadd.f32 0.0, %v3801
      %v3803 = vpop.f32.mrb[0].mxu0
      %v3804 = vadd.f32 0.0, %v3803
      %v3805 = vpop.f32.mrb[0].mxu0
      %v3806 = vadd.f32 0.0, %v3805
      %v3807 = vpop.f32.mrb[0].mxu0
      %v3808 = vadd.f32 0.0, %v3807
      %3809 = vmatprep.mubr.bf16.mxu0 0
      %3810 = vmatmul.mubr.bf16.gmra.mrb[0].mxu0 %v3581
      %v3811 = vpop.f32.mrb[0].mxu0
      %v3812 = vadd.f32 0.0, %v3811
      %v3813 = vpop.f32.mrb[0].mxu0
      %v3814 = vadd.f32 0.0, %v3813
      %v3815 = vpop.f32.mrb[0].mxu0
      %v3816 = vadd.f32 0.0, %v3815
      %v3817 = vpop.f32.mrb[0].mxu0
      %v3818 = vadd.f32 0.0, %v3817
      %3819 = vmatprep.mubr.bf16.mxu0 0
      %3820 = vmatmul.mubr.bf16.gmra.mrb[0].mxu0 %v3584
      %v3821 = vpop.f32.mrb[0].mxu0
      %v3822 = vadd.f32 0.0, %v3821
      %v3823 = vpop.f32.mrb[0].mxu0
      %v3824 = vadd.f32 0.0, %v3823
      %v3825 = vpop.f32.mrb[0].mxu0
      %v3826 = vadd.f32 0.0, %v3825
      %v3827 = vpop.f32.mrb[0].mxu0
      %v3828 = vadd.f32 0.0, %v3827
      %3829 = vmatprep.mubr.bf16.mxu0 0
      %3830 = vmatmul.mubr.bf16.gmra.mrb[0].mxu0 %v3755
      %v3831 = vpop.f32.mrb[0].mxu0
      %v3832 = vadd.f32 0.0, %v3831
      %v3833 = vpop.f32.mrb[0].mxu0
      %v3834 = vadd.f32 0.0, %v3833
      %v3835 = vpop.f32.mrb[0].mxu0
      %v3836 = vadd.f32 0.0, %v3835
      %v3837 = vpop.f32.mrb[0].mxu0
      %v3838 = vadd.f32 0.0, %v3837
      %3839 = vdwg.mxu0
      %v3840 = vadd.f32 %v3621, %v3792
      %v3841 = vadd.f32 %v3623, %v3794
      %v3842 = vadd.f32 %v3625, %v3796
      %v3843 = vadd.f32 %v3627, %v3798
      %v3844 = vadd.f32 %v3631, %v3802
      %v3845 = vadd.f32 %v3633, %v3804
      %v3846 = vadd.f32 %v3635, %v3806
      %v3847 = vadd.f32 %v3637, %v3808
      %v3848 = vadd.f32 %v3641, %v3812
      %v3849 = vadd.f32 %v3643, %v3814
      %v3850 = vadd.f32 %v3645, %v3816
      %v3851 = vadd.f32 %v3647, %v3818
      %v3852 = vadd.f32 %v3651, %v3822
      %v3853 = vadd.f32 %v3653, %v3824
      %v3854 = vadd.f32 %v3655, %v3826
      %v3855 = vadd.f32 %v3657, %v3828
      %v3856 = vadd.f32 %v3661, %v3832
      %v3857 = vadd.f32 %v3663, %v3834
      %v3858 = vadd.f32 %v3665, %v3836
      %v3859 = vadd.f32 %v3667, %v3838
      %s3860 = scalar_lea.vmem %s3, 336
      %v3861 = vld [vmem:[%s3860] sm:$0xff]
      %v3862 = vld [vmem:[%s3860 + $0x8] sm:$0xff]
      %v3863 = vld [vmem:[%s3860 + $0x10] sm:$0xff]
      %v3864 = vld [vmem:[%s3860 + $0x18] sm:$0xff]
      %v3865 = vld [vmem:[%s3860 + $0x20] sm:$0xff]
      %v3866 = vld [vmem:[%s3860 + $0x28] sm:$0xff]
      %v3867 = vld [vmem:[%s3860 + $0x30] sm:$0xff]
      %v3868 = vld [vmem:[%s3860 + $0x38] sm:$0xff]
      %v3869 = vld [vmem:[%s3860 + $0x40] sm:$0xff]
      %v3870 = vld [vmem:[%s3860 + $0x48] sm:$0xff]
      %v3871 = vld [vmem:[%s3860 + $0x50] sm:$0xff]
      %v3872 = vld [vmem:[%s3860 + $0x58] sm:$0xff]
      %v3873 = vld [vmem:[%s3860 + $0x60] sm:$0xff]
      %v3874 = vld [vmem:[%s3860 + $0x68] sm:$0xff]
      %v3889 = vunpack.c.l.b16 %v3861
      %v3890 = vunpack.c.h.b16 %v3861
      %v3891 = vunpack.c.l.b16 %v3862
      %v3892 = vunpack.c.h.b16 %v3862
      %v3893 = vunpack.c.l.b16 %v3863
      %v3894 = vunpack.c.h.b16 %v3863
      %v3895 = vunpack.c.l.b16 %v3864
      %v3896 = vunpack.c.h.b16 %v3864
      %v3897 = vunpack.c.l.b16 %v3865
      %v3898 = vunpack.c.h.b16 %v3865
      %v3899 = vunpack.c.l.b16 %v3866
      %v3900 = vunpack.c.h.b16 %v3866
      %v3901 = vunpack.c.l.b16 %v3867
      %v3902 = vunpack.c.h.b16 %v3867
      %v3903 = vunpack.c.l.b16 %v3868
      %v3904 = vunpack.c.h.b16 %v3868
      %v3905 = vunpack.c.l.b16 %v3869
      %v3906 = vunpack.c.h.b16 %v3869
      %v3907 = vunpack.c.l.b16 %v3870
      %v3908 = vunpack.c.h.b16 %v3870
      %v3909 = vunpack.c.l.b16 %v3871
      %v3910 = vunpack.c.h.b16 %v3871
      %v3911 = vunpack.c.l.b16 %v3872
      %v3912 = vunpack.c.h.b16 %v3872
      %v3913 = vunpack.c.l.b16 %v3873
      %v3914 = vunpack.c.h.b16 %v3873
      %v3915 = vunpack.c.l.b16 %v3874
      %v3916 = vunpack.c.h.b16 %v3874
      %v3917 = vpack.c.b16 %v3891, %v3889
      %v3918 = vpack.c.b16 %v3892, %v3890
      %v3919 = vpack.c.b16 %v3895, %v3893
      %v3920 = vpack.c.b16 %v3896, %v3894
      %v3921 = vpack.c.b16 %v3899, %v3897
      %v3922 = vpack.c.b16 %v3900, %v3898
      %v3923 = vpack.c.b16 %v3903, %v3901
      %v3924 = vpack.c.b16 %v3904, %v3902
      %v3925 = vpack.c.b16 %v3907, %v3905
      %v3926 = vpack.c.b16 %v3908, %v3906
      %v3927 = vpack.c.b16 %v3911, %v3909
      %v3928 = vpack.c.b16 %v3912, %v3910
      %v3929 = vpack.c.b16 %v3915, %v3913
      %v3930 = vpack.c.b16 %v3916, %v3914
      %v3946 = vsel %vm3402, %v3300, 0
      %3948 = vmatprep.subr.bf16.mxu0 %v3918
      %3949 = vmatpush1.bf16.msra.mxu0 %v3917
      %3950 = vmatprep.subr.bf16.mxu0 %v3920
      %3951 = vmatpush1.bf16.msra.mxu0 %v3919
      %3952 = vmatprep.subr.bf16.mxu0 %v3922
      %3953 = vmatpush1.bf16.msra.mxu0 %v3921
      %3954 = vmatprep.subr.bf16.mxu0 %v3924
      %3955 = vmatpush1.bf16.msra.mxu0 %v3923
      %3956 = vmatprep.subr.bf16.mxu0 %v3926
      %3957 = vmatpush1.bf16.msra.mxu0 %v3925
      %3958 = vmatprep.subr.bf16.mxu0 %v3928
      %3959 = vmatpush1.bf16.msra.mxu0 %v3927
      %3960 = vmatprep.subr.bf16.mxu0 %v3930
      %3961 = vmatpush1.bf16.msra.mxu0 %v3929
      %3962 = vmatprep.subr.bf16.mxu0 0
      %3963 = vmatpush1.bf16.msra.mxu0 0
      %3964 = vmatprep.subr.bf16.mxu0 0
      %3965 = vmatpush1.bf16.msra.mxu0 0
      %3966 = vmatprep.subr.bf16.mxu0 0
      %3967 = vmatpush1.bf16.msra.mxu0 0
      %3968 = vmatprep.subr.bf16.mxu0 0
      %3969 = vmatpush1.bf16.msra.mxu0 0
      %3970 = vmatprep.subr.bf16.mxu0 0
      %3971 = vmatpush1.bf16.msra.mxu0 0
      %3972 = vmatprep.subr.bf16.mxu0 0
      %3973 = vmatpush1.bf16.msra.mxu0 0
      %3974 = vmatprep.subr.bf16.mxu0 0
      %3975 = vmatpush1.bf16.msra.mxu0 0
      %3976 = vmatprep.subr.bf16.mxu0 0
      %3977 = vmatpush1.bf16.msra.mxu0 0
      %3978 = vmatprep.subr.bf16.mxu0 0
      %3979 = vmatpush1.bf16.msra.mxu0 0
      %3980 = vmatprep.mubr.bf16.mxu0 0
      %3981 = vmatmul.mubr.bf16.gmra.mrb[0].mxu0 %v3407
      %v3982 = vpop.f32.mrb[0].mxu0
      %v3983 = vadd.f32 0.0, %v3982
      %v3984 = vpop.f32.mrb[0].mxu0
      %v3985 = vadd.f32 0.0, %v3984
      %v3986 = vpop.f32.mrb[0].mxu0
      %v3987 = vadd.f32 0.0, %v3986
      %v3988 = vpop.f32.mrb[0].mxu0
      %v3989 = vadd.f32 0.0, %v3988
      %3990 = vmatprep.mubr.bf16.mxu0 0
      %3991 = vmatmul.mubr.bf16.gmra.mrb[0].mxu0 %v3410
      %v3992 = vpop.f32.mrb[0].mxu0
      %v3993 = vadd.f32 0.0, %v3992
      %v3994 = vpop.f32.mrb[0].mxu0
      %v3995 = vadd.f32 0.0, %v3994
      %v3996 = vpop.f32.mrb[0].mxu0
      %v3997 = vadd.f32 0.0, %v3996
      %v3998 = vpop.f32.mrb[0].mxu0
      %v3999 = vadd.f32 0.0, %v3998
      %4000 = vmatprep.mubr.bf16.mxu0 0
      %4001 = vmatmul.mubr.bf16.gmra.mrb[0].mxu0 %v3413
      %v4002 = vpop.f32.mrb[0].mxu0
      %v4003 = vadd.f32 0.0, %v4002
      %v4004 = vpop.f32.mrb[0].mxu0
      %v4005 = vadd.f32 0.0, %v4004
      %v4006 = vpop.f32.mrb[0].mxu0
      %v4007 = vadd.f32 0.0, %v4006
      %v4008 = vpop.f32.mrb[0].mxu0
      %v4009 = vadd.f32 0.0, %v4008
      %4010 = vmatprep.mubr.bf16.mxu0 0
      %4011 = vmatmul.mubr.bf16.gmra.mrb[0].mxu0 %v3416
      %v4012 = vpop.f32.mrb[0].mxu0
      %v4013 = vadd.f32 0.0, %v4012
      %v4014 = vpop.f32.mrb[0].mxu0
      %v4015 = vadd.f32 0.0, %v4014
      %v4016 = vpop.f32.mrb[0].mxu0
      %v4017 = vadd.f32 0.0, %v4016
      %v4018 = vpop.f32.mrb[0].mxu0
      %v4019 = vadd.f32 0.0, %v4018
      %4020 = vmatprep.mubr.bf16.mxu0 0
      %4021 = vmatmul.mubr.bf16.gmra.mrb[0].mxu0 %v3946
      %v4022 = vpop.f32.mrb[0].mxu0
      %v4023 = vadd.f32 0.0, %v4022
      %v4024 = vpop.f32.mrb[0].mxu0
      %v4025 = vadd.f32 0.0, %v4024
      %v4026 = vpop.f32.mrb[0].mxu0
      %v4027 = vadd.f32 0.0, %v4026
      %v4028 = vpop.f32.mrb[0].mxu0
      %v4029 = vadd.f32 0.0, %v4028
      %4030 = vdwg.mxu0
      %v4031 = vadd.f32 %v3840, %v3983
      %v4032 = vadd.f32 %v3841, %v3985
      %v4033 = vadd.f32 %v3842, %v3987
      %v4034 = vadd.f32 %v3843, %v3989
      %v4035 = vadd.f32 %v3844, %v3993
      %v4036 = vadd.f32 %v3845, %v3995
      %v4037 = vadd.f32 %v3846, %v3997
      %v4038 = vadd.f32 %v3847, %v3999
      %v4039 = vadd.f32 %v3848, %v4003
      %v4040 = vadd.f32 %v3849, %v4005
      %v4041 = vadd.f32 %v3850, %v4007
      %v4042 = vadd.f32 %v3851, %v4009
      %v4043 = vadd.f32 %v3852, %v4013
      %v4044 = vadd.f32 %v3853, %v4015
      %v4045 = vadd.f32 %v3854, %v4017
      %v4046 = vadd.f32 %v3855, %v4019
      %v4047 = vadd.f32 %v3856, %v4023
      %v4048 = vadd.f32 %v3857, %v4025
      %v4049 = vadd.f32 %v3858, %v4027
      %v4050 = vadd.f32 %v3859, %v4029
      %s4051 = scalar_lea.vmem %s3, 448
      %v4052 = vld [vmem:[%s4051] sm:$0xff]
      %v4053 = vld [vmem:[%s4051 + $0x8] sm:$0xff]
      %v4054 = vld [vmem:[%s4051 + $0x10] sm:$0xff]
      %v4055 = vld [vmem:[%s4051 + $0x18] sm:$0xff]
      %v4056 = vld [vmem:[%s4051 + $0x20] sm:$0xff]
      %v4057 = vld [vmem:[%s4051 + $0x28] sm:$0xff]
      %v4058 = vld [vmem:[%s4051 + $0x30] sm:$0xff]
      %v4059 = vld [vmem:[%s4051 + $0x38] sm:$0xff]
      %v4060 = vld [vmem:[%s4051 + $0x40] sm:$0xff]
      %v4061 = vld [vmem:[%s4051 + $0x48] sm:$0xff]
      %v4062 = vld [vmem:[%s4051 + $0x50] sm:$0xff]
      %v4063 = vld [vmem:[%s4051 + $0x58] sm:$0xff]
      %v4064 = vld [vmem:[%s4051 + $0x60] sm:$0xff]
      %v4065 = vld [vmem:[%s4051 + $0x68] sm:$0xff]
      %v4080 = vunpack.c.l.b16 %v4052
      %v4081 = vunpack.c.h.b16 %v4052
      %v4082 = vunpack.c.l.b16 %v4053
      %v4083 = vunpack.c.h.b16 %v4053
      %v4084 = vunpack.c.l.b16 %v4054
      %v4085 = vunpack.c.h.b16 %v4054
      %v4086 = vunpack.c.l.b16 %v4055
      %v4087 = vunpack.c.h.b16 %v4055
      %v4088 = vunpack.c.l.b16 %v4056
      %v4089 = vunpack.c.h.b16 %v4056
      %v4090 = vunpack.c.l.b16 %v4057
      %v4091 = vunpack.c.h.b16 %v4057
      %v4092 = vunpack.c.l.b16 %v4058
      %v4093 = vunpack.c.h.b16 %v4058
      %v4094 = vunpack.c.l.b16 %v4059
      %v4095 = vunpack.c.h.b16 %v4059
      %v4096 = vunpack.c.l.b16 %v4060
      %v4097 = vunpack.c.h.b16 %v4060
      %v4098 = vunpack.c.l.b16 %v4061
      %v4099 = vunpack.c.h.b16 %v4061
      %v4100 = vunpack.c.l.b16 %v4062
      %v4101 = vunpack.c.h.b16 %v4062
      %v4102 = vunpack.c.l.b16 %v4063
      %v4103 = vunpack.c.h.b16 %v4063
      %v4104 = vunpack.c.l.b16 %v4064
      %v4105 = vunpack.c.h.b16 %v4064
      %v4106 = vunpack.c.l.b16 %v4065
      %v4107 = vunpack.c.h.b16 %v4065
      %v4108 = vpack.c.b16 %v4082, %v4080
      %v4109 = vpack.c.b16 %v4083, %v4081
      %v4110 = vpack.c.b16 %v4086, %v4084
      %v4111 = vpack.c.b16 %v4087, %v4085
      %v4112 = vpack.c.b16 %v4090, %v4088
      %v4113 = vpack.c.b16 %v4091, %v4089
      %v4114 = vpack.c.b16 %v4094, %v4092
      %v4115 = vpack.c.b16 %v4095, %v4093
      %v4116 = vpack.c.b16 %v4098, %v4096
      %v4117 = vpack.c.b16 %v4099, %v4097
      %v4118 = vpack.c.b16 %v4102, %v4100
      %v4119 = vpack.c.b16 %v4103, %v4101
      %v4120 = vpack.c.b16 %v4106, %v4104
      %v4121 = vpack.c.b16 %v4107, %v4105
      %v4137 = vsel %vm3402, %v3301, 0
      %4139 = vmatprep.subr.bf16.mxu0 %v4109
      %4140 = vmatpush1.bf16.msra.mxu0 %v4108
      %4141 = vmatprep.subr.bf16.mxu0 %v4111
      %4142 = vmatpush1.bf16.msra.mxu0 %v4110
      %4143 = vmatprep.subr.bf16.mxu0 %v4113
      %4144 = vmatpush1.bf16.msra.mxu0 %v4112
      %4145 = vmatprep.subr.bf16.mxu0 %v4115
      %4146 = vmatpush1.bf16.msra.mxu0 %v4114
      %4147 = vmatprep.subr.bf16.mxu0 %v4117
      %4148 = vmatpush1.bf16.msra.mxu0 %v4116
      %4149 = vmatprep.subr.bf16.mxu0 %v4119
      %4150 = vmatpush1.bf16.msra.mxu0 %v4118
      %4151 = vmatprep.subr.bf16.mxu0 %v4121
      %4152 = vmatpush1.bf16.msra.mxu0 %v4120
      %4153 = vmatprep.subr.bf16.mxu0 0
      %4154 = vmatpush1.bf16.msra.mxu0 0
      %4155 = vmatprep.subr.bf16.mxu0 0
      %4156 = vmatpush1.bf16.msra.mxu0 0
      %4157 = vmatprep.subr.bf16.mxu0 0
      %4158 = vmatpush1.bf16.msra.mxu0 0
      %4159 = vmatprep.subr.bf16.mxu0 0
      %4160 = vmatpush1.bf16.msra.mxu0 0
      %4161 = vmatprep.subr.bf16.mxu0 0
      %4162 = vmatpush1.bf16.msra.mxu0 0
      %4163 = vmatprep.subr.bf16.mxu0 0
      %4164 = vmatpush1.bf16.msra.mxu0 0
      %4165 = vmatprep.subr.bf16.mxu0 0
      %4166 = vmatpush1.bf16.msra.mxu0 0
      %4167 = vmatprep.subr.bf16.mxu0 0
      %4168 = vmatpush1.bf16.msra.mxu0 0
      %4169 = vmatprep.subr.bf16.mxu0 0
      %4170 = vmatpush1.bf16.msra.mxu0 0
      %4171 = vmatprep.mubr.bf16.mxu0 0
      %4172 = vmatmul.mubr.bf16.gmra.mrb[0].mxu0 %v3578
      %v4173 = vpop.f32.mrb[0].mxu0
      %v4174 = vadd.f32 0.0, %v4173
      %v4175 = vpop.f32.mrb[0].mxu0
      %v4176 = vadd.f32 0.0, %v4175
      %v4177 = vpop.f32.mrb[0].mxu0
      %v4178 = vadd.f32 0.0, %v4177
      %v4179 = vpop.f32.mrb[0].mxu0
      %v4180 = vadd.f32 0.0, %v4179
      %4181 = vmatprep.mubr.bf16.mxu0 0
      %4182 = vmatmul.mubr.bf16.gmra.mrb[0].mxu0 %v3581
      %v4183 = vpop.f32.mrb[0].mxu0
      %v4184 = vadd.f32 0.0, %v4183
      %v4185 = vpop.f32.mrb[0].mxu0
      %v4186 = vadd.f32 0.0, %v4185
      %v4187 = vpop.f32.mrb[0].mxu0
      %v4188 = vadd.f32 0.0, %v4187
      %v4189 = vpop.f32.mrb[0].mxu0
      %v4190 = vadd.f32 0.0, %v4189
      %4191 = vmatprep.mubr.bf16.mxu0 0
      %4192 = vmatmul.mubr.bf16.gmra.mrb[0].mxu0 %v3584
      %v4193 = vpop.f32.mrb[0].mxu0
      %v4194 = vadd.f32 0.0, %v4193
      %v4195 = vpop.f32.mrb[0].mxu0
      %v4196 = vadd.f32 0.0, %v4195
      %v4197 = vpop.f32.mrb[0].mxu0
      %v4198 = vadd.f32 0.0, %v4197
      %v4199 = vpop.f32.mrb[0].mxu0
      %v4200 = vadd.f32 0.0, %v4199
      %4201 = vmatprep.mubr.bf16.mxu0 0
      %4202 = vmatmul.mubr.bf16.gmra.mrb[0].mxu0 %v3755
      %v4203 = vpop.f32.mrb[0].mxu0
      %v4204 = vadd.f32 0.0, %v4203
      %v4205 = vpop.f32.mrb[0].mxu0
      %v4206 = vadd.f32 0.0, %v4205
      %v4207 = vpop.f32.mrb[0].mxu0
      %v4208 = vadd.f32 0.0, %v4207
      %v4209 = vpop.f32.mrb[0].mxu0
      %v4210 = vadd.f32 0.0, %v4209
      %4211 = vmatprep.mubr.bf16.mxu0 0
      %4212 = vmatmul.mubr.bf16.gmra.mrb[0].mxu0 %v4137
      %v4213 = vpop.f32.mrb[0].mxu0
      %v4214 = vadd.f32 0.0, %v4213
      %v4215 = vpop.f32.mrb[0].mxu0
      %v4216 = vadd.f32 0.0, %v4215
      %v4217 = vpop.f32.mrb[0].mxu0
      %v4218 = vadd.f32 0.0, %v4217
      %v4219 = vpop.f32.mrb[0].mxu0
      %v4220 = vadd.f32 0.0, %v4219
      %4221 = vdwg.mxu0
      %v4222 = vadd.f32 %v4031, %v4174
      %v4223 = vadd.f32 %v4032, %v4176
      %v4224 = vadd.f32 %v4033, %v4178
      %v4225 = vadd.f32 %v4034, %v4180
      %v4226 = vadd.f32 %v4035, %v4184
      %v4227 = vadd.f32 %v4036, %v4186
      %v4228 = vadd.f32 %v4037, %v4188
      %v4229 = vadd.f32 %v4038, %v4190
      %v4230 = vadd.f32 %v4039, %v4194
      %v4231 = vadd.f32 %v4040, %v4196
      %v4232 = vadd.f32 %v4041, %v4198
      %v4233 = vadd.f32 %v4042, %v4200
      %v4234 = vadd.f32 %v4043, %v4204
      %v4235 = vadd.f32 %v4044, %v4206
      %v4236 = vadd.f32 %v4045, %v4208
      %v4237 = vadd.f32 %v4046, %v4210
      %v4238 = vadd.f32 %v4047, %v4214
      %v4239 = vadd.f32 %v4048, %v4216
      %v4240 = vadd.f32 %v4049, %v4218
      %v4241 = vadd.f32 %v4050, %v4220
      %4242 = vmatprep.subr.bf16.mxu0 %v3375
      %4243 = vmatpush1.bf16.msra.mxu0 %v3374
      %4244 = vmatprep.subr.bf16.mxu0 %v3377
      %4245 = vmatpush1.bf16.msra.mxu0 %v3376
      %4246 = vmatprep.subr.bf16.mxu0 %v3379
      %4247 = vmatpush1.bf16.msra.mxu0 %v3378
      %4248 = vmatprep.subr.bf16.mxu0 %v3381
      %4249 = vmatpush1.bf16.msra.mxu0 %v3380
      %4250 = vmatprep.subr.bf16.mxu0 %v3383
      %4251 = vmatpush1.bf16.msra.mxu0 %v3382
      %4252 = vmatprep.subr.bf16.mxu0 %v3385
      %4253 = vmatpush1.bf16.msra.mxu0 %v3384
      %4254 = vmatprep.subr.bf16.mxu0 %v3387
      %4255 = vmatpush1.bf16.msra.mxu0 %v3386
      %4256 = vmatprep.subr.bf16.mxu0 0
      %4257 = vmatpush1.bf16.msra.mxu0 0
      %4258 = vmatprep.subr.bf16.mxu0 0
      %4259 = vmatpush1.bf16.msra.mxu0 0
      %4260 = vmatprep.subr.bf16.mxu0 0
      %4261 = vmatpush1.bf16.msra.mxu0 0
      %4262 = vmatprep.subr.bf16.mxu0 0
      %4263 = vmatpush1.bf16.msra.mxu0 0
      %4264 = vmatprep.subr.bf16.mxu0 0
      %4265 = vmatpush1.bf16.msra.mxu0 0
      %4266 = vmatprep.subr.bf16.mxu0 0
      %4267 = vmatpush1.bf16.msra.mxu0 0
      %4268 = vmatprep.subr.bf16.mxu0 0
      %4269 = vmatpush1.bf16.msra.mxu0 0
      %4270 = vmatprep.subr.bf16.mxu0 0
      %4271 = vmatpush1.bf16.msra.mxu0 0
      %4272 = vmatprep.subr.bf16.mxu0 0
      %4273 = vmatpush1.bf16.msra.mxu0 0
      %4274 = vmatprep.mubr.bf16.mxu0 0
      %4275 = vmatmul.mubr.bf16.gmra.mrb[0].mxu0 %v3575
      %v4276 = vpop.f32.mrb[0].mxu0
      %v4277 = vadd.f32 0.0, %v4276
      %v4278 = vpop.f32.mrb[0].mxu0
      %v4279 = vadd.f32 0.0, %v4278
      %v4280 = vpop.f32.mrb[0].mxu0
      %v4281 = vadd.f32 0.0, %v4280
      %v4282 = vpop.f32.mrb[0].mxu0
      %v4283 = vadd.f32 0.0, %v4282
      %4284 = vmatprep.mubr.bf16.mxu0 0
      %4285 = vmatmul.mubr.bf16.gmra.mrb[0].mxu0 %v3578
      %v4286 = vpop.f32.mrb[0].mxu0
      %v4287 = vadd.f32 0.0, %v4286
      %v4288 = vpop.f32.mrb[0].mxu0
      %v4289 = vadd.f32 0.0, %v4288
      %v4290 = vpop.f32.mrb[0].mxu0
      %v4291 = vadd.f32 0.0, %v4290
      %v4292 = vpop.f32.mrb[0].mxu0
      %v4293 = vadd.f32 0.0, %v4292
      %4294 = vmatprep.mubr.bf16.mxu0 0
      %4295 = vmatmul.mubr.bf16.gmra.mrb[0].mxu0 %v3581
      %v4296 = vpop.f32.mrb[0].mxu0
      %v4297 = vadd.f32 0.0, %v4296
      %v4298 = vpop.f32.mrb[0].mxu0
      %v4299 = vadd.f32 0.0, %v4298
      %v4300 = vpop.f32.mrb[0].mxu0
      %v4301 = vadd.f32 0.0, %v4300
      %v4302 = vpop.f32.mrb[0].mxu0
      %v4303 = vadd.f32 0.0, %v4302
      %4304 = vmatprep.mubr.bf16.mxu0 0
      %4305 = vmatmul.mubr.bf16.gmra.mrb[0].mxu0 %v3584
      %v4306 = vpop.f32.mrb[0].mxu0
      %v4307 = vadd.f32 0.0, %v4306
      %v4308 = vpop.f32.mrb[0].mxu0
      %v4309 = vadd.f32 0.0, %v4308
      %v4310 = vpop.f32.mrb[0].mxu0
      %v4311 = vadd.f32 0.0, %v4310
      %v4312 = vpop.f32.mrb[0].mxu0
      %v4313 = vadd.f32 0.0, %v4312
      %4314 = vmatprep.mubr.bf16.mxu0 0
      %4315 = vmatmul.mubr.bf16.gmra.mrb[0].mxu0 %v3755
      %v4316 = vpop.f32.mrb[0].mxu0
      %v4317 = vadd.f32 0.0, %v4316
      %v4318 = vpop.f32.mrb[0].mxu0
      %v4319 = vadd.f32 0.0, %v4318
      %v4320 = vpop.f32.mrb[0].mxu0
      %v4321 = vadd.f32 0.0, %v4320
      %v4322 = vpop.f32.mrb[0].mxu0
      %v4323 = vadd.f32 0.0, %v4322
      %4324 = vdwg.mxu0
      %4325 = vmatprep.subr.bf16.mxu0 %v3544
      %4326 = vmatpush1.bf16.msra.mxu0 %v3543
      %4327 = vmatprep.subr.bf16.mxu0 %v3546
      %4328 = vmatpush1.bf16.msra.mxu0 %v3545
      %4329 = vmatprep.subr.bf16.mxu0 %v3548
      %4330 = vmatpush1.bf16.msra.mxu0 %v3547
      %4331 = vmatprep.subr.bf16.mxu0 %v3550
      %4332 = vmatpush1.bf16.msra.mxu0 %v3549
      %4333 = vmatprep.subr.bf16.mxu0 %v3552
      %4334 = vmatpush1.bf16.msra.mxu0 %v3551
      %4335 = vmatprep.subr.bf16.mxu0 %v3554
      %4336 = vmatpush1.bf16.msra.mxu0 %v3553
      %4337 = vmatprep.subr.bf16.mxu0 %v3556
      %4338 = vmatpush1.bf16.msra.mxu0 %v3555
      %4339 = vmatprep.subr.bf16.mxu0 0
      %4340 = vmatpush1.bf16.msra.mxu0 0
      %4341 = vmatprep.subr.bf16.mxu0 0
      %4342 = vmatpush1.bf16.msra.mxu0 0
      %4343 = vmatprep.subr.bf16.mxu0 0
      %4344 = vmatpush1.bf16.msra.mxu0 0
      %4345 = vmatprep.subr.bf16.mxu0 0
      %4346 = vmatpush1.bf16.msra.mxu0 0
      %4347 = vmatprep.subr.bf16.mxu0 0
      %4348 = vmatpush1.bf16.msra.mxu0 0
      %4349 = vmatprep.subr.bf16.mxu0 0
      %4350 = vmatpush1.bf16.msra.mxu0 0
      %4351 = vmatprep.subr.bf16.mxu0 0
      %4352 = vmatpush1.bf16.msra.mxu0 0
      %4353 = vmatprep.subr.bf16.mxu0 0
      %4354 = vmatpush1.bf16.msra.mxu0 0
      %4355 = vmatprep.subr.bf16.mxu0 0
      %4356 = vmatpush1.bf16.msra.mxu0 0
      %4357 = vmatprep.mubr.bf16.mxu0 0
      %4358 = vmatmul.mubr.bf16.gmra.mrb[0].mxu0 %v3404
      %v4359 = vpop.f32.mrb[0].mxu0
      %v4360 = vadd.f32 %v4277, %v4359
      %v4361 = vpop.f32.mrb[0].mxu0
      %v4362 = vadd.f32 %v4279, %v4361
      %v4363 = vpop.f32.mrb[0].mxu0
      %v4364 = vadd.f32 %v4281, %v4363
      %v4365 = vpop.f32.mrb[0].mxu0
      %v4366 = vadd.f32 %v4283, %v4365
      %4367 = vmatprep.mubr.bf16.mxu0 0
      %4368 = vmatmul.mubr.bf16.gmra.mrb[0].mxu0 %v3407
      %v4369 = vpop.f32.mrb[0].mxu0
      %v4370 = vadd.f32 %v4287, %v4369
      %v4371 = vpop.f32.mrb[0].mxu0
      %v4372 = vadd.f32 %v4289, %v4371
      %v4373 = vpop.f32.mrb[0].mxu0
      %v4374 = vadd.f32 %v4291, %v4373
      %v4375 = vpop.f32.mrb[0].mxu0
      %v4376 = vadd.f32 %v4293, %v4375
      %4377 = vmatprep.mubr.bf16.mxu0 0
      %4378 = vmatmul.mubr.bf16.gmra.mrb[0].mxu0 %v3410
      %v4379 = vpop.f32.mrb[0].mxu0
      %v4380 = vadd.f32 %v4297, %v4379
      %v4381 = vpop.f32.mrb[0].mxu0
      %v4382 = vadd.f32 %v4299, %v4381
      %v4383 = vpop.f32.mrb[0].mxu0
      %v4384 = vadd.f32 %v4301, %v4383
      %v4385 = vpop.f32.mrb[0].mxu0
      %v4386 = vadd.f32 %v4303, %v4385
      %4387 = vmatprep.mubr.bf16.mxu0 0
      %4388 = vmatmul.mubr.bf16.gmra.mrb[0].mxu0 %v3413
      %v4389 = vpop.f32.mrb[0].mxu0
      %v4390 = vadd.f32 %v4307, %v4389
      %v4391 = vpop.f32.mrb[0].mxu0
      %v4392 = vadd.f32 %v4309, %v4391
      %v4393 = vpop.f32.mrb[0].mxu0
      %v4394 = vadd.f32 %v4311, %v4393
      %v4395 = vpop.f32.mrb[0].mxu0
      %v4396 = vadd.f32 %v4313, %v4395
      %4397 = vmatprep.mubr.bf16.mxu0 0
      %4398 = vmatmul.mubr.bf16.gmra.mrb[0].mxu0 %v3416
      %v4399 = vpop.f32.mrb[0].mxu0
      %v4400 = vadd.f32 %v4317, %v4399
      %v4401 = vpop.f32.mrb[0].mxu0
      %v4402 = vadd.f32 %v4319, %v4401
      %v4403 = vpop.f32.mrb[0].mxu0
      %v4404 = vadd.f32 %v4321, %v4403
      %v4405 = vpop.f32.mrb[0].mxu0
      %v4406 = vadd.f32 %v4323, %v4405
      %4407 = vdwg.mxu0
      %4408 = vmatprep.subr.bf16.mxu0 %v3727
      %4409 = vmatpush1.bf16.msra.mxu0 %v3726
      %4410 = vmatprep.subr.bf16.mxu0 %v3729
      %4411 = vmatpush1.bf16.msra.mxu0 %v3728
      %4412 = vmatprep.subr.bf16.mxu0 %v3731
      %4413 = vmatpush1.bf16.msra.mxu0 %v3730
      %4414 = vmatprep.subr.bf16.mxu0 %v3733
      %4415 = vmatpush1.bf16.msra.mxu0 %v3732
      %4416 = vmatprep.subr.bf16.mxu0 %v3735
      %4417 = vmatpush1.bf16.msra.mxu0 %v3734
      %4418 = vmatprep.subr.bf16.mxu0 %v3737
      %4419 = vmatpush1.bf16.msra.mxu0 %v3736
      %4420 = vmatprep.subr.bf16.mxu0 %v3739
      %4421 = vmatpush1.bf16.msra.mxu0 %v3738
      %4422 = vmatprep.subr.bf16.mxu0 0
      %4423 = vmatpush1.bf16.msra.mxu0 0
      %4424 = vmatprep.subr.bf16.mxu0 0
      %4425 = vmatpush1.bf16.msra.mxu0 0
      %4426 = vmatprep.subr.bf16.mxu0 0
      %4427 = vmatpush1.bf16.msra.mxu0 0
      %4428 = vmatprep.subr.bf16.mxu0 0
      %4429 = vmatpush1.bf16.msra.mxu0 0
      %4430 = vmatprep.subr.bf16.mxu0 0
      %4431 = vmatpush1.bf16.msra.mxu0 0
      %4432 = vmatprep.subr.bf16.mxu0 0
      %4433 = vmatpush1.bf16.msra.mxu0 0
      %4434 = vmatprep.subr.bf16.mxu0 0
      %4435 = vmatpush1.bf16.msra.mxu0 0
      %4436 = vmatprep.subr.bf16.mxu0 0
      %4437 = vmatpush1.bf16.msra.mxu0 0
      %4438 = vmatprep.subr.bf16.mxu0 0
      %4439 = vmatpush1.bf16.msra.mxu0 0
      %4440 = vmatprep.mubr.bf16.mxu0 0
      %4441 = vmatmul.mubr.bf16.gmra.mrb[0].mxu0 %v3407
      %v4442 = vpop.f32.mrb[0].mxu0
      %v4443 = vadd.f32 0.0, %v4442
      %v4444 = vpop.f32.mrb[0].mxu0
      %v4445 = vadd.f32 0.0, %v4444
      %v4446 = vpop.f32.mrb[0].mxu0
      %v4447 = vadd.f32 0.0, %v4446
      %v4448 = vpop.f32.mrb[0].mxu0
      %v4449 = vadd.f32 0.0, %v4448
      %4450 = vmatprep.mubr.bf16.mxu0 0
      %4451 = vmatmul.mubr.bf16.gmra.mrb[0].mxu0 %v3410
      %v4452 = vpop.f32.mrb[0].mxu0
      %v4453 = vadd.f32 0.0, %v4452
      %v4454 = vpop.f32.mrb[0].mxu0
      %v4455 = vadd.f32 0.0, %v4454
      %v4456 = vpop.f32.mrb[0].mxu0
      %v4457 = vadd.f32 0.0, %v4456
      %v4458 = vpop.f32.mrb[0].mxu0
      %v4459 = vadd.f32 0.0, %v4458
      %4460 = vmatprep.mubr.bf16.mxu0 0
      %4461 = vmatmul.mubr.bf16.gmra.mrb[0].mxu0 %v3413
      %v4462 = vpop.f32.mrb[0].mxu0
      %v4463 = vadd.f32 0.0, %v4462
      %v4464 = vpop.f32.mrb[0].mxu0
      %v4465 = vadd.f32 0.0, %v4464
      %v4466 = vpop.f32.mrb[0].mxu0
      %v4467 = vadd.f32 0.0, %v4466
      %v4468 = vpop.f32.mrb[0].mxu0
      %v4469 = vadd.f32 0.0, %v4468
      %4470 = vmatprep.mubr.bf16.mxu0 0
      %4471 = vmatmul.mubr.bf16.gmra.mrb[0].mxu0 %v3416
      %v4472 = vpop.f32.mrb[0].mxu0
      %v4473 = vadd.f32 0.0, %v4472
      %v4474 = vpop.f32.mrb[0].mxu0
      %v4475 = vadd.f32 0.0, %v4474
      %v4476 = vpop.f32.mrb[0].mxu0
      %v4477 = vadd.f32 0.0, %v4476
      %v4478 = vpop.f32.mrb[0].mxu0
      %v4479 = vadd.f32 0.0, %v4478
      %4480 = vmatprep.mubr.bf16.mxu0 0
      %4481 = vmatmul.mubr.bf16.gmra.mrb[0].mxu0 %v3946
      %v4482 = vpop.f32.mrb[0].mxu0
      %v4483 = vadd.f32 0.0, %v4482
      %v4484 = vpop.f32.mrb[0].mxu0
      %v4485 = vadd.f32 0.0, %v4484
      %v4486 = vpop.f32.mrb[0].mxu0
      %v4487 = vadd.f32 0.0, %v4486
      %v4488 = vpop.f32.mrb[0].mxu0
      %v4489 = vadd.f32 0.0, %v4488
      %4490 = vdwg.mxu0
      %v4491 = vadd.f32 %v4360, %v4443
      %v4492 = vadd.f32 %v4362, %v4445
      %v4493 = vadd.f32 %v4364, %v4447
      %v4494 = vadd.f32 %v4366, %v4449
      %v4495 = vadd.f32 %v4370, %v4453
      %v4496 = vadd.f32 %v4372, %v4455
      %v4497 = vadd.f32 %v4374, %v4457
      %v4498 = vadd.f32 %v4376, %v4459
      %v4499 = vadd.f32 %v4380, %v4463
      %v4500 = vadd.f32 %v4382, %v4465
      %v4501 = vadd.f32 %v4384, %v4467
      %v4502 = vadd.f32 %v4386, %v4469
      %v4503 = vadd.f32 %v4390, %v4473
      %v4504 = vadd.f32 %v4392, %v4475
      %v4505 = vadd.f32 %v4394, %v4477
      %v4506 = vadd.f32 %v4396, %v4479
      %v4507 = vadd.f32 %v4400, %v4483
      %v4508 = vadd.f32 %v4402, %v4485
      %v4509 = vadd.f32 %v4404, %v4487
      %v4510 = vadd.f32 %v4406, %v4489
      %4511 = vmatprep.subr.bf16.mxu0 %v3918
      %4512 = vmatpush1.bf16.msra.mxu0 %v3917
      %4513 = vmatprep.subr.bf16.mxu0 %v3920
      %4514 = vmatpush1.bf16.msra.mxu0 %v3919
      %4515 = vmatprep.subr.bf16.mxu0 %v3922
      %4516 = vmatpush1.bf16.msra.mxu0 %v3921
      %4517 = vmatprep.subr.bf16.mxu0 %v3924
      %4518 = vmatpush1.bf16.msra.mxu0 %v3923
      %4519 = vmatprep.subr.bf16.mxu0 %v3926
      %4520 = vmatpush1.bf16.msra.mxu0 %v3925
      %4521 = vmatprep.subr.bf16.mxu0 %v3928
      %4522 = vmatpush1.bf16.msra.mxu0 %v3927
      %4523 = vmatprep.subr.bf16.mxu0 %v3930
      %4524 = vmatpush1.bf16.msra.mxu0 %v3929
      %4525 = vmatprep.subr.bf16.mxu0 0
      %4526 = vmatpush1.bf16.msra.mxu0 0
      %4527 = vmatprep.subr.bf16.mxu0 0
      %4528 = vmatpush1.bf16.msra.mxu0 0
      %4529 = vmatprep.subr.bf16.mxu0 0
      %4530 = vmatpush1.bf16.msra.mxu0 0
      %4531 = vmatprep.subr.bf16.mxu0 0
      %4532 = vmatpush1.bf16.msra.mxu0 0
      %4533 = vmatprep.subr.bf16.mxu0 0
      %4534 = vmatpush1.bf16.msra.mxu0 0
      %4535 = vmatprep.subr.bf16.mxu0 0
      %4536 = vmatpush1.bf16.msra.mxu0 0
      %4537 = vmatprep.subr.bf16.mxu0 0
      %4538 = vmatpush1.bf16.msra.mxu0 0
      %4539 = vmatprep.subr.bf16.mxu0 0
      %4540 = vmatpush1.bf16.msra.mxu0 0
      %4541 = vmatprep.subr.bf16.mxu0 0
      %4542 = vmatpush1.bf16.msra.mxu0 0
      %4543 = vmatprep.mubr.bf16.mxu0 0
      %4544 = vmatmul.mubr.bf16.gmra.mrb[0].mxu0 %v3578
      %v4545 = vpop.f32.mrb[0].mxu0
      %v4546 = vadd.f32 0.0, %v4545
      %v4547 = vpop.f32.mrb[0].mxu0
      %v4548 = vadd.f32 0.0, %v4547
      %v4549 = vpop.f32.mrb[0].mxu0
      %v4550 = vadd.f32 0.0, %v4549
      %v4551 = vpop.f32.mrb[0].mxu0
      %v4552 = vadd.f32 0.0, %v4551
      %4553 = vmatprep.mubr.bf16.mxu0 0
      %4554 = vmatmul.mubr.bf16.gmra.mrb[0].mxu0 %v3581
      %v4555 = vpop.f32.mrb[0].mxu0
      %v4556 = vadd.f32 0.0, %v4555
      %v4557 = vpop.f32.mrb[0].mxu0
      %v4558 = vadd.f32 0.0, %v4557
      %v4559 = vpop.f32.mrb[0].mxu0
      %v4560 = vadd.f32 0.0, %v4559
      %v4561 = vpop.f32.mrb[0].mxu0
      %v4562 = vadd.f32 0.0, %v4561
      %4563 = vmatprep.mubr.bf16.mxu0 0
      %4564 = vmatmul.mubr.bf16.gmra.mrb[0].mxu0 %v3584
      %v4565 = vpop.f32.mrb[0].mxu0
      %v4566 = vadd.f32 0.0, %v4565
      %v4567 = vpop.f32.mrb[0].mxu0
      %v4568 = vadd.f32 0.0, %v4567
      %v4569 = vpop.f32.mrb[0].mxu0
      %v4570 = vadd.f32 0.0, %v4569
      %v4571 = vpop.f32.mrb[0].mxu0
      %v4572 = vadd.f32 0.0, %v4571
      %4573 = vmatprep.mubr.bf16.mxu0 0
      %4574 = vmatmul.mubr.bf16.gmra.mrb[0].mxu0 %v3755
      %v4575 = vpop.f32.mrb[0].mxu0
      %v4576 = vadd.f32 0.0, %v4575
      %v4577 = vpop.f32.mrb[0].mxu0
      %v4578 = vadd.f32 0.0, %v4577
      %v4579 = vpop.f32.mrb[0].mxu0
      %v4580 = vadd.f32 0.0, %v4579
      %v4581 = vpop.f32.mrb[0].mxu0
      %v4582 = vadd.f32 0.0, %v4581
      %4583 = vmatprep.mubr.bf16.mxu0 0
      %4584 = vmatmul.mubr.bf16.gmra.mrb[0].mxu0 %v4137
      %v4585 = vpop.f32.mrb[0].mxu0
      %v4586 = vadd.f32 0.0, %v4585
      %v4587 = vpop.f32.mrb[0].mxu0
      %v4588 = vadd.f32 0.0, %v4587
      %v4589 = vpop.f32.mrb[0].mxu0
      %v4590 = vadd.f32 0.0, %v4589
      %v4591 = vpop.f32.mrb[0].mxu0
      %v4592 = vadd.f32 0.0, %v4591
      %4593 = vdwg.mxu0
      %v4594 = vadd.f32 %v4491, %v4546
      %v4595 = vadd.f32 %v4492, %v4548
      %v4596 = vadd.f32 %v4493, %v4550
      %v4597 = vadd.f32 %v4494, %v4552
      %v4598 = vadd.f32 %v4495, %v4556
      %v4599 = vadd.f32 %v4496, %v4558
      %v4600 = vadd.f32 %v4497, %v4560
      %v4601 = vadd.f32 %v4498, %v4562
      %v4602 = vadd.f32 %v4499, %v4566
      %v4603 = vadd.f32 %v4500, %v4568
      %v4604 = vadd.f32 %v4501, %v4570
      %v4605 = vadd.f32 %v4502, %v4572
      %v4606 = vadd.f32 %v4503, %v4576
      %v4607 = vadd.f32 %v4504, %v4578
      %v4608 = vadd.f32 %v4505, %v4580
      %v4609 = vadd.f32 %v4506, %v4582
      %v4610 = vadd.f32 %v4507, %v4586
      %v4611 = vadd.f32 %v4508, %v4588
      %v4612 = vadd.f32 %v4509, %v4590
      %v4613 = vadd.f32 %v4510, %v4592
      %v4615 = vsel %vm3402, %v3302, 0
      %4617 = vmatprep.subr.bf16.mxu0 %v4109
      %4618 = vmatpush1.bf16.msra.mxu0 %v4108
      %4619 = vmatprep.subr.bf16.mxu0 %v4111
      %4620 = vmatpush1.bf16.msra.mxu0 %v4110
      %4621 = vmatprep.subr.bf16.mxu0 %v4113
      %4622 = vmatpush1.bf16.msra.mxu0 %v4112
      %4623 = vmatprep.subr.bf16.mxu0 %v4115
      %4624 = vmatpush1.bf16.msra.mxu0 %v4114
      %4625 = vmatprep.subr.bf16.mxu0 %v4117
      %4626 = vmatpush1.bf16.msra.mxu0 %v4116
      %4627 = vmatprep.subr.bf16.mxu0 %v4119
      %4628 = vmatpush1.bf16.msra.mxu0 %v4118
      %4629 = vmatprep.subr.bf16.mxu0 %v4121
      %4630 = vmatpush1.bf16.msra.mxu0 %v4120
      %4631 = vmatprep.subr.bf16.mxu0 0
      %4632 = vmatpush1.bf16.msra.mxu0 0
      %4633 = vmatprep.subr.bf16.mxu0 0
      %4634 = vmatpush1.bf16.msra.mxu0 0
      %4635 = vmatprep.subr.bf16.mxu0 0
      %4636 = vmatpush1.bf16.msra.mxu0 0
      %4637 = vmatprep.subr.bf16.mxu0 0
      %4638 = vmatpush1.bf16.msra.mxu0 0
      %4639 = vmatprep.subr.bf16.mxu0 0
      %4640 = vmatpush1.bf16.msra.mxu0 0
      %4641 = vmatprep.subr.bf16.mxu0 0
      %4642 = vmatpush1.bf16.msra.mxu0 0
      %4643 = vmatprep.subr.bf16.mxu0 0
      %4644 = vmatpush1.bf16.msra.mxu0 0
      %4645 = vmatprep.subr.bf16.mxu0 0
      %4646 = vmatpush1.bf16.msra.mxu0 0
      %4647 = vmatprep.subr.bf16.mxu0 0
      %4648 = vmatpush1.bf16.msra.mxu0 0
      %4649 = vmatprep.mubr.bf16.mxu0 0
      %4650 = vmatmul.mubr.bf16.gmra.mrb[0].mxu0 %v3410
      %v4651 = vpop.f32.mrb[0].mxu0
      %v4652 = vadd.f32 0.0, %v4651
      %v4653 = vpop.f32.mrb[0].mxu0
      %v4654 = vadd.f32 0.0, %v4653
      %v4655 = vpop.f32.mrb[0].mxu0
      %v4656 = vadd.f32 0.0, %v4655
      %v4657 = vpop.f32.mrb[0].mxu0
      %v4658 = vadd.f32 0.0, %v4657
      %4659 = vmatprep.mubr.bf16.mxu0 0
      %4660 = vmatmul.mubr.bf16.gmra.mrb[0].mxu0 %v3413
      %v4661 = vpop.f32.mrb[0].mxu0
      %v4662 = vadd.f32 0.0, %v4661
      %v4663 = vpop.f32.mrb[0].mxu0
      %v4664 = vadd.f32 0.0, %v4663
      %v4665 = vpop.f32.mrb[0].mxu0
      %v4666 = vadd.f32 0.0, %v4665
      %v4667 = vpop.f32.mrb[0].mxu0
      %v4668 = vadd.f32 0.0, %v4667
      %4669 = vmatprep.mubr.bf16.mxu0 0
      %4670 = vmatmul.mubr.bf16.gmra.mrb[0].mxu0 %v3416
      %v4671 = vpop.f32.mrb[0].mxu0
      %v4672 = vadd.f32 0.0, %v4671
      %v4673 = vpop.f32.mrb[0].mxu0
      %v4674 = vadd.f32 0.0, %v4673
      %v4675 = vpop.f32.mrb[0].mxu0
      %v4676 = vadd.f32 0.0, %v4675
      %v4677 = vpop.f32.mrb[0].mxu0
      %v4678 = vadd.f32 0.0, %v4677
      %4679 = vmatprep.mubr.bf16.mxu0 0
      %4680 = vmatmul.mubr.bf16.gmra.mrb[0].mxu0 %v3946
      %v4681 = vpop.f32.mrb[0].mxu0
      %v4682 = vadd.f32 0.0, %v4681
      %v4683 = vpop.f32.mrb[0].mxu0
      %v4684 = vadd.f32 0.0, %v4683
      %v4685 = vpop.f32.mrb[0].mxu0
      %v4686 = vadd.f32 0.0, %v4685
      %v4687 = vpop.f32.mrb[0].mxu0
      %v4688 = vadd.f32 0.0, %v4687
      %4689 = vmatprep.mubr.bf16.mxu0 0
      %4690 = vmatmul.mubr.bf16.gmra.mrb[0].mxu0 %v4615
      %v4691 = vpop.f32.mrb[0].mxu0
      %v4692 = vadd.f32 0.0, %v4691
      %v4693 = vpop.f32.mrb[0].mxu0
      %v4694 = vadd.f32 0.0, %v4693
      %v4695 = vpop.f32.mrb[0].mxu0
      %v4696 = vadd.f32 0.0, %v4695
      %v4697 = vpop.f32.mrb[0].mxu0
      %v4698 = vadd.f32 0.0, %v4697
      %4699 = vdwg.mxu0
      %v4700 = vadd.f32 %v4594, %v4652
      %v4701 = vadd.f32 %v4595, %v4654
      %v4702 = vadd.f32 %v4596, %v4656
      %v4703 = vadd.f32 %v4597, %v4658
      %v4704 = vadd.f32 %v4598, %v4662
      %v4705 = vadd.f32 %v4599, %v4664
      %v4706 = vadd.f32 %v4600, %v4666
      %v4707 = vadd.f32 %v4601, %v4668
      %v4708 = vadd.f32 %v4602, %v4672
      %v4709 = vadd.f32 %v4603, %v4674
      %v4710 = vadd.f32 %v4604, %v4676
      %v4711 = vadd.f32 %v4605, %v4678
      %v4712 = vadd.f32 %v4606, %v4682
      %v4713 = vadd.f32 %v4607, %v4684
      %v4714 = vadd.f32 %v4608, %v4686
      %v4715 = vadd.f32 %v4609, %v4688
      %v4716 = vadd.f32 %v4610, %v4692
      %v4717 = vadd.f32 %v4611, %v4694
      %v4718 = vadd.f32 %v4612, %v4696
      %v4719 = vadd.f32 %v4613, %v4698
      %v4720 = vmax.f32 %v4222, %v4223
      %v4721 = vmax.f32 %v4224, %v4225
      %v4722 = vmax.f32 %v4226, %v4227
      %v4723 = vmax.f32 %v4228, %v4229
      %v4724 = vmax.f32 %v4230, %v4231
      %v4725 = vmax.f32 %v4232, %v4233
      %v4726 = vmax.f32 %v4234, %v4235
      %v4727 = vmax.f32 %v4236, %v4237
      %v4728 = vmax.f32 %v4238, %v4239
      %v4729 = vmax.f32 %v4240, %v4241
      %v4730 = vmax.f32 %v4700, %v4701
      %v4731 = vmax.f32 %v4702, %v4703
      %v4732 = vmax.f32 %v4704, %v4705
      %v4733 = vmax.f32 %v4706, %v4707
      %v4734 = vmax.f32 %v4708, %v4709
      %v4735 = vmax.f32 %v4710, %v4711
      %v4736 = vmax.f32 %v4712, %v4713
      %v4737 = vmax.f32 %v4714, %v4715
      %v4738 = vmax.f32 %v4716, %v4717
      %v4739 = vmax.f32 %v4718, %v4719
      %v4740 = vmax.f32 %v4720, %v4730
      %v4741 = vmax.f32 %v4721, %v4731
      %v4742 = vmax.f32 %v4722, %v4732
      %v4743 = vmax.f32 %v4723, %v4733
      %v4744 = vmax.f32 %v4724, %v4734
      %v4745 = vmax.f32 %v4725, %v4735
      %v4746 = vmax.f32 %v4726, %v4736
      %v4747 = vmax.f32 %v4727, %v4737
      %v4748 = vmax.f32 %v4728, %v4738
      %v4749 = vmax.f32 %v4729, %v4739
      %v4750 = vld [vmem:[%s4] sm:$0x1]
      %v4752 = vlaneseq
      %v4753 = vshrl.u32 %v4752, 7
      %v4754 = vsub.s32 0, %v4753
      %v4755 = vrot.slane %v4750, %v4754
      %v4757 = vadd.f32 %v4740, %v4755
      %v4758 = vadd.f32 %v4741, %v4755
      %v4759 = vadd.f32 %v4742, %v4755
      %v4760 = vadd.f32 %v4743, %v4755
      %v4761 = vadd.f32 %v4744, %v4755
      %v4762 = vadd.f32 %v4745, %v4755
      %v4763 = vadd.f32 %v4746, %v4755
      %v4764 = vadd.f32 %v4747, %v4755
      %v4765 = vadd.f32 %v4748, %v4755
      %v4766 = vadd.f32 %v4749, %v4755
      %v4767 = vmax.f32 %v4757, 0.0
      %v4768 = vmax.f32 %v4758, 0.0
      %v4769 = vmax.f32 %v4759, 0.0
      %v4770 = vmax.f32 %v4760, 0.0
      %v4771 = vmax.f32 %v4761, 0.0
      %v4772 = vmax.f32 %v4762, 0.0
      %v4773 = vmax.f32 %v4763, 0.0
      %v4774 = vmax.f32 %v4764, 0.0
      %v4775 = vmax.f32 %v4765, 0.0
      %v4776 = vmax.f32 %v4766, 0.0
      %v4777 = vpack.c.bf16 %v4768, %v4767
      %v4778 = vpack.c.bf16 %v4770, %v4769
      %v4779 = vpack.c.bf16 %v4772, %v4771
      %v4780 = vpack.c.bf16 %v4774, %v4773
      %v4781 = vpack.c.bf16 %v4776, %v4775
      %v4782 = vld [vmem:[%s5] sm:$0xf]
      %v4783 = vld [vmem:[%s5 + $0x4] sm:$0xf]
      %v4784 = vld [vmem:[%s5 + $0x8] sm:$0xf]
      %v4785 = vld [vmem:[%s5 + $0xc] sm:$0xf]
      %v4786 = vld [vmem:[%s5 + $0x10] sm:$0xf]
      %v4787 = vld [vmem:[%s5 + $0x14] sm:$0xf]
      %v4788 = vld [vmem:[%s5 + $0x18] sm:$0xf]
      %v4789 = vld [vmem:[%s5 + $0x1c] sm:$0xf]
      %v4790 = vld [vmem:[%s5 + $0x20] sm:$0xf]
      %v4791 = vld [vmem:[%s5 + $0x24] sm:$0xf]
      %s4792 = scalar_lea.vmem %s5, 40
      %v4793 = vld [vmem:[%s4792] sm:$0xf]
      %v4794 = vld [vmem:[%s4792 + $0x4] sm:$0xf]
      %v4795 = vld [vmem:[%s4792 + $0x8] sm:$0xf]
      %v4796 = vld [vmem:[%s4792 + $0xc] sm:$0xf]
      %v4797 = vld [vmem:[%s4792 + $0x10] sm:$0xf]
      %v4798 = vld [vmem:[%s4792 + $0x14] sm:$0xf]
      %v4799 = vld [vmem:[%s4792 + $0x18] sm:$0xf]
      %v4800 = vld [vmem:[%s4792 + $0x1c] sm:$0xf]
      %v4801 = vld [vmem:[%s4792 + $0x20] sm:$0xf]
      %v4802 = vld [vmem:[%s4792 + $0x24] sm:$0xf]
      %v4813 = vunpack.c.l.b16 %v4793
      %v4814 = vunpack.c.l.b16 %v4794
      %v4815 = vunpack.c.l.b16 %v4795
      %v4816 = vunpack.c.l.b16 %v4796
      %v4817 = vunpack.c.l.b16 %v4797
      %v4818 = vunpack.c.l.b16 %v4798
      %v4819 = vunpack.c.l.b16 %v4799
      %v4820 = vunpack.c.l.b16 %v4800
      %v4821 = vunpack.c.l.b16 %v4801
      %v4822 = vunpack.c.l.b16 %v4802
      %v4823 = vpack.c.b16 %v4814, %v4813
      %v4824 = vpack.c.b16 %v4816, %v4815
      %v4825 = vpack.c.b16 %v4818, %v4817
      %v4826 = vpack.c.b16 %v4820, %v4819
      %v4827 = vpack.c.b16 %v4822, %v4821
      %vm4833 = vcmask 654336
      %v4835 = vsel %vm4833, %v4778, 0
      %4837 = vmatprep.subr.bf16.mxu0 0
      %4838 = vmatpush1.bf16.msra.mxu0 %v4823
      %4839 = vmatprep.subr.bf16.mxu0 0
      %4840 = vmatpush1.bf16.msra.mxu0 %v4824
      %4841 = vmatprep.subr.bf16.mxu0 0
      %4842 = vmatpush1.bf16.msra.mxu0 %v4825
      %4843 = vmatprep.subr.bf16.mxu0 0
      %4844 = vmatpush1.bf16.msra.mxu0 %v4826
      %4845 = vmatprep.subr.bf16.mxu0 0
      %4846 = vmatpush1.bf16.msra.mxu0 %v4827
      %4847 = vmatprep.subr.bf16.mxu0 0
      %4848 = vmatpush1.bf16.msra.mxu0 0
      %4849 = vmatprep.subr.bf16.mxu0 0
      %4850 = vmatpush1.bf16.msra.mxu0 0
      %4851 = vmatprep.subr.bf16.mxu0 0
      %4852 = vmatpush1.bf16.msra.mxu0 0
      %4853 = vmatprep.subr.bf16.mxu0 0
      %4854 = vmatpush1.bf16.msra.mxu0 0
      %4855 = vmatprep.subr.bf16.mxu0 0
      %4856 = vmatpush1.bf16.msra.mxu0 0
      %4857 = vmatprep.subr.bf16.mxu0 0
      %4858 = vmatpush1.bf16.msra.mxu0 0
      %4859 = vmatprep.subr.bf16.mxu0 0
      %4860 = vmatpush1.bf16.msra.mxu0 0
      %4861 = vmatprep.subr.bf16.mxu0 0
      %4862 = vmatpush1.bf16.msra.mxu0 0
      %4863 = vmatprep.subr.bf16.mxu0 0
      %4864 = vmatpush1.bf16.msra.mxu0 0
      %4865 = vmatprep.subr.bf16.mxu0 0
      %4866 = vmatpush1.bf16.msra.mxu0 0
      %4867 = vmatprep.subr.bf16.mxu0 0
      %4868 = vmatpush1.bf16.msra.mxu0 0
      %4869 = vmatprep.mubr.bf16.mxu0 0
      %4870 = vmatmul.mubr.bf16.gmra.mrb[0].mxu0 %v4835
      %v4871 = vpop.f32.mrb[0].mxu0
      %v4872 = vadd.f32 0.0, %v4871
      %v4873 = vpop.f32.mrb[0].mxu0
      %v4874 = vpop.f32.mrb[0].mxu0
      %v4875 = vadd.f32 0.0, %v4874
      %v4876 = vpop.f32.mrb[0].mxu0
      %4877 = vdwg.mxu0
      %v4888 = vunpack.c.l.b16 %v4782
      %v4889 = vunpack.c.l.b16 %v4783
      %v4890 = vunpack.c.l.b16 %v4784
      %v4891 = vunpack.c.l.b16 %v4785
      %v4892 = vunpack.c.l.b16 %v4786
      %v4893 = vunpack.c.l.b16 %v4787
      %v4894 = vunpack.c.l.b16 %v4788
      %v4895 = vunpack.c.l.b16 %v4789
      %v4896 = vunpack.c.l.b16 %v4790
      %v4897 = vunpack.c.l.b16 %v4791
      %v4898 = vpack.c.b16 %v4889, %v4888
      %v4899 = vpack.c.b16 %v4891, %v4890
      %v4900 = vpack.c.b16 %v4893, %v4892
      %v4901 = vpack.c.b16 %v4895, %v4894
      %v4902 = vpack.c.b16 %v4897, %v4896
      %v4909 = vsel %vm4833, %v4777, 0
      %4911 = vmatprep.subr.bf16.mxu0 0
      %4912 = vmatpush1.bf16.msra.mxu0 %v4898
      %4913 = vmatprep.subr.bf16.mxu0 0
      %4914 = vmatpush1.bf16.msra.mxu0 %v4899
      %4915 = vmatprep.subr.bf16.mxu0 0
      %4916 = vmatpush1.bf16.msra.mxu0 %v4900
      %4917 = vmatprep.subr.bf16.mxu0 0
      %4918 = vmatpush1.bf16.msra.mxu0 %v4901
      %4919 = vmatprep.subr.bf16.mxu0 0
      %4920 = vmatpush1.bf16.msra.mxu0 %v4902
      %4921 = vmatprep.subr.bf16.mxu0 0
      %4922 = vmatpush1.bf16.msra.mxu0 0
      %4923 = vmatprep.subr.bf16.mxu0 0
      %4924 = vmatpush1.bf16.msra.mxu0 0
      %4925 = vmatprep.subr.bf16.mxu0 0
      %4926 = vmatpush1.bf16.msra.mxu0 0
      %4927 = vmatprep.subr.bf16.mxu0 0
      %4928 = vmatpush1.bf16.msra.mxu0 0
      %4929 = vmatprep.subr.bf16.mxu0 0
      %4930 = vmatpush1.bf16.msra.mxu0 0
      %4931 = vmatprep.subr.bf16.mxu0 0
      %4932 = vmatpush1.bf16.msra.mxu0 0
      %4933 = vmatprep.subr.bf16.mxu0 0
      %4934 = vmatpush1.bf16.msra.mxu0 0
      %4935 = vmatprep.subr.bf16.mxu0 0
      %4936 = vmatpush1.bf16.msra.mxu0 0
      %4937 = vmatprep.subr.bf16.mxu0 0
      %4938 = vmatpush1.bf16.msra.mxu0 0
      %4939 = vmatprep.subr.bf16.mxu0 0
      %4940 = vmatpush1.bf16.msra.mxu0 0
      %4941 = vmatprep.subr.bf16.mxu0 0
      %4942 = vmatpush1.bf16.msra.mxu0 0
      %4943 = vmatprep.mubr.bf16.mxu0 0
      %4944 = vmatmul.mubr.bf16.gmra.mrb[0].mxu0 %v4909
      %v4945 = vpop.f32.mrb[0].mxu0
      %v4946 = vadd.f32 %v4872, %v4945
      %v4947 = vpop.f32.mrb[0].mxu0
      %v4948 = vpop.f32.mrb[0].mxu0
      %v4949 = vadd.f32 %v4875, %v4948
      %v4950 = vpop.f32.mrb[0].mxu0
      %4951 = vdwg.mxu0
      %s4952 = scalar_lea.vmem %s5, 80
      %v4953 = vld [vmem:[%s4952] sm:$0xf]
      %v4954 = vld [vmem:[%s4952 + $0x4] sm:$0xf]
      %v4955 = vld [vmem:[%s4952 + $0x8] sm:$0xf]
      %v4956 = vld [vmem:[%s4952 + $0xc] sm:$0xf]
      %v4957 = vld [vmem:[%s4952 + $0x10] sm:$0xf]
      %v4958 = vld [vmem:[%s4952 + $0x14] sm:$0xf]
      %v4959 = vld [vmem:[%s4952 + $0x18] sm:$0xf]
      %v4960 = vld [vmem:[%s4952 + $0x1c] sm:$0xf]
      %v4961 = vld [vmem:[%s4952 + $0x20] sm:$0xf]
      %v4962 = vld [vmem:[%s4952 + $0x24] sm:$0xf]
      %v4973 = vunpack.c.l.b16 %v4953
      %v4974 = vunpack.c.l.b16 %v4954
      %v4975 = vunpack.c.l.b16 %v4955
      %v4976 = vunpack.c.l.b16 %v4956
      %v4977 = vunpack.c.l.b16 %v4957
      %v4978 = vunpack.c.l.b16 %v4958
      %v4979 = vunpack.c.l.b16 %v4959
      %v4980 = vunpack.c.l.b16 %v4960
      %v4981 = vunpack.c.l.b16 %v4961
      %v4982 = vunpack.c.l.b16 %v4962
      %v4983 = vpack.c.b16 %v4974, %v4973
      %v4984 = vpack.c.b16 %v4976, %v4975
      %v4985 = vpack.c.b16 %v4978, %v4977
      %v4986 = vpack.c.b16 %v4980, %v4979
      %v4987 = vpack.c.b16 %v4982, %v4981
      %v4994 = vsel %vm4833, %v4779, 0
      %4996 = vmatprep.subr.bf16.mxu0 0
      %4997 = vmatpush1.bf16.msra.mxu0 %v4983
      %4998 = vmatprep.subr.bf16.mxu0 0
      %4999 = vmatpush1.bf16.msra.mxu0 %v4984
      %5000 = vmatprep.subr.bf16.mxu0 0
      %5001 = vmatpush1.bf16.msra.mxu0 %v4985
      %5002 = vmatprep.subr.bf16.mxu0 0
      %5003 = vmatpush1.bf16.msra.mxu0 %v4986
      %5004 = vmatprep.subr.bf16.mxu0 0
      %5005 = vmatpush1.bf16.msra.mxu0 %v4987
      %5006 = vmatprep.subr.bf16.mxu0 0
      %5007 = vmatpush1.bf16.msra.mxu0 0
      %5008 = vmatprep.subr.bf16.mxu0 0
      %5009 = vmatpush1.bf16.msra.mxu0 0
      %5010 = vmatprep.subr.bf16.mxu0 0
      %5011 = vmatpush1.bf16.msra.mxu0 0
      %5012 = vmatprep.subr.bf16.mxu0 0
      %5013 = vmatpush1.bf16.msra.mxu0 0
      %5014 = vmatprep.subr.bf16.mxu0 0
      %5015 = vmatpush1.bf16.msra.mxu0 0
      %5016 = vmatprep.subr.bf16.mxu0 0
      %5017 = vmatpush1.bf16.msra.mxu0 0
      %5018 = vmatprep.subr.bf16.mxu0 0
      %5019 = vmatpush1.bf16.msra.mxu0 0
      %5020 = vmatprep.subr.bf16.mxu0 0
      %5021 = vmatpush1.bf16.msra.mxu0 0
      %5022 = vmatprep.subr.bf16.mxu0 0
      %5023 = vmatpush1.bf16.msra.mxu0 0
      %5024 = vmatprep.subr.bf16.mxu0 0
      %5025 = vmatpush1.bf16.msra.mxu0 0
      %5026 = vmatprep.subr.bf16.mxu0 0
      %5027 = vmatpush1.bf16.msra.mxu0 0
      %5028 = vmatprep.mubr.bf16.mxu0 0
      %5029 = vmatmul.mubr.bf16.gmra.mrb[0].mxu0 %v4994
      %v5030 = vpop.f32.mrb[0].mxu0
      %v5031 = vadd.f32 0.0, %v5030
      %v5032 = vpop.f32.mrb[0].mxu0
      %v5033 = vpop.f32.mrb[0].mxu0
      %v5034 = vadd.f32 0.0, %v5033
      %v5035 = vpop.f32.mrb[0].mxu0
      %5036 = vdwg.mxu0
      %v5037 = vadd.f32 %v4946, %v5031
      %v5038 = vadd.f32 %v4949, %v5034
      %s5039 = scalar_lea.vmem %s5, 120
      %v5040 = vld [vmem:[%s5039] sm:$0xf]
      %v5041 = vld [vmem:[%s5039 + $0x4] sm:$0xf]
      %v5042 = vld [vmem:[%s5039 + $0x8] sm:$0xf]
      %v5043 = vld [vmem:[%s5039 + $0xc] sm:$0xf]
      %v5044 = vld [vmem:[%s5039 + $0x10] sm:$0xf]
      %v5045 = vld [vmem:[%s5039 + $0x14] sm:$0xf]
      %v5046 = vld [vmem:[%s5039 + $0x18] sm:$0xf]
      %v5047 = vld [vmem:[%s5039 + $0x1c] sm:$0xf]
      %v5048 = vld [vmem:[%s5039 + $0x20] sm:$0xf]
      %v5049 = vld [vmem:[%s5039 + $0x24] sm:$0xf]
      %v5060 = vunpack.c.l.b16 %v5040
      %v5061 = vunpack.c.l.b16 %v5041
      %v5062 = vunpack.c.l.b16 %v5042
      %v5063 = vunpack.c.l.b16 %v5043
      %v5064 = vunpack.c.l.b16 %v5044
      %v5065 = vunpack.c.l.b16 %v5045
      %v5066 = vunpack.c.l.b16 %v5046
      %v5067 = vunpack.c.l.b16 %v5047
      %v5068 = vunpack.c.l.b16 %v5048
      %v5069 = vunpack.c.l.b16 %v5049
      %v5070 = vpack.c.b16 %v5061, %v5060
      %v5071 = vpack.c.b16 %v5063, %v5062
      %v5072 = vpack.c.b16 %v5065, %v5064
      %v5073 = vpack.c.b16 %v5067, %v5066
      %v5074 = vpack.c.b16 %v5069, %v5068
      %v5081 = vsel %vm4833, %v4780, 0
      %5083 = vmatprep.subr.bf16.mxu0 0
      %5084 = vmatpush1.bf16.msra.mxu0 %v5070
      %5085 = vmatprep.subr.bf16.mxu0 0
      %5086 = vmatpush1.bf16.msra.mxu0 %v5071
      %5087 = vmatprep.subr.bf16.mxu0 0
      %5088 = vmatpush1.bf16.msra.mxu0 %v5072
      %5089 = vmatprep.subr.bf16.mxu0 0
      %5090 = vmatpush1.bf16.msra.mxu0 %v5073
      %5091 = vmatprep.subr.bf16.mxu0 0
      %5092 = vmatpush1.bf16.msra.mxu0 %v5074
      %5093 = vmatprep.subr.bf16.mxu0 0
      %5094 = vmatpush1.bf16.msra.mxu0 0
      %5095 = vmatprep.subr.bf16.mxu0 0
      %5096 = vmatpush1.bf16.msra.mxu0 0
      %5097 = vmatprep.subr.bf16.mxu0 0
      %5098 = vmatpush1.bf16.msra.mxu0 0
      %5099 = vmatprep.subr.bf16.mxu0 0
      %5100 = vmatpush1.bf16.msra.mxu0 0
      %5101 = vmatprep.subr.bf16.mxu0 0
      %5102 = vmatpush1.bf16.msra.mxu0 0
      %5103 = vmatprep.subr.bf16.mxu0 0
      %5104 = vmatpush1.bf16.msra.mxu0 0
      %5105 = vmatprep.subr.bf16.mxu0 0
      %5106 = vmatpush1.bf16.msra.mxu0 0
      %5107 = vmatprep.subr.bf16.mxu0 0
      %5108 = vmatpush1.bf16.msra.mxu0 0
      %5109 = vmatprep.subr.bf16.mxu0 0
      %5110 = vmatpush1.bf16.msra.mxu0 0
      %5111 = vmatprep.subr.bf16.mxu0 0
      %5112 = vmatpush1.bf16.msra.mxu0 0
      %5113 = vmatprep.subr.bf16.mxu0 0
      %5114 = vmatpush1.bf16.msra.mxu0 0
      %5115 = vmatprep.mubr.bf16.mxu0 0
      %5116 = vmatmul.mubr.bf16.gmra.mrb[0].mxu0 %v5081
      %v5117 = vpop.f32.mrb[0].mxu0
      %v5118 = vadd.f32 0.0, %v5117
      %v5119 = vpop.f32.mrb[0].mxu0
      %v5120 = vpop.f32.mrb[0].mxu0
      %v5121 = vadd.f32 0.0, %v5120
      %v5122 = vpop.f32.mrb[0].mxu0
      %5123 = vdwg.mxu0
      %v5124 = vadd.f32 %v5037, %v5118
      %v5125 = vadd.f32 %v5038, %v5121
      %s5126 = scalar_lea.vmem %s5, 160
      %v5127 = vld [vmem:[%s5126] sm:$0xf]
      %v5128 = vld [vmem:[%s5126 + $0x4] sm:$0xf]
      %v5129 = vld [vmem:[%s5126 + $0x8] sm:$0xf]
      %v5130 = vld [vmem:[%s5126 + $0xc] sm:$0xf]
      %v5131 = vld [vmem:[%s5126 + $0x10] sm:$0xf]
      %v5132 = vld [vmem:[%s5126 + $0x14] sm:$0xf]
      %v5133 = vld [vmem:[%s5126 + $0x18] sm:$0xf]
      %v5134 = vld [vmem:[%s5126 + $0x1c] sm:$0xf]
      %v5135 = vld [vmem:[%s5126 + $0x20] sm:$0xf]
      %v5136 = vld [vmem:[%s5126 + $0x24] sm:$0xf]
      %v5147 = vunpack.c.l.b16 %v5127
      %v5148 = vunpack.c.l.b16 %v5128
      %v5149 = vunpack.c.l.b16 %v5129
      %v5150 = vunpack.c.l.b16 %v5130
      %v5151 = vunpack.c.l.b16 %v5131
      %v5152 = vunpack.c.l.b16 %v5132
      %v5153 = vunpack.c.l.b16 %v5133
      %v5154 = vunpack.c.l.b16 %v5134
      %v5155 = vunpack.c.l.b16 %v5135
      %v5156 = vunpack.c.l.b16 %v5136
      %v5157 = vpack.c.b16 %v5148, %v5147
      %v5158 = vpack.c.b16 %v5150, %v5149
      %v5159 = vpack.c.b16 %v5152, %v5151
      %v5160 = vpack.c.b16 %v5154, %v5153
      %v5161 = vpack.c.b16 %v5156, %v5155
      %v5168 = vsel %vm4833, %v4781, 0
      %5170 = vmatprep.subr.bf16.mxu0 0
      %5171 = vmatpush1.bf16.msra.mxu0 %v5157
      %5172 = vmatprep.subr.bf16.mxu0 0
      %5173 = vmatpush1.bf16.msra.mxu0 %v5158
      %5174 = vmatprep.subr.bf16.mxu0 0
      %5175 = vmatpush1.bf16.msra.mxu0 %v5159
      %5176 = vmatprep.subr.bf16.mxu0 0
      %5177 = vmatpush1.bf16.msra.mxu0 %v5160
      %5178 = vmatprep.subr.bf16.mxu0 0
      %5179 = vmatpush1.bf16.msra.mxu0 %v5161
      %5180 = vmatprep.subr.bf16.mxu0 0
      %5181 = vmatpush1.bf16.msra.mxu0 0
      %5182 = vmatprep.subr.bf16.mxu0 0
      %5183 = vmatpush1.bf16.msra.mxu0 0
      %5184 = vmatprep.subr.bf16.mxu0 0
      %5185 = vmatpush1.bf16.msra.mxu0 0
      %5186 = vmatprep.subr.bf16.mxu0 0
      %5187 = vmatpush1.bf16.msra.mxu0 0
      %5188 = vmatprep.subr.bf16.mxu0 0
      %5189 = vmatpush1.bf16.msra.mxu0 0
      %5190 = vmatprep.subr.bf16.mxu0 0
      %5191 = vmatpush1.bf16.msra.mxu0 0
      %5192 = vmatprep.subr.bf16.mxu0 0
      %5193 = vmatpush1.bf16.msra.mxu0 0
      %5194 = vmatprep.subr.bf16.mxu0 0
      %5195 = vmatpush1.bf16.msra.mxu0 0
      %5196 = vmatprep.subr.bf16.mxu0 0
      %5197 = vmatpush1.bf16.msra.mxu0 0
      %5198 = vmatprep.subr.bf16.mxu0 0
      %5199 = vmatpush1.bf16.msra.mxu0 0
      %5200 = vmatprep.subr.bf16.mxu0 0
      %5201 = vmatpush1.bf16.msra.mxu0 0
      %5202 = vmatprep.mubr.bf16.mxu0 0
      %5203 = vmatmul.mubr.bf16.gmra.mrb[0].mxu0 %v5168
      %v5204 = vpop.f32.mrb[0].mxu0
      %v5205 = vadd.f32 0.0, %v5204
      %v5206 = vpop.f32.mrb[0].mxu0
      %v5207 = vpop.f32.mrb[0].mxu0
      %v5208 = vadd.f32 0.0, %v5207
      %v5209 = vpop.f32.mrb[0].mxu0
      %5210 = vdwg.mxu0
      %v5211 = vadd.f32 %v5124, %v5205
      %v5212 = vadd.f32 %v5125, %v5208
      %v5213 = vld [vmem:[%s6] sm:$0x1]
      %v5215 = vlaneseq
      %v5216 = vshrl.u32 %v5215, 7
      %v5217 = vsub.s32 0, %v5216
      %v5218 = vrot.slane %v5213, %v5217
      %v5220 = vadd.f32 %v5211, %v5218
      %v5221 = vadd.f32 %v5212, %v5218
      %v5222 = vmax.f32 %v5220, 0.0
      %v5223 = vmax.f32 %v5221, 0.0
      %v5224 = vpack.c.bf16 %v5223, %v5222
      %v5225 = vld [vmem:[%s7] sm:$0xf]
      %v5226 = vld [vmem:[%s7 + $0x4] sm:$0xf]
      %v5227 = vld [vmem:[%s7 + $0x8] sm:$0xf]
      %v5228 = vld [vmem:[%s7 + $0xc] sm:$0xf]
      %v5229 = vld [vmem:[%s7 + $0x10] sm:$0xf]
      %v5230 = vld [vmem:[%s7 + $0x14] sm:$0xf]
      %v5231 = vld [vmem:[%s7 + $0x18] sm:$0xf]
      %v5232 = vld [vmem:[%s7 + $0x1c] sm:$0xf]
      %v5233 = vld [vmem:[%s7 + $0x20] sm:$0xf]
      %v5234 = vld [vmem:[%s7 + $0x24] sm:$0xf]
      %v5235 = vld [vmem:[%s7 + $0x28] sm:$0xf]
      %v5236 = vld [vmem:[%s7 + $0x2c] sm:$0xf]
      %v5237 = vld [vmem:[%s7 + $0x30] sm:$0xf]
      %v5238 = vld [vmem:[%s7 + $0x34] sm:$0xf]
      %v5239 = vld [vmem:[%s7 + $0x38] sm:$0xf]
      %v5240 = vld [vmem:[%s8] sm:$0x1]
      %v5242 = vlaneseq
      %v5243 = vshrl.u32 %v5242, 7
      %v5244 = vsub.s32 0, %v5243
      %v5245 = vrot.slane %v5240, %v5244
      %v5262 = vunpack.c.l.b16 %v5225
      %v5263 = vunpack.c.l.b16 %v5226
      %v5264 = vunpack.c.l.b16 %v5227
      %v5265 = vunpack.c.l.b16 %v5228
      %v5266 = vunpack.c.l.b16 %v5229
      %v5267 = vunpack.c.l.b16 %v5230
      %v5268 = vunpack.c.l.b16 %v5231
      %v5269 = vunpack.c.l.b16 %v5232
      %v5270 = vunpack.c.l.b16 %v5233
      %v5271 = vunpack.c.l.b16 %v5234
      %v5272 = vunpack.c.l.b16 %v5235
      %v5273 = vunpack.c.l.b16 %v5236
      %v5274 = vunpack.c.l.b16 %v5237
      %v5275 = vunpack.c.l.b16 %v5238
      %v5276 = vunpack.c.l.b16 %v5239
      %v5277 = vpack.c.b16 %v5263, %v5262
      %v5278 = vpack.c.b16 %v5265, %v5264
      %v5279 = vpack.c.b16 %v5267, %v5266
      %v5280 = vpack.c.b16 %v5269, %v5268
      %v5281 = vpack.c.b16 %v5271, %v5270
      %v5282 = vpack.c.b16 %v5273, %v5272
      %v5283 = vpack.c.b16 %v5275, %v5274
      %v5284 = vpack.c.b16 %v5276, %v5276
      %vm5292 = vcmask 982016
      %v5294 = vsel %vm5292, %v5224, 0
      %vm5296 = vcmask 1043456
      %v5298 = vsel %vm5296, %v5284, 0
      %5300 = vmatprep.subr.bf16.mxu0 0
      %5301 = vmatpush1.bf16.msra.mxu0 %v5277
      %5302 = vmatprep.subr.bf16.mxu0 0
      %5303 = vmatpush1.bf16.msra.mxu0 %v5278
      %5304 = vmatprep.subr.bf16.mxu0 0
      %5305 = vmatpush1.bf16.msra.mxu0 %v5279
      %5306 = vmatprep.subr.bf16.mxu0 0
      %5307 = vmatpush1.bf16.msra.mxu0 %v5280
      %5308 = vmatprep.subr.bf16.mxu0 0
      %5309 = vmatpush1.bf16.msra.mxu0 %v5281
      %5310 = vmatprep.subr.bf16.mxu0 0
      %5311 = vmatpush1.bf16.msra.mxu0 %v5282
      %5312 = vmatprep.subr.bf16.mxu0 0
      %5313 = vmatpush1.bf16.msra.mxu0 %v5283
      %5314 = vmatprep.subr.bf16.mxu0 0
      %5315 = vmatpush1.bf16.msra.mxu0 %v5298
      %5316 = vmatprep.subr.bf16.mxu0 0
      %5317 = vmatpush1.bf16.msra.mxu0 0
      %5318 = vmatprep.subr.bf16.mxu0 0
      %5319 = vmatpush1.bf16.msra.mxu0 0
      %5320 = vmatprep.subr.bf16.mxu0 0
      %5321 = vmatpush1.bf16.msra.mxu0 0
      %5322 = vmatprep.subr.bf16.mxu0 0
      %5323 = vmatpush1.bf16.msra.mxu0 0
      %5324 = vmatprep.subr.bf16.mxu0 0
      %5325 = vmatpush1.bf16.msra.mxu0 0
      %5326 = vmatprep.subr.bf16.mxu0 0
      %5327 = vmatpush1.bf16.msra.mxu0 0
      %5328 = vmatprep.subr.bf16.mxu0 0
      %5329 = vmatpush1.bf16.msra.mxu0 0
      %5330 = vmatprep.subr.bf16.mxu0 0
      %5331 = vmatpush1.bf16.msra.mxu0 0
      %5332 = vmatprep.mubr.bf16.mxu0 0
      %5333 = vmatmul.mubr.bf16.gmra.mrb[0].mxu0 %v5294
      %v5334 = vpop.f32.mrb[0].mxu0
      %v5335 = vadd.f32 %v5245, %v5334
      %v5336 = vpop.f32.mrb[0].mxu0
      %v5337 = vpop.f32.mrb[0].mxu0
      %v5338 = vadd.f32 %v5245, %v5337
      %v5339 = vpop.f32.mrb[0].mxu0
      %5340 = vdwg.mxu0
      %v5341 = vmax.f32 %v5335, 0.0
      %v5342 = vmax.f32 %v5338, 0.0
      %v5343 = vpack.c.bf16 %v5342, %v5341
      %v5344 = vld [vmem:[%s9] sm:$0xf]
      %v5345 = vld [vmem:[%s9 + $0x4] sm:$0xf]
      %v5346 = vld [vmem:[%s9 + $0x8] sm:$0xf]
      %v5347 = vld [vmem:[%s9 + $0xc] sm:$0xf]
      %v5348 = vld [vmem:[%s9 + $0x10] sm:$0xf]
      %v5349 = vld [vmem:[%s9 + $0x14] sm:$0xf]
      %v5350 = vld [vmem:[%s9 + $0x18] sm:$0xf]
      %v5351 = vld [vmem:[%s9 + $0x1c] sm:$0xf]
      %v5352 = vld [vmem:[%s9 + $0x20] sm:$0xf]
      %v5353 = vld [vmem:[%s9 + $0x24] sm:$0xf]
      %v5354 = vld [vmem:[%s9 + $0x28] sm:$0x3]
      %v5355 = vld [vmem:[%s10] sm:$0x1]
      %v5357 = vlaneseq
      %v5358 = vshrl.u32 %v5357, 7
      %v5359 = vsub.s32 0, %v5358
      %v5360 = vrot.slane %v5355, %v5359
      %v5373 = vunpack.c.l.b16 %v5344
      %v5374 = vunpack.c.l.b16 %v5345
      %v5375 = vunpack.c.l.b16 %v5346
      %v5376 = vunpack.c.l.b16 %v5347
      %v5377 = vunpack.c.l.b16 %v5348
      %v5378 = vunpack.c.l.b16 %v5349
      %v5379 = vunpack.c.l.b16 %v5350
      %v5380 = vunpack.c.l.b16 %v5351
      %v5381 = vunpack.c.l.b16 %v5352
      %v5382 = vunpack.c.l.b16 %v5353
      %v5383 = vunpack.c.l.b16 %v5354
      %v5384 = vpack.c.b16 %v5374, %v5373
      %v5385 = vpack.c.b16 %v5376, %v5375
      %v5386 = vpack.c.b16 %v5378, %v5377
      %v5387 = vpack.c.b16 %v5380, %v5379
      %v5388 = vpack.c.b16 %v5382, %v5381
      %v5389 = vpack.c.b16 %v5383, %v5383
      %vm5395 = vcmask 687104
      %v5397 = vsel %vm5395, %v5343, 0
      %vm5399 = vcmask 1041408
      %v5401 = vsel %vm5399, %v5389, 0
      %5403 = vmatprep.subr.bf16.mxu0 0
      %5404 = vmatpush1.bf16.msra.mxu0 %v5384
      %5405 = vmatprep.subr.bf16.mxu0 0
      %5406 = vmatpush1.bf16.msra.mxu0 %v5385
      %5407 = vmatprep.subr.bf16.mxu0 0
      %5408 = vmatpush1.bf16.msra.mxu0 %v5386
      %5409 = vmatprep.subr.bf16.mxu0 0
      %5410 = vmatpush1.bf16.msra.mxu0 %v5387
      %5411 = vmatprep.subr.bf16.mxu0 0
      %5412 = vmatpush1.bf16.msra.mxu0 %v5388
      %5413 = vmatprep.subr.bf16.mxu0 0
      %5414 = vmatpush1.bf16.msra.mxu0 %v5401
      %5415 = vmatprep.subr.bf16.mxu0 0
      %5416 = vmatpush1.bf16.msra.mxu0 0
      %5417 = vmatprep.subr.bf16.mxu0 0
      %5418 = vmatpush1.bf16.msra.mxu0 0
      %5419 = vmatprep.subr.bf16.mxu0 0
      %5420 = vmatpush1.bf16.msra.mxu0 0
      %5421 = vmatprep.subr.bf16.mxu0 0
      %5422 = vmatpush1.bf16.msra.mxu0 0
      %5423 = vmatprep.subr.bf16.mxu0 0
      %5424 = vmatpush1.bf16.msra.mxu0 0
      %5425 = vmatprep.subr.bf16.mxu0 0
      %5426 = vmatpush1.bf16.msra.mxu0 0
      %5427 = vmatprep.subr.bf16.mxu0 0
      %5428 = vmatpush1.bf16.msra.mxu0 0
      %5429 = vmatprep.subr.bf16.mxu0 0
      %5430 = vmatpush1.bf16.msra.mxu0 0
      %5431 = vmatprep.subr.bf16.mxu0 0
      %5432 = vmatpush1.bf16.msra.mxu0 0
      %5433 = vmatprep.subr.bf16.mxu0 0
      %5434 = vmatpush1.bf16.msra.mxu0 0
      %5435 = vmatprep.mubr.bf16.mxu0 0
      %5436 = vmatmul.mubr.bf16.gmra.mrb[0].mxu0 %v5397
      %v5437 = vpop.f32.mrb[0].mxu0
      %v5438 = vadd.f32 %v5360, %v5437
      %v5439 = vpop.f32.mrb[0].mxu0
      %v5440 = vpop.f32.mrb[0].mxu0
      %v5441 = vadd.f32 %v5360, %v5440
      %v5442 = vpop.f32.mrb[0].mxu0
      %5443 = vdwg.mxu0
      %5444 = vst [vmem:[%s388] sm:$0xff] %v5438
      %5445 = vst [vmem:[%s388 + $0x8] sm:$0xff] %v5441
      %s5446 = smul.u32 2, %s22
      %p5447 = scmp.lt.s32.totalorder %s5446, 3
      %s5448 = scalar_select %p5447, %s5446, 3
      %s5449 = smul.addr %s5448, 8
      %s5450 = scalar_lea.vmem %s11, %s5449
      // Predicated region
      $region65: #{_lambda_.1} parent=63 // pred_check
        %p5451 = pneg %p276
      $region66: #{_lambda_.1} parent=63 // pred_check_branch
        %5453 = sbr.rel (%p5451) target = $region68
      $region67: #{_lambda_.1} parent=63 // pred_region
        %s5454 = smul.u32 2, %s22
      $region68: #{_lambda_.1} parent=63 // pred_fallthru
        _
    $region64: #{_lambda_.1} parent=5 // pred_fallthru
      _
    %p5455 = scmp.le.s32.totalorder 2, %s17
    // Predicated region
    $region69: #{_lambda_.1} parent=5 // pred_check
      %p5456 = pneg %p5455
    $region70: #{_lambda_.1} parent=5 // pred_check_branch
      %5458 = sbr.rel (%p5456) target = $region72
    $region71: #{_lambda_.1} parent=5 // pred_region
      %s5459 = ssub.s32 %s17, 2
      // Predicated region
      $region73: #{_lambda_.1} parent=71 // pred_check
        %p5460 = pneg %p282
      $region74: #{_lambda_.1} parent=71 // pred_check_branch
        %5462 = sbr.rel (%p5460) target = $region76
      $region75: #{_lambda_.1} parent=71 // pred_region
        %s5463 = smul.u32 2, %s23
        %p5464 = scmp.lt.s32.totalorder %s5463, 3
        %s5465 = scalar_select %p5464, %s5463, 3
        %s5466 = smul.addr %s5465, 8
        %s5467 = scalar_lea.vmem %s11, %s5466
      $region76: #{_lambda_.1} parent=71 // pred_fallthru
        _
    $region72: #{_lambda_.1} parent=5 // pred_fallthru
      _
  $region6: #{_lambda_.1} parent=0 // loop_footer
    %s21 = sadd.s32 1, %s17
  $region7: #{_lambda_.1} parent=0 // loop_footer_branch
    %16 = sbr.rel target = $region3
  $region8: #{_lambda_.1} parent=0 // loop_exit
    _

</llo_original>
